<compile_context>
chip_gen: v7x
topology: tpu7x:2x2x1
jax: 0.10.0
libtpu: 0.0.40
codegen_flags: <defaults>
</compile_context>

<pallas_src>
import functools

import jax
import jax.numpy as jnp
from jax import lax
from jax.experimental import pallas as pl
from jax.experimental.pallas import tpu as pltpu

MAX_NODES = 128          # per-graph node padding (== vreg lane width)
NEG_SLOPE = 0.2          # GATv2Conv default negative_slope


def _gatv2_layer(x, adj, w_ref, b_ref, att_ref, ob_ref, projT_s, *,
                 heads, c_dim, apply_relu):
    """One GATv2Conv layer (concat=False -> mean over heads), VMEM-resident.

    x        : (N, F_in)     f32 value, node features
    adj      : (N, N)        f32 value, adj[dst, src] incl. self-loops
    w_ref    : (F_in, 2*H*C) bf16, fused [lin_l | lin_r] weight
    b_ref    : (1, 2*H*C)    f32,  fused [bl | br] bias
    att_ref  : (H, C)        f32,  attention vectors (SMEM)
    ob_ref   : (1, C)        f32,  output bias
    projT_s  : (2*H*C, N)    f32 VMEM scratch (transposed projection)
    returns  : (N, C) f32
    """
    n = x.shape[0]
    hc = heads * c_dim

    # Fused lin_l/lin_r projection: one (N, F_in) x (F_in, 2*H*C) MXU matmul,
    # bf16 inputs, f32 accumulation, bias folded into the epilogue.
    proj = jnp.dot(x.astype(jnp.bfloat16), w_ref[...],
                   preferred_element_type=jnp.float32) + b_ref[...]
    xl = proj[:, :hc]                       # source-side ("message") features
    # Transposed copy: per-channel rows (src in lanes) become cheap sublane reads.
    projT_s[0:2 * hc, :] = jnp.transpose(proj)

    chan_iota = lax.broadcasted_iota(jnp.int32, (n, c_dim), 1)
    acc = jnp.zeros((n, c_dim), jnp.float32)

    for h in range(heads):                  # static unroll, heads == 2
        xr_h = proj[:, hc + h * c_dim: hc + (h + 1) * c_dim]   # (N, C) target side
        xl_h = xl[:, h * c_dim:(h + 1) * c_dim]                # (N, C) source side

        # e[dst, src] = sum_c att[h, c] * leaky_relu(xr_h[dst, c] + xl_h[src, c])
        # accumulated as a C-loop over (N, N) tiles: N_src stays dense in lanes,
        # never materializing an (N, N, C) tensor with C in the lane dim.
        def score_step(c, e, h=h, xr_h=xr_h):
            col = jnp.sum(jnp.where(chan_iota == c, xr_h, 0.0),
                          axis=1, keepdims=True)                 # (N, 1) = xr_h[:, c]
            row = projT_s[pl.ds(h * c_dim + c, 1), :]            # (1, N) = xl_h[:, c]
            z = col + row
            z = jnp.where(z > 0, z, NEG_SLOPE * z)               # LeakyReLU(0.2)
            return e + att_ref[h, c] * z                         # scalar from SMEM

        e = lax.fori_loop(0, c_dim, score_step,
                          jnp.zeros((n, n), jnp.float32))

        # Segment softmax over incoming edges.  The global row max keeps
        # exp() <= 1, so a single "* adj" mask suffices; the denominator is
        # guarded so padded / isolated rows cannot produce NaN.
        e = e - jnp.max(e, axis=1, keepdims=True)
        p = jnp.exp(e) * adj
        denom = jnp.maximum(jnp.sum(p, axis=1, keepdims=True), 1e-20)
        alpha = p * pl.reciprocal(denom, approx=True)

        # Aggregate lin_l-projected source features (MXU, bf16 in / f32 acc).
        acc = acc + jnp.dot(alpha.astype(jnp.bfloat16),
                            xl_h.astype(jnp.bfloat16),
                            preferred_element_type=jnp.float32)

    out = acc * (1.0 / heads) + ob_ref[...]   # concat=False -> head mean, + bias
    if apply_relu:
        out = jnp.maximum(out, 0.0)
    return out


def _gnn6_kernel(x_ref, adj_ref,
                 w1, b1, att1, ob1,
                 w2, b2, att2, ob2,
                 w3, b3, att3, ob3,
                 o_ref, projT_s, *, heads, c_mid, c_out):
    """All three GATv2 layers fused; one grid step == one (padded) graph."""
    adj = adj_ref[...].astype(jnp.float32)    # bf16 in HBM, cast once for the VPU
    x = x_ref[...]
    x = _gatv2_layer(x, adj, w1, b1, att1, ob1, projT_s,
                     heads=heads, c_dim=c_mid, apply_relu=True)
    x = _gatv2_layer(x, adj, w2, b2, att2, ob2, projT_s,
                     heads=heads, c_dim=c_mid, apply_relu=True)
    x = _gatv2_layer(x, adj, w3, b3, att3, ob3, projT_s,
                     heads=heads, c_dim=c_out, apply_relu=False)
    # Lane-dense epilogue: pad channels to the 128-wide output slab (full vst,
    # no masked partial stores).
    pad = o_ref.shape[-1] - x.shape[-1]
    if pad:
        x = jnp.concatenate(
            [x, jnp.zeros((x.shape[0], pad), jnp.float32)], axis=1)
    o_ref[...] = x


def gnn6_gat_stack(x, adj, layer_params, *, heads):
    """x: (G, N, F_in) f32, adj: (G, N, N) bf16 -> (G, N, N) f32 (chan-padded)."""
    g, n, f_in = x.shape
    c_mid = layer_params[0]["bias"].shape[-1]
    c_out = layer_params[2]["bias"].shape[-1]
    kernel = functools.partial(_gnn6_kernel, heads=heads, c_mid=c_mid,
                               c_out=c_out)

    def _full2d(shape):
        return pl.BlockSpec(shape, lambda i: (0, 0))

    in_specs = [pl.BlockSpec((None, n, f_in), lambda i: (i, 0, 0)),
                pl.BlockSpec((None, n, n), lambda i: (i, 0, 0))]
    args = [x, adj]
    for p in layer_params:
        in_specs += [_full2d(p["w"].shape), _full2d(p["b"].shape),
                     pl.BlockSpec(memory_space=pltpu.MemorySpace.SMEM),
                     _full2d(p["bias"].shape)]
        args += [p["w"], p["b"], p["att"], p["bias"]]

    return pl.pallas_call(
        kernel,
        grid=(g,),
        in_specs=in_specs,
        out_specs=pl.BlockSpec((None, n, n), lambda i: (i, 0, 0)),
        out_shape=jax.ShapeDtypeStruct((g, n, n), jnp.float32),
        scratch_shapes=[
            pltpu.VMEM((2 * heads * max(c_mid, c_out), n), jnp.float32)],
        compiler_params=pltpu.CompilerParams(
            dimension_semantics=("parallel",),       # graphs shard across TCs
            vmem_limit_bytes=32 * 1024 * 1024),
    )(*args)


# ---------------------------------------------------------------------------
# GNN6 model (synthetic deterministic parameters).
# ---------------------------------------------------------------------------

def init_gatv2_params(key, in_dim, out_dim, heads):
    k1, k2, k3, k4, k5 = jax.random.split(key, 5)
    scale = 1.0 / jnp.sqrt(in_dim)
    wl = jax.random.normal(k1, (in_dim, heads * out_dim), jnp.float32) * scale
    wr = jax.random.normal(k2, (in_dim, heads * out_dim), jnp.float32) * scale
    bl = jax.random.normal(k3, (1, heads * out_dim), jnp.float32) * 0.01
    br = jax.random.normal(k4, (1, heads * out_dim), jnp.float32) * 0.01
    att = jax.random.normal(k5, (heads, out_dim), jnp.float32) / jnp.sqrt(out_dim)
    return dict(
        w=jnp.concatenate([wl, wr], axis=1).astype(jnp.bfloat16),  # fused [lin_l|lin_r]
        b=jnp.concatenate([bl, br], axis=1),
        att=att,
        bias=jnp.zeros((1, out_dim), jnp.float32),
    )


def gnn6_forward(tokens, node_mask, adj, params):
    # tokens_to_embeddings_batched: embedding lookup (plain JAX gather); padded
    # nodes are zeroed via node_mask.
    x = jnp.take(params["embedding"], tokens, axis=0) * node_mask   # (G, N, F)
    # dropout_node: identity in eval mode (training=False) -> edges unchanged.
    heads = params["conv1"]["att"].shape[0]
    layer_params = [params["conv1"], params["conv2"], params["conv3"]]
    out_full = gnn6_gat_stack(x, adj, layer_params, heads=heads)
    # global_master_pool: pick the master node of each graph.
    # TODO(synk): exact master-node convention of GraphCLIP's global_master_pool
    # (first vs. last node per graph) not verifiable here; using node 0.
    c_out = params["conv3"]["bias"].shape[-1]
    return out_full[:, 0, :c_out]


if __name__ == "__main__":
    key = jax.random.PRNGKey(0)
    k_emb, k_tok, k1, k2, k3 = jax.random.split(key, 5)

    # Small shapes: 2 graphs x 8 real nodes (padded to 128), dims 32, heads 2.
    num_graphs = 2
    nodes_per_graph = 8
    vocab_size = 64 + 4          # CLIP vocab stand-in + 4 extra tokens
    in_dim = 32                  # embedding dim
    middle_dim = 32
    out_dim = 32
    heads = 2

    embedding = jax.random.normal(k_emb, (vocab_size, in_dim), jnp.float32) * 0.1
    params = dict(
        embedding=embedding,
        conv1=init_gatv2_params(k1, in_dim, middle_dim, heads),
        conv2=init_gatv2_params(k2, middle_dim, middle_dim, heads),
        conv3=init_gatv2_params(k3, middle_dim, out_dim, heads),
    )

    # Node tokens, padded per graph to MAX_NODES (padding rows masked to 0).
    tokens_real = jax.random.randint(k_tok, (num_graphs, nodes_per_graph), 0,
                                     vocab_size, dtype=jnp.int32)
    tokens = jnp.zeros((num_graphs, MAX_NODES), jnp.int32)
    tokens = tokens.at[:, :nodes_per_graph].set(tokens_real)
    node_mask = jnp.zeros((num_graphs, MAX_NODES, 1), jnp.float32)
    node_mask = node_mask.at[:, :nodes_per_graph, :].set(1.0)

    # Per-graph dense adjacency adj[dst, src]: a chain i-1 -> i plus a star
    # i -> 0 (master), with self-loops on every node (including padded ones so
    # no softmax row is empty).  Stored in bf16 to halve the O(N^2) HBM bytes.
    src_list, dst_list = [], []
    for i in range(1, nodes_per_graph):
        src_list += [i - 1, i]
        dst_list += [i, 0]
    local = jnp.zeros((MAX_NODES, MAX_NODES), jnp.float32)
    local = local.at[jnp.array(dst_list), jnp.array(src_list)].set(1.0)
    local = local.at[jnp.arange(MAX_NODES), jnp.arange(MAX_NODES)].set(1.0)
    adj = jnp.broadcast_to(local, (num_graphs, MAX_NODES, MAX_NODES))
    adj = adj.astype(jnp.bfloat16)

    out = jax.jit(gnn6_forward)(tokens, node_mask, adj, params)
    out = jax.block_until_ready(out)
    assert out.shape == (num_graphs, out_dim), out.shape
    assert bool(jnp.all(jnp.isfinite(out)))
    print("KERNEL_OK")
</pallas_src>

<mosaic_0001>
module attributes {stable_mosaic.version = 11 : i64} {
  func.func @_gnn6_kernel(%arg0: i32, %arg1: memref<1x128x32xf32, #tpu.memory_space<vmem>>, %arg2: memref<1x128x128xbf16, #tpu.memory_space<vmem>>, %arg3: memref<32x128xbf16, #tpu.memory_space<vmem>>, %arg4: memref<1x128xf32, #tpu.memory_space<vmem>>, %arg5: memref<2x32xf32, #tpu.memory_space<smem>>, %arg6: memref<1x32xf32, #tpu.memory_space<vmem>>, %arg7: memref<32x128xbf16, #tpu.memory_space<vmem>>, %arg8: memref<1x128xf32, #tpu.memory_space<vmem>>, %arg9: memref<2x32xf32, #tpu.memory_space<smem>>, %arg10: memref<1x32xf32, #tpu.memory_space<vmem>>, %arg11: memref<32x128xbf16, #tpu.memory_space<vmem>>, %arg12: memref<1x128xf32, #tpu.memory_space<vmem>>, %arg13: memref<2x32xf32, #tpu.memory_space<smem>>, %arg14: memref<1x32xf32, #tpu.memory_space<vmem>>, %arg15: memref<1x128x128xf32, #tpu.memory_space<vmem>>, %arg16: memref<128x128xf32, #tpu.memory_space<vmem>>) attributes {dimension_semantics = [#tpu.dimension_semantics<parallel>], iteration_bounds = array<i64: 2>, scalar_prefetch = 0 : i64, scratch_operands = 1 : i64, tpu.core_type = #tpu.core_type<tc>, window_params = [{transform_indices = @transform_0, window_bounds = array<i64: 1, 128, 32>}, {transform_indices = @transform_1, window_bounds = array<i64: 1, 128, 128>}, {pipeline_mode = #tpu.pipeline_mode<synchronous>, transform_indices = @transform_2, window_bounds = array<i64: 32, 128>}, {pipeline_mode = #tpu.pipeline_mode<synchronous>, transform_indices = @transform_3, window_bounds = array<i64: 1, 128>}, {transform_indices = @transform_4, window_bounds = array<i64: 2, 32>}, {pipeline_mode = #tpu.pipeline_mode<synchronous>, transform_indices = @transform_5, window_bounds = array<i64: 1, 32>}, {pipeline_mode = #tpu.pipeline_mode<synchronous>, transform_indices = @transform_6, window_bounds = array<i64: 32, 128>}, {pipeline_mode = #tpu.pipeline_mode<synchronous>, transform_indices = @transform_7, window_bounds = array<i64: 1, 128>}, {transform_indices = @transform_8, window_bounds = array<i64: 2, 32>}, {pipeline_mode = #tpu.pipeline_mode<synchronous>, transform_indices = @transform_9, window_bounds = array<i64: 1, 32>}, {pipeline_mode = #tpu.pipeline_mode<synchronous>, transform_indices = @transform_10, window_bounds = array<i64: 32, 128>}, {pipeline_mode = #tpu.pipeline_mode<synchronous>, transform_indices = @transform_11, window_bounds = array<i64: 1, 128>}, {transform_indices = @transform_12, window_bounds = array<i64: 2, 32>}, {pipeline_mode = #tpu.pipeline_mode<synchronous>, transform_indices = @transform_13, window_bounds = array<i64: 1, 32>}, {transform_indices = @transform_14, window_bounds = array<i64: 1, 128, 128>}]} {
    %c0 = arith.constant 0 : index
    %c0_0 = arith.constant 0 : index
    %c0_1 = arith.constant 0 : index
    %0 = vector.load %arg2[%c0, %c0_0, %c0_1] : memref<1x128x128xbf16, #tpu.memory_space<vmem>>, vector<1x128x128xbf16>
    %1 = vector.shape_cast %0 : vector<1x128x128xbf16> to vector<128x128xbf16>
    %2 = arith.extf %1 : vector<128x128xbf16> to vector<128x128xf32>
    %c0_2 = arith.constant 0 : index
    %c0_3 = arith.constant 0 : index
    %c0_4 = arith.constant 0 : index
    %3 = vector.load %arg1[%c0_2, %c0_3, %c0_4] : memref<1x128x32xf32, #tpu.memory_space<vmem>>, vector<1x128x32xf32>
    %4 = vector.shape_cast %3 : vector<1x128x32xf32> to vector<128x32xf32>
    %5 = arith.truncf %4 : vector<128x32xf32> to vector<128x32xbf16>
    %c0_5 = arith.constant 0 : index
    %c0_6 = arith.constant 0 : index
    %6 = vector.load %arg3[%c0_5, %c0_6] : memref<32x128xbf16, #tpu.memory_space<vmem>>, vector<32x128xbf16>
    %cst = arith.constant dense<0.000000e+00> : vector<128x128xf32>
    %7 = tpu.matmul %5, %6, %cst {dimension_numbers = #tpu.dot_dimension_numbers<[1], [0], [0], [1], [0, 0, 1, 1], [], []>} : vector<128x32xbf16>, vector<32x128xbf16>, vector<128x128xf32> -> vector<128x128xf32>
    %c0_7 = arith.constant 0 : index
    %c0_8 = arith.constant 0 : index
    %8 = vector.load %arg4[%c0_7, %c0_8] : memref<1x128xf32, #tpu.memory_space<vmem>>, vector<1x128xf32>
    %9 = vector.broadcast %8 : vector<1x128xf32> to vector<128x128xf32>
    %10 = arith.addf %7, %9 : vector<128x128xf32>
    %11 = vector.extract_strided_slice %10 {offsets = [0, 0], sizes = [128, 64], strides = [1, 1]} : vector<128x128xf32> to vector<128x64xf32>
    %12 = tpu.transpose %10, [1, 0] : vector<128x128xf32> -> vector<128x128xf32>
    %c0_9 = arith.constant 0 : index
    %c0_10 = arith.constant 0 : index
    %13 = vector.load %arg16[%c0_9, %c0_10] : memref<128x128xf32, #tpu.memory_space<vmem>>, vector<128x128xf32>
    tpu.vector_store %arg16[%c0_9, %c0_10], %12 {strides = array<i32>} : memref<128x128xf32, #tpu.memory_space<vmem>>, vector<128x128xf32>,
    %14 = tpu.iota {dimensions = array<i32: 1>} : vector<128x32xi32>
    %cst_11 = arith.constant 0.000000e+00 : f32
    %15 = vector.broadcast %cst_11 : f32 to vector<128x32xf32>
    %16 = vector.extract_strided_slice %10 {offsets = [0, 64], sizes = [128, 32], strides = [1, 1]} : vector<128x128xf32> to vector<128x32xf32>
    %17 = vector.extract_strided_slice %11 {offsets = [0, 0], sizes = [128, 32], strides = [1, 1]} : vector<128x64xf32> to vector<128x32xf32>
    %cst_12 = arith.constant 0.000000e+00 : f32
    %18 = vector.broadcast %cst_12 : f32 to vector<128x128xf32>
    %c0_i32 = arith.constant 0 : i32
    %c32_i32 = arith.constant 32 : i32
    %19 = arith.addi %c0_i32, %c32_i32 : i32
    %c1_i32 = arith.constant 1 : i32
    %20 = scf.for %arg17 = %c0_i32 to %19 step %c1_i32 iter_args(%arg18 = %18) -> (vector<128x128xf32>)  : i32 {
      %194 = vector.broadcast %arg17 : i32 to vector<128x32xi32>
      %195 = arith.cmpi eq, %14, %194 : vector<128x32xi32>
      %cst_94 = arith.constant 0.000000e+00 : f32
      %196 = vector.broadcast %cst_94 : f32 to vector<128x32xf32>
      %197 = arith.select %195, %16, %196 : vector<128x32xi1>, vector<128x32xf32>
      %cst_95 = arith.constant dense<0.000000e+00> : vector<128xf32>
      %198 = vector.multi_reduction <add>, %197, %cst_95 [1] : vector<128x32xf32> to vector<128xf32>
      %199 = vector.shape_cast %198 : vector<128xf32> to vector<128x1xf32>
      %c0_i32_96 = arith.constant 0 : i32
      %200 = arith.addi %c0_i32_96, %arg17 : i32
      %201 = arith.index_cast %200 : i32 to index
      %c0_97 = arith.constant 0 : index
      %202 = vector.load %arg16[%201, %c0_97] : memref<128x128xf32, #tpu.memory_space<vmem>>, vector<1x128xf32>
      %203 = vector.broadcast %199 : vector<128x1xf32> to vector<128x128xf32>
      %204 = vector.broadcast %202 : vector<1x128xf32> to vector<128x128xf32>
      %205 = arith.addf %203, %204 : vector<128x128xf32>
      %cst_98 = arith.constant 0.000000e+00 : f32
      %206 = vector.broadcast %cst_98 : f32 to vector<128x128xf32>
      %207 = arith.cmpf ogt, %205, %206 : vector<128x128xf32>
      %cst_99 = arith.constant 2.000000e-01 : f32
      %208 = vector.broadcast %cst_99 : f32 to vector<128x128xf32>
      %209 = arith.mulf %208, %205 : vector<128x128xf32>
      %210 = arith.select %207, %205, %209 : vector<128x128xi1>, vector<128x128xf32>
      %c0_100 = arith.constant 0 : index
      %211 = arith.index_cast %arg17 : i32 to index
      %212 = memref.load %arg5[%c0_100, %211] : memref<2x32xf32, #tpu.memory_space<smem>>
      %213 = vector.broadcast %212 : f32 to vector<128x128xf32>
      %214 = arith.mulf %213, %210 : vector<128x128xf32>
      %215 = arith.addf %arg18, %214 : vector<128x128xf32>
      scf.yield %215 : vector<128x128xf32>
    }
    %c32_i32_13 = arith.constant 32 : i32
    %cst_14 = arith.constant dense<0xFF800000> : vector<128xf32>
    %21 = vector.multi_reduction <maximumf>, %20, %cst_14 [1] : vector<128x128xf32> to vector<128xf32>
    %22 = vector.shape_cast %21 : vector<128xf32> to vector<128x1xf32>
    %23 = vector.broadcast %22 : vector<128x1xf32> to vector<128x128xf32>
    %24 = arith.subf %20, %23 : vector<128x128xf32>
    %25 = math.exp %24 : vector<128x128xf32>
    %26 = arith.mulf %25, %2 : vector<128x128xf32>
    %cst_15 = arith.constant dense<0.000000e+00> : vector<128xf32>
    %27 = vector.multi_reduction <add>, %26, %cst_15 [1] : vector<128x128xf32> to vector<128xf32>
    %28 = vector.shape_cast %27 : vector<128xf32> to vector<128x1xf32>
    %cst_16 = arith.constant 9.99999968E-21 : f32
    %29 = vector.broadcast %cst_16 : f32 to vector<128x1xf32>
    %30 = arith.maximumf %28, %29 : vector<128x1xf32>
    %31 = tpu.reciprocal %30 {approx = true} : vector<128x1xf32> -> vector<128x1xf32>
    %32 = vector.broadcast %31 : vector<128x1xf32> to vector<128x128xf32>
    %33 = arith.mulf %26, %32 : vector<128x128xf32>
    %34 = arith.truncf %33 : vector<128x128xf32> to vector<128x128xbf16>
    %35 = arith.truncf %17 : vector<128x32xf32> to vector<128x32xbf16>
    %cst_17 = arith.constant dense<0.000000e+00> : vector<128x32xf32>
    %36 = tpu.matmul %34, %35, %cst_17 {dimension_numbers = #tpu.dot_dimension_numbers<[1], [0], [0], [1], [0, 0, 1, 1], [], []>} : vector<128x128xbf16>, vector<128x32xbf16>, vector<128x32xf32> -> vector<128x32xf32>
    %37 = arith.addf %15, %36 : vector<128x32xf32>
    %38 = vector.extract_strided_slice %10 {offsets = [0, 96], sizes = [128, 32], strides = [1, 1]} : vector<128x128xf32> to vector<128x32xf32>
    %39 = vector.extract_strided_slice %11 {offsets = [0, 32], sizes = [128, 32], strides = [1, 1]} : vector<128x64xf32> to vector<128x32xf32>
    %cst_18 = arith.constant 0.000000e+00 : f32
    %40 = vector.broadcast %cst_18 : f32 to vector<128x128xf32>
    %c0_i32_19 = arith.constant 0 : i32
    %c32_i32_20 = arith.constant 32 : i32
    %41 = arith.addi %c0_i32_19, %c32_i32_20 : i32
    %c1_i32_21 = arith.constant 1 : i32
    %42 = scf.for %arg17 = %c0_i32_19 to %41 step %c1_i32_21 iter_args(%arg18 = %40) -> (vector<128x128xf32>)  : i32 {
      %194 = vector.broadcast %arg17 : i32 to vector<128x32xi32>
      %195 = arith.cmpi eq, %14, %194 : vector<128x32xi32>
      %cst_94 = arith.constant 0.000000e+00 : f32
      %196 = vector.broadcast %cst_94 : f32 to vector<128x32xf32>
      %197 = arith.select %195, %38, %196 : vector<128x32xi1>, vector<128x32xf32>
      %cst_95 = arith.constant dense<0.000000e+00> : vector<128xf32>
      %198 = vector.multi_reduction <add>, %197, %cst_95 [1] : vector<128x32xf32> to vector<128xf32>
      %199 = vector.shape_cast %198 : vector<128xf32> to vector<128x1xf32>
      %c32_i32_96 = arith.constant 32 : i32
      %200 = arith.addi %c32_i32_96, %arg17 : i32
      %201 = arith.index_cast %200 : i32 to index
      %c0_97 = arith.constant 0 : index
      %202 = vector.load %arg16[%201, %c0_97] : memref<128x128xf32, #tpu.memory_space<vmem>>, vector<1x128xf32>
      %203 = vector.broadcast %199 : vector<128x1xf32> to vector<128x128xf32>
      %204 = vector.broadcast %202 : vector<1x128xf32> to vector<128x128xf32>
      %205 = arith.addf %203, %204 : vector<128x128xf32>
      %cst_98 = arith.constant 0.000000e+00 : f32
      %206 = vector.broadcast %cst_98 : f32 to vector<128x128xf32>
      %207 = arith.cmpf ogt, %205, %206 : vector<128x128xf32>
      %cst_99 = arith.constant 2.000000e-01 : f32
      %208 = vector.broadcast %cst_99 : f32 to vector<128x128xf32>
      %209 = arith.mulf %208, %205 : vector<128x128xf32>
      %210 = arith.select %207, %205, %209 : vector<128x128xi1>, vector<128x128xf32>
      %c1 = arith.constant 1 : index
      %211 = arith.index_cast %arg17 : i32 to index
      %212 = memref.load %arg5[%c1, %211] : memref<2x32xf32, #tpu.memory_space<smem>>
      %213 = vector.broadcast %212 : f32 to vector<128x128xf32>
      %214 = arith.mulf %213, %210 : vector<128x128xf32>
      %215 = arith.addf %arg18, %214 : vector<128x128xf32>
      scf.yield %215 : vector<128x128xf32>
    }
    %c32_i32_22 = arith.constant 32 : i32
    %cst_23 = arith.constant dense<0xFF800000> : vector<128xf32>
    %43 = vector.multi_reduction <maximumf>, %42, %cst_23 [1] : vector<128x128xf32> to vector<128xf32>
    %44 = vector.shape_cast %43 : vector<128xf32> to vector<128x1xf32>
    %45 = vector.broadcast %44 : vector<128x1xf32> to vector<128x128xf32>
    %46 = arith.subf %42, %45 : vector<128x128xf32>
    %47 = math.exp %46 : vector<128x128xf32>
    %48 = arith.mulf %47, %2 : vector<128x128xf32>
    %cst_24 = arith.constant dense<0.000000e+00> : vector<128xf32>
    %49 = vector.multi_reduction <add>, %48, %cst_24 [1] : vector<128x128xf32> to vector<128xf32>
    %50 = vector.shape_cast %49 : vector<128xf32> to vector<128x1xf32>
    %cst_25 = arith.constant 9.99999968E-21 : f32
    %51 = vector.broadcast %cst_25 : f32 to vector<128x1xf32>
    %52 = arith.maximumf %50, %51 : vector<128x1xf32>
    %53 = tpu.reciprocal %52 {approx = true} : vector<128x1xf32> -> vector<128x1xf32>
    %54 = vector.broadcast %53 : vector<128x1xf32> to vector<128x128xf32>
    %55 = arith.mulf %48, %54 : vector<128x128xf32>
    %56 = arith.truncf %55 : vector<128x128xf32> to vector<128x128xbf16>
    %57 = arith.truncf %39 : vector<128x32xf32> to vector<128x32xbf16>
    %cst_26 = arith.constant dense<0.000000e+00> : vector<128x32xf32>
    %58 = tpu.matmul %56, %57, %cst_26 {dimension_numbers = #tpu.dot_dimension_numbers<[1], [0], [0], [1], [0, 0, 1, 1], [], []>} : vector<128x128xbf16>, vector<128x32xbf16>, vector<128x32xf32> -> vector<128x32xf32>
    %59 = arith.addf %37, %58 : vector<128x32xf32>
    %cst_27 = arith.constant 5.000000e-01 : f32
    %60 = vector.broadcast %cst_27 : f32 to vector<128x32xf32>
    %61 = arith.mulf %59, %60 : vector<128x32xf32>
    %c0_28 = arith.constant 0 : index
    %c0_29 = arith.constant 0 : index
    %62 = vector.load %arg6[%c0_28, %c0_29] : memref<1x32xf32, #tpu.memory_space<vmem>>, vector<1x32xf32>
    %63 = vector.broadcast %62 : vector<1x32xf32> to vector<128x32xf32>
    %64 = arith.addf %61, %63 : vector<128x32xf32>
    %cst_30 = arith.constant 0.000000e+00 : f32
    %65 = vector.broadcast %cst_30 : f32 to vector<128x32xf32>
    %66 = arith.maximumf %64, %65 : vector<128x32xf32>
    %67 = arith.truncf %66 : vector<128x32xf32> to vector<128x32xbf16>
    %c0_31 = arith.constant 0 : index
    %c0_32 = arith.constant 0 : index
    %68 = vector.load %arg7[%c0_31, %c0_32] : memref<32x128xbf16, #tpu.memory_space<vmem>>, vector<32x128xbf16>
    %cst_33 = arith.constant dense<0.000000e+00> : vector<128x128xf32>
    %69 = tpu.matmul %67, %68, %cst_33 {dimension_numbers = #tpu.dot_dimension_numbers<[1], [0], [0], [1], [0, 0, 1, 1], [], []>} : vector<128x32xbf16>, vector<32x128xbf16>, vector<128x128xf32> -> vector<128x128xf32>
    %c0_34 = arith.constant 0 : index
    %c0_35 = arith.constant 0 : index
    %70 = vector.load %arg8[%c0_34, %c0_35] : memref<1x128xf32, #tpu.memory_space<vmem>>, vector<1x128xf32>
    %71 = vector.broadcast %70 : vector<1x128xf32> to vector<128x128xf32>
    %72 = arith.addf %69, %71 : vector<128x128xf32>
    %73 = vector.extract_strided_slice %72 {offsets = [0, 0], sizes = [128, 64], strides = [1, 1]} : vector<128x128xf32> to vector<128x64xf32>
    %74 = tpu.transpose %72, [1, 0] : vector<128x128xf32> -> vector<128x128xf32>
    %c0_36 = arith.constant 0 : index
    %c0_37 = arith.constant 0 : index
    %75 = vector.load %arg16[%c0_36, %c0_37] : memref<128x128xf32, #tpu.memory_space<vmem>>, vector<128x128xf32>
    tpu.vector_store %arg16[%c0_36, %c0_37], %74 {strides = array<i32>} : memref<128x128xf32, #tpu.memory_space<vmem>>, vector<128x128xf32>,
    %76 = tpu.iota {dimensions = array<i32: 1>} : vector<128x32xi32>
    %cst_38 = arith.constant 0.000000e+00 : f32
    %77 = vector.broadcast %cst_38 : f32 to vector<128x32xf32>
    %78 = vector.extract_strided_slice %72 {offsets = [0, 64], sizes = [128, 32], strides = [1, 1]} : vector<128x128xf32> to vector<128x32xf32>
    %79 = vector.extract_strided_slice %73 {offsets = [0, 0], sizes = [128, 32], strides = [1, 1]} : vector<128x64xf32> to vector<128x32xf32>
    %cst_39 = arith.constant 0.000000e+00 : f32
    %80 = vector.broadcast %cst_39 : f32 to vector<128x128xf32>
    %c0_i32_40 = arith.constant 0 : i32
    %c32_i32_41 = arith.constant 32 : i32
    %81 = arith.addi %c0_i32_40, %c32_i32_41 : i32
    %c1_i32_42 = arith.constant 1 : i32
    %82 = scf.for %arg17 = %c0_i32_40 to %81 step %c1_i32_42 iter_args(%arg18 = %80) -> (vector<128x128xf32>)  : i32 {
      %194 = vector.broadcast %arg17 : i32 to vector<128x32xi32>
      %195 = arith.cmpi eq, %76, %194 : vector<128x32xi32>
      %cst_94 = arith.constant 0.000000e+00 : f32
      %196 = vector.broadcast %cst_94 : f32 to vector<128x32xf32>
      %197 = arith.select %195, %78, %196 : vector<128x32xi1>, vector<128x32xf32>
      %cst_95 = arith.constant dense<0.000000e+00> : vector<128xf32>
      %198 = vector.multi_reduction <add>, %197, %cst_95 [1] : vector<128x32xf32> to vector<128xf32>
      %199 = vector.shape_cast %198 : vector<128xf32> to vector<128x1xf32>
      %c0_i32_96 = arith.constant 0 : i32
      %200 = arith.addi %c0_i32_96, %arg17 : i32
      %201 = arith.index_cast %200 : i32 to index
      %c0_97 = arith.constant 0 : index
      %202 = vector.load %arg16[%201, %c0_97] : memref<128x128xf32, #tpu.memory_space<vmem>>, vector<1x128xf32>
      %203 = vector.broadcast %199 : vector<128x1xf32> to vector<128x128xf32>
      %204 = vector.broadcast %202 : vector<1x128xf32> to vector<128x128xf32>
      %205 = arith.addf %203, %204 : vector<128x128xf32>
      %cst_98 = arith.constant 0.000000e+00 : f32
      %206 = vector.broadcast %cst_98 : f32 to vector<128x128xf32>
      %207 = arith.cmpf ogt, %205, %206 : vector<128x128xf32>
      %cst_99 = arith.constant 2.000000e-01 : f32
      %208 = vector.broadcast %cst_99 : f32 to vector<128x128xf32>
      %209 = arith.mulf %208, %205 : vector<128x128xf32>
      %210 = arith.select %207, %205, %209 : vector<128x128xi1>, vector<128x128xf32>
      %c0_100 = arith.constant 0 : index
      %211 = arith.index_cast %arg17 : i32 to index
      %212 = memref.load %arg9[%c0_100, %211] : memref<2x32xf32, #tpu.memory_space<smem>>
      %213 = vector.broadcast %212 : f32 to vector<128x128xf32>
      %214 = arith.mulf %213, %210 : vector<128x128xf32>
      %215 = arith.addf %arg18, %214 : vector<128x128xf32>
      scf.yield %215 : vector<128x128xf32>
    }
    %c32_i32_43 = arith.constant 32 : i32
    %cst_44 = arith.constant dense<0xFF800000> : vector<128xf32>
    %83 = vector.multi_reduction <maximumf>, %82, %cst_44 [1] : vector<128x128xf32> to vector<128xf32>
    %84 = vector.shape_cast %83 : vector<128xf32> to vector<128x1xf32>
    %85 = vector.broadcast %84 : vector<128x1xf32> to vector<128x128xf32>
    %86 = arith.subf %82, %85 : vector<128x128xf32>
    %87 = math.exp %86 : vector<128x128xf32>
    %88 = arith.mulf %87, %2 : vector<128x128xf32>
    %cst_45 = arith.constant dense<0.000000e+00> : vector<128xf32>
    %89 = vector.multi_reduction <add>, %88, %cst_45 [1] : vector<128x128xf32> to vector<128xf32>
    %90 = vector.shape_cast %89 : vector<128xf32> to vector<128x1xf32>
    %cst_46 = arith.constant 9.99999968E-21 : f32
    %91 = vector.broadcast %cst_46 : f32 to vector<128x1xf32>
    %92 = arith.maximumf %90, %91 : vector<128x1xf32>
    %93 = tpu.reciprocal %92 {approx = true} : vector<128x1xf32> -> vector<128x1xf32>
    %94 = vector.broadcast %93 : vector<128x1xf32> to vector<128x128xf32>
    %95 = arith.mulf %88, %94 : vector<128x128xf32>
    %96 = arith.truncf %95 : vector<128x128xf32> to vector<128x128xbf16>
    %97 = arith.truncf %79 : vector<128x32xf32> to vector<128x32xbf16>
    %cst_47 = arith.constant dense<0.000000e+00> : vector<128x32xf32>
    %98 = tpu.matmul %96, %97, %cst_47 {dimension_numbers = #tpu.dot_dimension_numbers<[1], [0], [0], [1], [0, 0, 1, 1], [], []>} : vector<128x128xbf16>, vector<128x32xbf16>, vector<128x32xf32> -> vector<128x32xf32>
    %99 = arith.addf %77, %98 : vector<128x32xf32>
    %100 = vector.extract_strided_slice %72 {offsets = [0, 96], sizes = [128, 32], strides = [1, 1]} : vector<128x128xf32> to vector<128x32xf32>
    %101 = vector.extract_strided_slice %73 {offsets = [0, 32], sizes = [128, 32], strides = [1, 1]} : vector<128x64xf32> to vector<128x32xf32>
    %cst_48 = arith.constant 0.000000e+00 : f32
    %102 = vector.broadcast %cst_48 : f32 to vector<128x128xf32>
    %c0_i32_49 = arith.constant 0 : i32
    %c32_i32_50 = arith.constant 32 : i32
    %103 = arith.addi %c0_i32_49, %c32_i32_50 : i32
    %c1_i32_51 = arith.constant 1 : i32
    %104 = scf.for %arg17 = %c0_i32_49 to %103 step %c1_i32_51 iter_args(%arg18 = %102) -> (vector<128x128xf32>)  : i32 {
      %194 = vector.broadcast %arg17 : i32 to vector<128x32xi32>
      %195 = arith.cmpi eq, %76, %194 : vector<128x32xi32>
      %cst_94 = arith.constant 0.000000e+00 : f32
      %196 = vector.broadcast %cst_94 : f32 to vector<128x32xf32>
      %197 = arith.select %195, %100, %196 : vector<128x32xi1>, vector<128x32xf32>
      %cst_95 = arith.constant dense<0.000000e+00> : vector<128xf32>
      %198 = vector.multi_reduction <add>, %197, %cst_95 [1] : vector<128x32xf32> to vector<128xf32>
      %199 = vector.shape_cast %198 : vector<128xf32> to vector<128x1xf32>
      %c32_i32_96 = arith.constant 32 : i32
      %200 = arith.addi %c32_i32_96, %arg17 : i32
      %201 = arith.index_cast %200 : i32 to index
      %c0_97 = arith.constant 0 : index
      %202 = vector.load %arg16[%201, %c0_97] : memref<128x128xf32, #tpu.memory_space<vmem>>, vector<1x128xf32>
      %203 = vector.broadcast %199 : vector<128x1xf32> to vector<128x128xf32>
      %204 = vector.broadcast %202 : vector<1x128xf32> to vector<128x128xf32>
      %205 = arith.addf %203, %204 : vector<128x128xf32>
      %cst_98 = arith.constant 0.000000e+00 : f32
      %206 = vector.broadcast %cst_98 : f32 to vector<128x128xf32>
      %207 = arith.cmpf ogt, %205, %206 : vector<128x128xf32>
      %cst_99 = arith.constant 2.000000e-01 : f32
      %208 = vector.broadcast %cst_99 : f32 to vector<128x128xf32>
      %209 = arith.mulf %208, %205 : vector<128x128xf32>
      %210 = arith.select %207, %205, %209 : vector<128x128xi1>, vector<128x128xf32>
      %c1 = arith.constant 1 : index
      %211 = arith.index_cast %arg17 : i32 to index
      %212 = memref.load %arg9[%c1, %211] : memref<2x32xf32, #tpu.memory_space<smem>>
      %213 = vector.broadcast %212 : f32 to vector<128x128xf32>
      %214 = arith.mulf %213, %210 : vector<128x128xf32>
      %215 = arith.addf %arg18, %214 : vector<128x128xf32>
      scf.yield %215 : vector<128x128xf32>
    }
    %c32_i32_52 = arith.constant 32 : i32
    %cst_53 = arith.constant dense<0xFF800000> : vector<128xf32>
    %105 = vector.multi_reduction <maximumf>, %104, %cst_53 [1] : vector<128x128xf32> to vector<128xf32>
    %106 = vector.shape_cast %105 : vector<128xf32> to vector<128x1xf32>
    %107 = vector.broadcast %106 : vector<128x1xf32> to vector<128x128xf32>
    %108 = arith.subf %104, %107 : vector<128x128xf32>
    %109 = math.exp %108 : vector<128x128xf32>
    %110 = arith.mulf %109, %2 : vector<128x128xf32>
    %cst_54 = arith.constant dense<0.000000e+00> : vector<128xf32>
    %111 = vector.multi_reduction <add>, %110, %cst_54 [1] : vector<128x128xf32> to vector<128xf32>
    %112 = vector.shape_cast %111 : vector<128xf32> to vector<128x1xf32>
    %cst_55 = arith.constant 9.99999968E-21 : f32
    %113 = vector.broadcast %cst_55 : f32 to vector<128x1xf32>
    %114 = arith.maximumf %112, %113 : vector<128x1xf32>
    %115 = tpu.reciprocal %114 {approx = true} : vector<128x1xf32> -> vector<128x1xf32>
    %116 = vector.broadcast %115 : vector<128x1xf32> to vector<128x128xf32>
    %117 = arith.mulf %110, %116 : vector<128x128xf32>
    %118 = arith.truncf %117 : vector<128x128xf32> to vector<128x128xbf16>
    %119 = arith.truncf %101 : vector<128x32xf32> to vector<128x32xbf16>
    %cst_56 = arith.constant dense<0.000000e+00> : vector<128x32xf32>
    %120 = tpu.matmul %118, %119, %cst_56 {dimension_numbers = #tpu.dot_dimension_numbers<[1], [0], [0], [1], [0, 0, 1, 1], [], []>} : vector<128x128xbf16>, vector<128x32xbf16>, vector<128x32xf32> -> vector<128x32xf32>
    %121 = arith.addf %99, %120 : vector<128x32xf32>
    %cst_57 = arith.constant 5.000000e-01 : f32
    %122 = vector.broadcast %cst_57 : f32 to vector<128x32xf32>
    %123 = arith.mulf %121, %122 : vector<128x32xf32>
    %c0_58 = arith.constant 0 : index
    %c0_59 = arith.constant 0 : index
    %124 = vector.load %arg10[%c0_58, %c0_59] : memref<1x32xf32, #tpu.memory_space<vmem>>, vector<1x32xf32>
    %125 = vector.broadcast %124 : vector<1x32xf32> to vector<128x32xf32>
    %126 = arith.addf %123, %125 : vector<128x32xf32>
    %cst_60 = arith.constant 0.000000e+00 : f32
    %127 = vector.broadcast %cst_60 : f32 to vector<128x32xf32>
    %128 = arith.maximumf %126, %127 : vector<128x32xf32>
    %129 = arith.truncf %128 : vector<128x32xf32> to vector<128x32xbf16>
    %c0_61 = arith.constant 0 : index
    %c0_62 = arith.constant 0 : index
    %130 = vector.load %arg11[%c0_61, %c0_62] : memref<32x128xbf16, #tpu.memory_space<vmem>>, vector<32x128xbf16>
    %cst_63 = arith.constant dense<0.000000e+00> : vector<128x128xf32>
    %131 = tpu.matmul %129, %130, %cst_63 {dimension_numbers = #tpu.dot_dimension_numbers<[1], [0], [0], [1], [0, 0, 1, 1], [], []>} : vector<128x32xbf16>, vector<32x128xbf16>, vector<128x128xf32> -> vector<128x128xf32>
    %c0_64 = arith.constant 0 : index
    %c0_65 = arith.constant 0 : index
    %132 = vector.load %arg12[%c0_64, %c0_65] : memref<1x128xf32, #tpu.memory_space<vmem>>, vector<1x128xf32>
    %133 = vector.broadcast %132 : vector<1x128xf32> to vector<128x128xf32>
    %134 = arith.addf %131, %133 : vector<128x128xf32>
    %135 = vector.extract_strided_slice %134 {offsets = [0, 0], sizes = [128, 64], strides = [1, 1]} : vector<128x128xf32> to vector<128x64xf32>
    %136 = tpu.transpose %134, [1, 0] : vector<128x128xf32> -> vector<128x128xf32>
    %c0_66 = arith.constant 0 : index
    %c0_67 = arith.constant 0 : index
    %137 = vector.load %arg16[%c0_66, %c0_67] : memref<128x128xf32, #tpu.memory_space<vmem>>, vector<128x128xf32>
    tpu.vector_store %arg16[%c0_66, %c0_67], %136 {strides = array<i32>} : memref<128x128xf32, #tpu.memory_space<vmem>>, vector<128x128xf32>,
    %138 = tpu.iota {dimensions = array<i32: 1>} : vector<128x32xi32>
    %cst_68 = arith.constant 0.000000e+00 : f32
    %139 = vector.broadcast %cst_68 : f32 to vector<128x32xf32>
    %140 = vector.extract_strided_slice %134 {offsets = [0, 64], sizes = [128, 32], strides = [1, 1]} : vector<128x128xf32> to vector<128x32xf32>
    %141 = vector.extract_strided_slice %135 {offsets = [0, 0], sizes = [128, 32], strides = [1, 1]} : vector<128x64xf32> to vector<128x32xf32>
    %cst_69 = arith.constant 0.000000e+00 : f32
    %142 = vector.broadcast %cst_69 : f32 to vector<128x128xf32>
    %c0_i32_70 = arith.constant 0 : i32
    %c32_i32_71 = arith.constant 32 : i32
    %143 = arith.addi %c0_i32_70, %c32_i32_71 : i32
    %c1_i32_72 = arith.constant 1 : i32
    %144 = scf.for %arg17 = %c0_i32_70 to %143 step %c1_i32_72 iter_args(%arg18 = %142) -> (vector<128x128xf32>)  : i32 {
      %194 = vector.broadcast %arg17 : i32 to vector<128x32xi32>
      %195 = arith.cmpi eq, %138, %194 : vector<128x32xi32>
      %cst_94 = arith.constant 0.000000e+00 : f32
      %196 = vector.broadcast %cst_94 : f32 to vector<128x32xf32>
      %197 = arith.select %195, %140, %196 : vector<128x32xi1>, vector<128x32xf32>
      %cst_95 = arith.constant dense<0.000000e+00> : vector<128xf32>
      %198 = vector.multi_reduction <add>, %197, %cst_95 [1] : vector<128x32xf32> to vector<128xf32>
      %199 = vector.shape_cast %198 : vector<128xf32> to vector<128x1xf32>
      %c0_i32_96 = arith.constant 0 : i32
      %200 = arith.addi %c0_i32_96, %arg17 : i32
      %201 = arith.index_cast %200 : i32 to index
      %c0_97 = arith.constant 0 : index
      %202 = vector.load %arg16[%201, %c0_97] : memref<128x128xf32, #tpu.memory_space<vmem>>, vector<1x128xf32>
      %203 = vector.broadcast %199 : vector<128x1xf32> to vector<128x128xf32>
      %204 = vector.broadcast %202 : vector<1x128xf32> to vector<128x128xf32>
      %205 = arith.addf %203, %204 : vector<128x128xf32>
      %cst_98 = arith.constant 0.000000e+00 : f32
      %206 = vector.broadcast %cst_98 : f32 to vector<128x128xf32>
      %207 = arith.cmpf ogt, %205, %206 : vector<128x128xf32>
      %cst_99 = arith.constant 2.000000e-01 : f32
      %208 = vector.broadcast %cst_99 : f32 to vector<128x128xf32>
      %209 = arith.mulf %208, %205 : vector<128x128xf32>
      %210 = arith.select %207, %205, %209 : vector<128x128xi1>, vector<128x128xf32>
      %c0_100 = arith.constant 0 : index
      %211 = arith.index_cast %arg17 : i32 to index
      %212 = memref.load %arg13[%c0_100, %211] : memref<2x32xf32, #tpu.memory_space<smem>>
      %213 = vector.broadcast %212 : f32 to vector<128x128xf32>
      %214 = arith.mulf %213, %210 : vector<128x128xf32>
      %215 = arith.addf %arg18, %214 : vector<128x128xf32>
      scf.yield %215 : vector<128x128xf32>
    }
    %c32_i32_73 = arith.constant 32 : i32
    %cst_74 = arith.constant dense<0xFF800000> : vector<128xf32>
    %145 = vector.multi_reduction <maximumf>, %144, %cst_74 [1] : vector<128x128xf32> to vector<128xf32>
    %146 = vector.shape_cast %145 : vector<128xf32> to vector<128x1xf32>
    %147 = vector.broadcast %146 : vector<128x1xf32> to vector<128x128xf32>
    %148 = arith.subf %144, %147 : vector<128x128xf32>
    %149 = math.exp %148 : vector<128x128xf32>
    %150 = arith.mulf %149, %2 : vector<128x128xf32>
    %cst_75 = arith.constant dense<0.000000e+00> : vector<128xf32>
    %151 = vector.multi_reduction <add>, %150, %cst_75 [1] : vector<128x128xf32> to vector<128xf32>
    %152 = vector.shape_cast %151 : vector<128xf32> to vector<128x1xf32>
    %cst_76 = arith.constant 9.99999968E-21 : f32
    %153 = vector.broadcast %cst_76 : f32 to vector<128x1xf32>
    %154 = arith.maximumf %152, %153 : vector<128x1xf32>
    %155 = tpu.reciprocal %154 {approx = true} : vector<128x1xf32> -> vector<128x1xf32>
    %156 = vector.broadcast %155 : vector<128x1xf32> to vector<128x128xf32>
    %157 = arith.mulf %150, %156 : vector<128x128xf32>
    %158 = arith.truncf %157 : vector<128x128xf32> to vector<128x128xbf16>
    %159 = arith.truncf %141 : vector<128x32xf32> to vector<128x32xbf16>
    %cst_77 = arith.constant dense<0.000000e+00> : vector<128x32xf32>
    %160 = tpu.matmul %158, %159, %cst_77 {dimension_numbers = #tpu.dot_dimension_numbers<[1], [0], [0], [1], [0, 0, 1, 1], [], []>} : vector<128x128xbf16>, vector<128x32xbf16>, vector<128x32xf32> -> vector<128x32xf32>
    %161 = arith.addf %139, %160 : vector<128x32xf32>
    %162 = vector.extract_strided_slice %134 {offsets = [0, 96], sizes = [128, 32], strides = [1, 1]} : vector<128x128xf32> to vector<128x32xf32>
    %163 = vector.extract_strided_slice %135 {offsets = [0, 32], sizes = [128, 32], strides = [1, 1]} : vector<128x64xf32> to vector<128x32xf32>
    %cst_78 = arith.constant 0.000000e+00 : f32
    %164 = vector.broadcast %cst_78 : f32 to vector<128x128xf32>
    %c0_i32_79 = arith.constant 0 : i32
    %c32_i32_80 = arith.constant 32 : i32
    %165 = arith.addi %c0_i32_79, %c32_i32_80 : i32
    %c1_i32_81 = arith.constant 1 : i32
    %166 = scf.for %arg17 = %c0_i32_79 to %165 step %c1_i32_81 iter_args(%arg18 = %164) -> (vector<128x128xf32>)  : i32 {
      %194 = vector.broadcast %arg17 : i32 to vector<128x32xi32>
      %195 = arith.cmpi eq, %138, %194 : vector<128x32xi32>
      %cst_94 = arith.constant 0.000000e+00 : f32
      %196 = vector.broadcast %cst_94 : f32 to vector<128x32xf32>
      %197 = arith.select %195, %162, %196 : vector<128x32xi1>, vector<128x32xf32>
      %cst_95 = arith.constant dense<0.000000e+00> : vector<128xf32>
      %198 = vector.multi_reduction <add>, %197, %cst_95 [1] : vector<128x32xf32> to vector<128xf32>
      %199 = vector.shape_cast %198 : vector<128xf32> to vector<128x1xf32>
      %c32_i32_96 = arith.constant 32 : i32
      %200 = arith.addi %c32_i32_96, %arg17 : i32
      %201 = arith.index_cast %200 : i32 to index
      %c0_97 = arith.constant 0 : index
      %202 = vector.load %arg16[%201, %c0_97] : memref<128x128xf32, #tpu.memory_space<vmem>>, vector<1x128xf32>
      %203 = vector.broadcast %199 : vector<128x1xf32> to vector<128x128xf32>
      %204 = vector.broadcast %202 : vector<1x128xf32> to vector<128x128xf32>
      %205 = arith.addf %203, %204 : vector<128x128xf32>
      %cst_98 = arith.constant 0.000000e+00 : f32
      %206 = vector.broadcast %cst_98 : f32 to vector<128x128xf32>
      %207 = arith.cmpf ogt, %205, %206 : vector<128x128xf32>
      %cst_99 = arith.constant 2.000000e-01 : f32
      %208 = vector.broadcast %cst_99 : f32 to vector<128x128xf32>
      %209 = arith.mulf %208, %205 : vector<128x128xf32>
      %210 = arith.select %207, %205, %209 : vector<128x128xi1>, vector<128x128xf32>
      %c1 = arith.constant 1 : index
      %211 = arith.index_cast %arg17 : i32 to index
      %212 = memref.load %arg13[%c1, %211] : memref<2x32xf32, #tpu.memory_space<smem>>
      %213 = vector.broadcast %212 : f32 to vector<128x128xf32>
      %214 = arith.mulf %213, %210 : vector<128x128xf32>
      %215 = arith.addf %arg18, %214 : vector<128x128xf32>
      scf.yield %215 : vector<128x128xf32>
    }
    %c32_i32_82 = arith.constant 32 : i32
    %cst_83 = arith.constant dense<0xFF800000> : vector<128xf32>
    %167 = vector.multi_reduction <maximumf>, %166, %cst_83 [1] : vector<128x128xf32> to vector<128xf32>
    %168 = vector.shape_cast %167 : vector<128xf32> to vector<128x1xf32>
    %169 = vector.broadcast %168 : vector<128x1xf32> to vector<128x128xf32>
    %170 = arith.subf %166, %169 : vector<128x128xf32>
    %171 = math.exp %170 : vector<128x128xf32>
    %172 = arith.mulf %171, %2 : vector<128x128xf32>
    %cst_84 = arith.constant dense<0.000000e+00> : vector<128xf32>
    %173 = vector.multi_reduction <add>, %172, %cst_84 [1] : vector<128x128xf32> to vector<128xf32>
    %174 = vector.shape_cast %173 : vector<128xf32> to vector<128x1xf32>
    %cst_85 = arith.constant 9.99999968E-21 : f32
    %175 = vector.broadcast %cst_85 : f32 to vector<128x1xf32>
    %176 = arith.maximumf %174, %175 : vector<128x1xf32>
    %177 = tpu.reciprocal %176 {approx = true} : vector<128x1xf32> -> vector<128x1xf32>
    %178 = vector.broadcast %177 : vector<128x1xf32> to vector<128x128xf32>
    %179 = arith.mulf %172, %178 : vector<128x128xf32>
    %180 = arith.truncf %179 : vector<128x128xf32> to vector<128x128xbf16>
    %181 = arith.truncf %163 : vector<128x32xf32> to vector<128x32xbf16>
    %cst_86 = arith.constant dense<0.000000e+00> : vector<128x32xf32>
    %182 = tpu.matmul %180, %181, %cst_86 {dimension_numbers = #tpu.dot_dimension_numbers<[1], [0], [0], [1], [0, 0, 1, 1], [], []>} : vector<128x128xbf16>, vector<128x32xbf16>, vector<128x32xf32> -> vector<128x32xf32>
    %183 = arith.addf %161, %182 : vector<128x32xf32>
    %cst_87 = arith.constant 5.000000e-01 : f32
    %184 = vector.broadcast %cst_87 : f32 to vector<128x32xf32>
    %185 = arith.mulf %183, %184 : vector<128x32xf32>
    %c0_88 = arith.constant 0 : index
    %c0_89 = arith.constant 0 : index
    %186 = vector.load %arg14[%c0_88, %c0_89] : memref<1x32xf32, #tpu.memory_space<vmem>>, vector<1x32xf32>
    %187 = vector.broadcast %186 : vector<1x32xf32> to vector<128x32xf32>
    %188 = arith.addf %185, %187 : vector<128x32xf32>
    %cst_90 = arith.constant 0.000000e+00 : f32
    %189 = vector.broadcast %cst_90 : f32 to vector<128x96xf32>
    %190 = tpu.concatenate %188, %189 in 1 : vector<128x32xf32>, vector<128x96xf32> -> vector<128x128xf32>
    %c0_91 = arith.constant 0 : index
    %c0_92 = arith.constant 0 : index
    %c0_93 = arith.constant 0 : index
    %191 = vector.load %arg15[%c0_91, %c0_92, %c0_93] : memref<1x128x128xf32, #tpu.memory_space<vmem>>, vector<1x128x128xf32>
    %192 = vector.shape_cast %191 : vector<1x128x128xf32> to vector<128x128xf32>
    %193 = vector.shape_cast %190 : vector<128x128xf32> to vector<1x128x128xf32>
    tpu.vector_store %arg15[%c0_91, %c0_92, %c0_93], %193 {strides = array<i32>} : memref<1x128x128xf32, #tpu.memory_space<vmem>>, vector<1x128x128xf32>,
    return
  }
  func.func @transform_0(%arg0: i32) -> (i32, i32, i32) {
    %c0_i32 = arith.constant 0 : i32
    %c0_i32_0 = arith.constant 0 : i32
    %c0_i32_1 = arith.constant 0 : i32
    return %arg0, %c0_i32, %c0_i32_0 : i32, i32, i32
  }
  func.func @transform_1(%arg0: i32) -> (i32, i32, i32) {
    %c0_i32 = arith.constant 0 : i32
    %c0_i32_0 = arith.constant 0 : i32
    %c0_i32_1 = arith.constant 0 : i32
    return %arg0, %c0_i32, %c0_i32_0 : i32, i32, i32
  }
  func.func @transform_2(%arg0: i32) -> (i32, i32) {
    %c0_i32 = arith.constant 0 : i32
    %c0_i32_0 = arith.constant 0 : i32
    %c0_i32_1 = arith.constant 0 : i32
    return %c0_i32, %c0_i32_0 : i32, i32
  }
  func.func @transform_3(%arg0: i32) -> (i32, i32) {
    %c0_i32 = arith.constant 0 : i32
    %c0_i32_0 = arith.constant 0 : i32
    %c0_i32_1 = arith.constant 0 : i32
    return %c0_i32, %c0_i32_0 : i32, i32
  }
  func.func @transform_4(%arg0: i32) -> (i32, i32) {
    %c0_i32 = arith.constant 0 : i32
    %c0_i32_0 = arith.constant 0 : i32
    %c0_i32_1 = arith.constant 0 : i32
    return %c0_i32, %c0_i32_0 : i32, i32
  }
  func.func @transform_5(%arg0: i32) -> (i32, i32) {
    %c0_i32 = arith.constant 0 : i32
    %c0_i32_0 = arith.constant 0 : i32
    %c0_i32_1 = arith.constant 0 : i32
    return %c0_i32, %c0_i32_0 : i32, i32
  }
  func.func @transform_6(%arg0: i32) -> (i32, i32) {
    %c0_i32 = arith.constant 0 : i32
    %c0_i32_0 = arith.constant 0 : i32
    %c0_i32_1 = arith.constant 0 : i32
    return %c0_i32, %c0_i32_0 : i32, i32
  }
  func.func @transform_7(%arg0: i32) -> (i32, i32) {
    %c0_i32 = arith.constant 0 : i32
    %c0_i32_0 = arith.constant 0 : i32
    %c0_i32_1 = arith.constant 0 : i32
    return %c0_i32, %c0_i32_0 : i32, i32
  }
  func.func @transform_8(%arg0: i32) -> (i32, i32) {
    %c0_i32 = arith.constant 0 : i32
    %c0_i32_0 = arith.constant 0 : i32
    %c0_i32_1 = arith.constant 0 : i32
    return %c0_i32, %c0_i32_0 : i32, i32
  }
  func.func @transform_9(%arg0: i32) -> (i32, i32) {
    %c0_i32 = arith.constant 0 : i32
    %c0_i32_0 = arith.constant 0 : i32
    %c0_i32_1 = arith.constant 0 : i32
    return %c0_i32, %c0_i32_0 : i32, i32
  }
  func.func @transform_10(%arg0: i32) -> (i32, i32) {
    %c0_i32 = arith.constant 0 : i32
    %c0_i32_0 = arith.constant 0 : i32
    %c0_i32_1 = arith.constant 0 : i32
    return %c0_i32, %c0_i32_0 : i32, i32
  }
  func.func @transform_11(%arg0: i32) -> (i32, i32) {
    %c0_i32 = arith.constant 0 : i32
    %c0_i32_0 = arith.constant 0 : i32
    %c0_i32_1 = arith.constant 0 : i32
    return %c0_i32, %c0_i32_0 : i32, i32
  }
  func.func @transform_12(%arg0: i32) -> (i32, i32) {
    %c0_i32 = arith.constant 0 : i32
    %c0_i32_0 = arith.constant 0 : i32
    %c0_i32_1 = arith.constant 0 : i32
    return %c0_i32, %c0_i32_0 : i32, i32
  }
  func.func @transform_13(%arg0: i32) -> (i32, i32) {
    %c0_i32 = arith.constant 0 : i32
    %c0_i32_0 = arith.constant 0 : i32
    %c0_i32_1 = arith.constant 0 : i32
    return %c0_i32, %c0_i32_0 : i32, i32
  }
  func.func @transform_14(%arg0: i32) -> (i32, i32, i32) {
    %c0_i32 = arith.constant 0 : i32
    %c0_i32_0 = arith.constant 0 : i32
    %c0_i32_1 = arith.constant 0 : i32
    return %arg0, %c0_i32, %c0_i32_0 : i32, i32, i32
  }
}

</mosaic_0001>

<llo_original>
// kernel: gnn6_forward.1
$region0: #{gnn6_forward.1}
  #allocation0 [shape = 'u32[]', space=smem, size = 0x4, offset = 0x4, fixed_abs, tag = 'smem constant byte address 0x4 - core index']
  #allocation1 [shape = 'u32[144,128]{1,0:T(1,128)}', space=vmem, size = 0x12000, scoped, tag = 'internal scratch']
  #allocation2 [shape = 'f32[128,128]{1,0:T(8,128)}', space=vmem, size = 0x10000, scoped, tag = 'scratch operand']
  %s0 = inlined_call_operand.vmem [shape: f32[2,128,32], index: 0, kind: input, shape index: {}]
  %s1 = inlined_call_operand.vmem [shape: bf16[2,128,128], index: 1, kind: input, shape index: {}]
  %s2 = inlined_call_operand.vmem [shape: bf16[32,128], index: 2, kind: input, shape index: {}]
  %s3 = inlined_call_operand.vmem [shape: f32[1,128], index: 3, kind: input, shape index: {}]
  %s4 = inlined_call_operand.vmem [shape: f32[2,32], index: 4, kind: input, shape index: {}]
  %s5 = inlined_call_operand.vmem [shape: f32[1,32], index: 5, kind: input, shape index: {}]
  %s6 = inlined_call_operand.vmem [shape: bf16[32,128], index: 6, kind: input, shape index: {}]
  %s7 = inlined_call_operand.vmem [shape: f32[1,128], index: 7, kind: input, shape index: {}]
  %s8 = inlined_call_operand.vmem [shape: f32[2,32], index: 8, kind: input, shape index: {}]
  %s9 = inlined_call_operand.vmem [shape: f32[1,32], index: 9, kind: input, shape index: {}]
  %s10 = inlined_call_operand.vmem [shape: bf16[32,128], index: 10, kind: input, shape index: {}]
  %s11 = inlined_call_operand.vmem [shape: f32[1,128], index: 11, kind: input, shape index: {}]
  %s12 = inlined_call_operand.vmem [shape: f32[2,32], index: 12, kind: input, shape index: {}]
  %s13 = inlined_call_operand.vmem [shape: f32[1,32], index: 13, kind: input, shape index: {}]
  %s14 = inlined_call_operand.vmem [shape: f32[2,128,128], index: 14, kind: output, shape index: {}]
  %s15 = sld [smem:[#allocation0]]
  $region143: #{gnn6_forward.1} parent=0
    _
  %s17 = ssub.s32 1, %s15
  %s18 = scalar_select 0, %s17, %s15
  $region1: #{gnn6_forward.1} parent=0
    #allocation3 [shape = 'u8[1024]{0}', space=smem, size = 0x400, scoped, tag = 'input window, operand 4, single buffered']
    #allocation4 [shape = 's32[2]{0}', space=sflag, size = 0x8, scoped, tag = 'scoped memory for gnn6_forward.1']
    #allocation5 [shape = 'u8[1024]{0}', space=smem, size = 0x400, scoped, tag = 'input window, operand 8, single buffered']
    #allocation6 [shape = 's32[1]{0}', space=sflag, size = 0x4, scoped, tag = 'scoped memory for gnn6_forward.1']
    #allocation7 [shape = 'u8[1024]{0}', space=smem, size = 0x400, scoped, tag = 'input window, operand 12, single buffered']
    %19 = vsyncpa [#allocation4], 0
    %20 = vsyncpa [#allocation6], 0
    loop: start=0, step=1, limit=4
    $region2: #{gnn6_forward.1} parent=1 // loop_pre_header
      _
    $region3: #{gnn6_forward.1} parent=1 // loop_header
      %s22 = sphi 0, %s26
      %p23 = scmp.ge.s32.totalorder %s22, 4
      %s32 = sphi 0, %s34
      %s35 = sphi 0, %s32
      %s36 = sphi 0, %s35
      %s52 = sphi 0, %s36
      %s58 = sphi 0, %s60
      %s61 = sphi 0, %s58
      %s62 = sphi 0, %s61
      %s78 = sphi 0, %s62
      %s82 = sphi 0, %s82
      %s84 = sphi 0, %s82
      %s85 = sphi 0, %s84
      %s99 = sphi 0, %s85
      %s103 = sphi 0, %s103
      %s105 = sphi 0, %s103
      %s106 = sphi 0, %s105
      %s120 = sphi 0, %s106
      %s124 = sphi 0, %s124
      %s126 = sphi 0, %s124
      %s127 = sphi 0, %s126
      %s141 = sphi 0, %s127
      %s145 = sphi 0, %s145
      %s147 = sphi 0, %s145
      %s148 = sphi 0, %s147
      %s162 = sphi 0, %s148
      %s166 = sphi 0, %s166
      %s168 = sphi 0, %s166
      %s169 = sphi 0, %s168
      %s183 = sphi 0, %s169
      %s187 = sphi 0, %s187
      %s189 = sphi 0, %s187
      %s190 = sphi 0, %s189
      %s204 = sphi 0, %s190
      %s208 = sphi 0, %s208
      %s210 = sphi 0, %s208
      %s211 = sphi 0, %s210
      %s225 = sphi 0, %s211
      %s229 = sphi 0, %s229
      %s231 = sphi 0, %s229
      %s232 = sphi 0, %s231
      %s246 = sphi 0, %s232
      %s250 = sphi 0, %s250
      %s252 = sphi 0, %s250
      %s253 = sphi 0, %s252
      %s267 = sphi 0, %s253
      %s271 = sphi 0, %s271
      %s273 = sphi 0, %s271
      %s274 = sphi 0, %s273
      %s288 = sphi 0, %s274
      %s292 = sphi 0, %s292
      %s294 = sphi 0, %s292
      %s295 = sphi 0, %s294
      %s309 = sphi 0, %s295
      %s313 = sphi 0, %s313
      %s315 = sphi 0, %s313
      %s316 = sphi 0, %s315
      %s330 = sphi 0, %s316
      %s336 = sphi 0, %s338
      %s339 = sphi 0, %s336
      %s340 = sphi 0, %s339
      %s356 = sphi 0, %s340
    $region4: #{gnn6_forward.1} parent=1 // loop_header_branch
      %25 = sbr.rel (%p23) target = $region8
    $region5: #{gnn6_forward.1} parent=1 // loop_body
      %s27 = ssub.s32 %s22, 1
      %s28 = ssub.s32 %s22, 2
      %s29 = sadd.s32 %s22, 1
      %s30 = ssub.s32 %s22, %s29
      %p31 = scmp.eq.s32.totalorder %s30, 0
      %s33 = sadd.s32 %s32, 1
      %s34 = scalar_select %p31, %s32, %s33
      %p37 = pneg %p31
      %p38 = scmp.eq.s32.totalorder %s22, 1
      %p39 = por %p37, %p38
      %p40 = scmp.ne.s32.totalorder %s32, %s35
      %p41 = scmp.eq.s32.totalorder %s22, 0
      %p42 = por %p40, %p41
      %p43 = scmp.ne.s32.totalorder %s32, %s35
      %p44 = scmp.eq.s32.totalorder %s27, 1
      %p45 = por %p43, %p44
      %p46 = scmp.ne.s32.totalorder %s35, %s36
      %p47 = scmp.eq.s32.totalorder %s27, 0
      %p48 = por %p46, %p47
      %p49 = scmp.ne.s32.totalorder %s35, %s36
      %p50 = scmp.eq.s32.totalorder %s28, 1
      %p51 = por %p49, %p50
      %p53 = scmp.ne.s32.totalorder %s36, %s52
      %p54 = scmp.eq.s32.totalorder %s28, 0
      %p55 = por %p53, %p54
      %s56 = ssub.s32 %s22, %s29
      %p57 = scmp.eq.s32.totalorder %s56, 0
      %s59 = sadd.s32 %s58, 1
      %s60 = scalar_select %p57, %s58, %s59
      %p63 = pneg %p57
      %p64 = scmp.eq.s32.totalorder %s22, 1
      %p65 = por %p63, %p64
      %p66 = scmp.ne.s32.totalorder %s58, %s61
      %p67 = scmp.eq.s32.totalorder %s22, 0
      %p68 = por %p66, %p67
      %p69 = scmp.ne.s32.totalorder %s58, %s61
      %p70 = scmp.eq.s32.totalorder %s27, 1
      %p71 = por %p69, %p70
      %p72 = scmp.ne.s32.totalorder %s61, %s62
      %p73 = scmp.eq.s32.totalorder %s27, 0
      %p74 = por %p72, %p73
      %p75 = scmp.ne.s32.totalorder %s61, %s62
      %p76 = scmp.eq.s32.totalorder %s28, 1
      %p77 = por %p75, %p76
      %p79 = scmp.ne.s32.totalorder %s62, %s78
      %p80 = scmp.eq.s32.totalorder %s28, 0
      %p81 = por %p79, %p80
      %s83 = sadd.s32 %s82, 1
      %p86 = scmp.eq.s32.totalorder %s22, 1
      %p87 = scmp.ne.s32.totalorder %s82, %s84
      %p88 = scmp.eq.s32.totalorder %s22, 0
      %p89 = por %p87, %p88
      %p90 = scmp.ne.s32.totalorder %s82, %s84
      %p91 = scmp.eq.s32.totalorder %s27, 1
      %p92 = por %p90, %p91
      %p93 = scmp.ne.s32.totalorder %s84, %s85
      %p94 = scmp.eq.s32.totalorder %s27, 0
      %p95 = por %p93, %p94
      %p96 = scmp.ne.s32.totalorder %s84, %s85
      %p97 = scmp.eq.s32.totalorder %s28, 1
      %p98 = por %p96, %p97
      %p100 = scmp.ne.s32.totalorder %s85, %s99
      %p101 = scmp.eq.s32.totalorder %s28, 0
      %p102 = por %p100, %p101
      %s104 = sadd.s32 %s103, 1
      %p107 = scmp.eq.s32.totalorder %s22, 1
      %p108 = scmp.ne.s32.totalorder %s103, %s105
      %p109 = scmp.eq.s32.totalorder %s22, 0
      %p110 = por %p108, %p109
      %p111 = scmp.ne.s32.totalorder %s103, %s105
      %p112 = scmp.eq.s32.totalorder %s27, 1
      %p113 = por %p111, %p112
      %p114 = scmp.ne.s32.totalorder %s105, %s106
      %p115 = scmp.eq.s32.totalorder %s27, 0
      %p116 = por %p114, %p115
      %p117 = scmp.ne.s32.totalorder %s105, %s106
      %p118 = scmp.eq.s32.totalorder %s28, 1
      %p119 = por %p117, %p118
      %p121 = scmp.ne.s32.totalorder %s106, %s120
      %p122 = scmp.eq.s32.totalorder %s28, 0
      %p123 = por %p121, %p122
      %s125 = sadd.s32 %s124, 1
      %p128 = scmp.eq.s32.totalorder %s22, 1
      %p129 = scmp.ne.s32.totalorder %s124, %s126
      %p130 = scmp.eq.s32.totalorder %s22, 0
      %p131 = por %p129, %p130
      %p132 = scmp.ne.s32.totalorder %s124, %s126
      %p133 = scmp.eq.s32.totalorder %s27, 1
      %p134 = por %p132, %p133
      %p135 = scmp.ne.s32.totalorder %s126, %s127
      %p136 = scmp.eq.s32.totalorder %s27, 0
      %p137 = por %p135, %p136
      %p138 = scmp.ne.s32.totalorder %s126, %s127
      %p139 = scmp.eq.s32.totalorder %s28, 1
      %p140 = por %p138, %p139
      %p142 = scmp.ne.s32.totalorder %s127, %s141
      %p143 = scmp.eq.s32.totalorder %s28, 0
      %p144 = por %p142, %p143
      %s146 = sadd.s32 %s145, 1
      %p149 = scmp.eq.s32.totalorder %s22, 1
      %p150 = scmp.ne.s32.totalorder %s145, %s147
      %p151 = scmp.eq.s32.totalorder %s22, 0
      %p152 = por %p150, %p151
      %p153 = scmp.ne.s32.totalorder %s145, %s147
      %p154 = scmp.eq.s32.totalorder %s27, 1
      %p155 = por %p153, %p154
      %p156 = scmp.ne.s32.totalorder %s147, %s148
      %p157 = scmp.eq.s32.totalorder %s27, 0
      %p158 = por %p156, %p157
      %p159 = scmp.ne.s32.totalorder %s147, %s148
      %p160 = scmp.eq.s32.totalorder %s28, 1
      %p161 = por %p159, %p160
      %p163 = scmp.ne.s32.totalorder %s148, %s162
      %p164 = scmp.eq.s32.totalorder %s28, 0
      %p165 = por %p163, %p164
      %s167 = sadd.s32 %s166, 1
      %p170 = scmp.eq.s32.totalorder %s22, 1
      %p171 = scmp.ne.s32.totalorder %s166, %s168
      %p172 = scmp.eq.s32.totalorder %s22, 0
      %p173 = por %p171, %p172
      %p174 = scmp.ne.s32.totalorder %s166, %s168
      %p175 = scmp.eq.s32.totalorder %s27, 1
      %p176 = por %p174, %p175
      %p177 = scmp.ne.s32.totalorder %s168, %s169
      %p178 = scmp.eq.s32.totalorder %s27, 0
      %p179 = por %p177, %p178
      %p180 = scmp.ne.s32.totalorder %s168, %s169
      %p181 = scmp.eq.s32.totalorder %s28, 1
      %p182 = por %p180, %p181
      %p184 = scmp.ne.s32.totalorder %s169, %s183
      %p185 = scmp.eq.s32.totalorder %s28, 0
      %p186 = por %p184, %p185
      %s188 = sadd.s32 %s187, 1
      %p191 = scmp.eq.s32.totalorder %s22, 1
      %p192 = scmp.ne.s32.totalorder %s187, %s189
      %p193 = scmp.eq.s32.totalorder %s22, 0
      %p194 = por %p192, %p193
      %p195 = scmp.ne.s32.totalorder %s187, %s189
      %p196 = scmp.eq.s32.totalorder %s27, 1
      %p197 = por %p195, %p196
      %p198 = scmp.ne.s32.totalorder %s189, %s190
      %p199 = scmp.eq.s32.totalorder %s27, 0
      %p200 = por %p198, %p199
      %p201 = scmp.ne.s32.totalorder %s189, %s190
      %p202 = scmp.eq.s32.totalorder %s28, 1
      %p203 = por %p201, %p202
      %p205 = scmp.ne.s32.totalorder %s190, %s204
      %p206 = scmp.eq.s32.totalorder %s28, 0
      %p207 = por %p205, %p206
      %s209 = sadd.s32 %s208, 1
      %p212 = scmp.eq.s32.totalorder %s22, 1
      %p213 = scmp.ne.s32.totalorder %s208, %s210
      %p214 = scmp.eq.s32.totalorder %s22, 0
      %p215 = por %p213, %p214
      %p216 = scmp.ne.s32.totalorder %s208, %s210
      %p217 = scmp.eq.s32.totalorder %s27, 1
      %p218 = por %p216, %p217
      %p219 = scmp.ne.s32.totalorder %s210, %s211
      %p220 = scmp.eq.s32.totalorder %s27, 0
      %p221 = por %p219, %p220
      %p222 = scmp.ne.s32.totalorder %s210, %s211
      %p223 = scmp.eq.s32.totalorder %s28, 1
      %p224 = por %p222, %p223
      %p226 = scmp.ne.s32.totalorder %s211, %s225
      %p227 = scmp.eq.s32.totalorder %s28, 0
      %p228 = por %p226, %p227
      %s230 = sadd.s32 %s229, 1
      %p233 = scmp.eq.s32.totalorder %s22, 1
      %p234 = scmp.ne.s32.totalorder %s229, %s231
      %p235 = scmp.eq.s32.totalorder %s22, 0
      %p236 = por %p234, %p235
      %p237 = scmp.ne.s32.totalorder %s229, %s231
      %p238 = scmp.eq.s32.totalorder %s27, 1
      %p239 = por %p237, %p238
      %p240 = scmp.ne.s32.totalorder %s231, %s232
      %p241 = scmp.eq.s32.totalorder %s27, 0
      %p242 = por %p240, %p241
      %p243 = scmp.ne.s32.totalorder %s231, %s232
      %p244 = scmp.eq.s32.totalorder %s28, 1
      %p245 = por %p243, %p244
      %p247 = scmp.ne.s32.totalorder %s232, %s246
      %p248 = scmp.eq.s32.totalorder %s28, 0
      %p249 = por %p247, %p248
      %s251 = sadd.s32 %s250, 1
      %p254 = scmp.eq.s32.totalorder %s22, 1
      %p255 = scmp.ne.s32.totalorder %s250, %s252
      %p256 = scmp.eq.s32.totalorder %s22, 0
      %p257 = por %p255, %p256
      %p258 = scmp.ne.s32.totalorder %s250, %s252
      %p259 = scmp.eq.s32.totalorder %s27, 1
      %p260 = por %p258, %p259
      %p261 = scmp.ne.s32.totalorder %s252, %s253
      %p262 = scmp.eq.s32.totalorder %s27, 0
      %p263 = por %p261, %p262
      %p264 = scmp.ne.s32.totalorder %s252, %s253
      %p265 = scmp.eq.s32.totalorder %s28, 1
      %p266 = por %p264, %p265
      %p268 = scmp.ne.s32.totalorder %s253, %s267
      %p269 = scmp.eq.s32.totalorder %s28, 0
      %p270 = por %p268, %p269
      %s272 = sadd.s32 %s271, 1
      %p275 = scmp.eq.s32.totalorder %s22, 1
      %p276 = scmp.ne.s32.totalorder %s271, %s273
      %p277 = scmp.eq.s32.totalorder %s22, 0
      %p278 = por %p276, %p277
      %p279 = scmp.ne.s32.totalorder %s271, %s273
      %p280 = scmp.eq.s32.totalorder %s27, 1
      %p281 = por %p279, %p280
      %p282 = scmp.ne.s32.totalorder %s273, %s274
      %p283 = scmp.eq.s32.totalorder %s27, 0
      %p284 = por %p282, %p283
      %p285 = scmp.ne.s32.totalorder %s273, %s274
      %p286 = scmp.eq.s32.totalorder %s28, 1
      %p287 = por %p285, %p286
      %p289 = scmp.ne.s32.totalorder %s274, %s288
      %p290 = scmp.eq.s32.totalorder %s28, 0
      %p291 = por %p289, %p290
      %s293 = sadd.s32 %s292, 1
      %p296 = scmp.eq.s32.totalorder %s22, 1
      %p297 = scmp.ne.s32.totalorder %s292, %s294
      %p298 = scmp.eq.s32.totalorder %s22, 0
      %p299 = por %p297, %p298
      %p300 = scmp.ne.s32.totalorder %s292, %s294
      %p301 = scmp.eq.s32.totalorder %s27, 1
      %p302 = por %p300, %p301
      %p303 = scmp.ne.s32.totalorder %s294, %s295
      %p304 = scmp.eq.s32.totalorder %s27, 0
      %p305 = por %p303, %p304
      %p306 = scmp.ne.s32.totalorder %s294, %s295
      %p307 = scmp.eq.s32.totalorder %s28, 1
      %p308 = por %p306, %p307
      %p310 = scmp.ne.s32.totalorder %s295, %s309
      %p311 = scmp.eq.s32.totalorder %s28, 0
      %p312 = por %p310, %p311
      %s314 = sadd.s32 %s313, 1
      %p317 = scmp.eq.s32.totalorder %s22, 1
      %p318 = scmp.ne.s32.totalorder %s313, %s315
      %p319 = scmp.eq.s32.totalorder %s22, 0
      %p320 = por %p318, %p319
      %p321 = scmp.ne.s32.totalorder %s313, %s315
      %p322 = scmp.eq.s32.totalorder %s27, 1
      %p323 = por %p321, %p322
      %p324 = scmp.ne.s32.totalorder %s315, %s316
      %p325 = scmp.eq.s32.totalorder %s27, 0
      %p326 = por %p324, %p325
      %p327 = scmp.ne.s32.totalorder %s315, %s316
      %p328 = scmp.eq.s32.totalorder %s28, 1
      %p329 = por %p327, %p328
      %p331 = scmp.ne.s32.totalorder %s316, %s330
      %p332 = scmp.eq.s32.totalorder %s28, 0
      %p333 = por %p331, %p332
      %s334 = ssub.s32 %s22, %s29
      %p335 = scmp.eq.s32.totalorder %s334, 0
      %s337 = sadd.s32 %s336, 1
      %s338 = scalar_select %p335, %s336, %s337
      %p341 = pneg %p335
      %p342 = scmp.eq.s32.totalorder %s22, 1
      %p343 = por %p341, %p342
      %p344 = scmp.ne.s32.totalorder %s336, %s339
      %p345 = scmp.eq.s32.totalorder %s22, 0
      %p346 = por %p344, %p345
      %p347 = scmp.ne.s32.totalorder %s336, %s339
      %p348 = scmp.eq.s32.totalorder %s27, 1
      %p349 = por %p347, %p348
      %p350 = scmp.ne.s32.totalorder %s339, %s340
      %p351 = scmp.eq.s32.totalorder %s27, 0
      %p352 = por %p350, %p351
      %p353 = scmp.ne.s32.totalorder %s339, %s340
      %p354 = scmp.eq.s32.totalorder %s28, 1
      %p355 = por %p353, %p354
      %p357 = scmp.ne.s32.totalorder %s340, %s356
      %p358 = scmp.eq.s32.totalorder %s28, 0
      %p359 = por %p357, %p358
      %p360 = scmp.le.s32.totalorder 1, %s22
      %p361 = scmp.lt.s32.totalorder %s22, 3
      %p362 = pnand %p360, %p361
      %p363 = pneg %p362
      // Predicated region
      $region9: #{gnn6_forward.1} parent=5 // pred_check
        _
      $region10: #{gnn6_forward.1} parent=5 // pred_check_branch
        %365 = sbr.rel (%p362) target = $region12
      $region11: #{gnn6_forward.1} parent=5 // pred_region
        %s366 = ssub.s32 %s22, 1
        // Predicated region
        $region13: #{gnn6_forward.1} parent=11 // pred_check
          %p367 = pneg %p95
        $region14: #{gnn6_forward.1} parent=11 // pred_check_branch
          %369 = sbr.rel (%p367) target = $region16
        $region15: #{gnn6_forward.1} parent=11 // pred_region
          _
        $region16: #{gnn6_forward.1} parent=11 // pred_fallthru
          _
        // Predicated region
        $region17: #{gnn6_forward.1} parent=11 // pred_check
          %p370 = pneg %p116
        $region18: #{gnn6_forward.1} parent=11 // pred_check_branch
          %372 = sbr.rel (%p370) target = $region20
        $region19: #{gnn6_forward.1} parent=11 // pred_region
          _
        $region20: #{gnn6_forward.1} parent=11 // pred_fallthru
          _
        // Predicated region
        $region21: #{gnn6_forward.1} parent=11 // pred_check
          %p373 = pneg %p137
        $region22: #{gnn6_forward.1} parent=11 // pred_check_branch
          %375 = sbr.rel (%p373) target = $region24
        $region23: #{gnn6_forward.1} parent=11 // pred_region
          %s377 = ssub.s32 32, 32
          %378 = vsyncadd [#allocation4], %s377
          %s380 = sshll.u32 %s4, 4
          %s381 = int_to_ptr.vmem [resolvable:$true] %s380
          %383 = dma.vmem_to_smem %s381, 32, [#allocation3], [#allocation4]
        $region24: #{gnn6_forward.1} parent=11 // pred_fallthru
          _
        // Predicated region
        $region25: #{gnn6_forward.1} parent=11 // pred_check
          %p384 = pneg %p158
        $region26: #{gnn6_forward.1} parent=11 // pred_check_branch
          %386 = sbr.rel (%p384) target = $region28
        $region27: #{gnn6_forward.1} parent=11 // pred_region
          _
        $region28: #{gnn6_forward.1} parent=11 // pred_fallthru
          _
        // Predicated region
        $region29: #{gnn6_forward.1} parent=11 // pred_check
          %p387 = pneg %p179
        $region30: #{gnn6_forward.1} parent=11 // pred_check_branch
          %389 = sbr.rel (%p387) target = $region32
        $region31: #{gnn6_forward.1} parent=11 // pred_region
          _
        $region32: #{gnn6_forward.1} parent=11 // pred_fallthru
          _
        // Predicated region
        $region33: #{gnn6_forward.1} parent=11 // pred_check
          %p390 = pneg %p200
        $region34: #{gnn6_forward.1} parent=11 // pred_check_branch
          %392 = sbr.rel (%p390) target = $region36
        $region35: #{gnn6_forward.1} parent=11 // pred_region
          _
        $region36: #{gnn6_forward.1} parent=11 // pred_fallthru
          _
        // Predicated region
        $region37: #{gnn6_forward.1} parent=11 // pred_check
          %p393 = pneg %p221
        $region38: #{gnn6_forward.1} parent=11 // pred_check_branch
          %395 = sbr.rel (%p393) target = $region40
        $region39: #{gnn6_forward.1} parent=11 // pred_region
          %s397 = ssub.s32 32, 32
          %398 = vsyncadd [#allocation6], %s397
          %s400 = sshll.u32 %s8, 4
          %s401 = int_to_ptr.vmem [resolvable:$true] %s400
          %403 = dma.vmem_to_smem %s401, 32, [#allocation5], [#allocation6]
        $region40: #{gnn6_forward.1} parent=11 // pred_fallthru
          _
        // Predicated region
        $region41: #{gnn6_forward.1} parent=11 // pred_check
          %p404 = pneg %p242
        $region42: #{gnn6_forward.1} parent=11 // pred_check_branch
          %406 = sbr.rel (%p404) target = $region44
        $region43: #{gnn6_forward.1} parent=11 // pred_region
          _
        $region44: #{gnn6_forward.1} parent=11 // pred_fallthru
          _
        // Predicated region
        $region45: #{gnn6_forward.1} parent=11 // pred_check
          %p407 = pneg %p263
        $region46: #{gnn6_forward.1} parent=11 // pred_check_branch
          %409 = sbr.rel (%p407) target = $region48
        $region47: #{gnn6_forward.1} parent=11 // pred_region
          _
        $region48: #{gnn6_forward.1} parent=11 // pred_fallthru
          _
        // Predicated region
        $region49: #{gnn6_forward.1} parent=11 // pred_check
          %p410 = pneg %p284
        $region50: #{gnn6_forward.1} parent=11 // pred_check_branch
          %412 = sbr.rel (%p410) target = $region52
        $region51: #{gnn6_forward.1} parent=11 // pred_region
          _
        $region52: #{gnn6_forward.1} parent=11 // pred_fallthru
          _
        // Predicated region
        $region53: #{gnn6_forward.1} parent=11 // pred_check
          %p413 = pneg %p305
        $region54: #{gnn6_forward.1} parent=11 // pred_check_branch
          %415 = sbr.rel (%p413) target = $region56
        $region55: #{gnn6_forward.1} parent=11 // pred_region
          %s417 = ssub.s32 32, 32
          %418 = vsyncadd [#allocation6], %s417
          %s420 = sshll.u32 %s12, 4
          %s421 = int_to_ptr.vmem [resolvable:$true] %s420
          %423 = dma.vmem_to_smem %s421, 32, [#allocation7], [#allocation6]
        $region56: #{gnn6_forward.1} parent=11 // pred_fallthru
          _
        // Predicated region
        $region57: #{gnn6_forward.1} parent=11 // pred_check
          %p424 = pneg %p326
        $region58: #{gnn6_forward.1} parent=11 // pred_check_branch
          %426 = sbr.rel (%p424) target = $region60
        $region59: #{gnn6_forward.1} parent=11 // pred_region
          _
        $region60: #{gnn6_forward.1} parent=11 // pred_fallthru
          _
      $region12: #{gnn6_forward.1} parent=5 // pred_fallthru
        _
      %p427 = scmp.lt.s32.totalorder %s22, 2
      // Predicated region
      $region61: #{gnn6_forward.1} parent=5 // pred_check
        %p428 = pneg %p427
      $region62: #{gnn6_forward.1} parent=5 // pred_check_branch
        %430 = sbr.rel (%p428) target = $region64
      $region63: #{gnn6_forward.1} parent=5 // pred_region
        // Predicated region
        $region65: #{gnn6_forward.1} parent=63 // pred_check
          %p431 = pneg %p42
        $region66: #{gnn6_forward.1} parent=63 // pred_check_branch
          %433 = sbr.rel (%p431) target = $region68
        $region67: #{gnn6_forward.1} parent=63 // pred_region
          %p434 = scmp.lt.s32.totalorder %s22, 1
          %s435 = scalar_select %p434, %s22, 1
          %s436 = smul.addr %s435, 16
          %s437 = smul.addr %s436, 8
          %s438 = scalar_lea.vmem %s0, %s437
        $region68: #{gnn6_forward.1} parent=63 // pred_fallthru
          _
        // Predicated region
        $region69: #{gnn6_forward.1} parent=63 // pred_check
          %p439 = pneg %p68
        $region70: #{gnn6_forward.1} parent=63 // pred_check_branch
          %441 = sbr.rel (%p439) target = $region72
        $region71: #{gnn6_forward.1} parent=63 // pred_region
          %p442 = scmp.lt.s32.totalorder %s22, 1
          %s443 = scalar_select %p442, %s22, 1
          %s444 = smul.addr %s443, 16
          %s445 = smul.addr %s444, 4
          %s446 = scalar_lea.vmem %s1, %s445
        $region72: #{gnn6_forward.1} parent=63 // pred_fallthru
          _
      $region64: #{gnn6_forward.1} parent=5 // pred_fallthru
        _
      %p447 = scmp.le.s32.totalorder 1, %s22
      %p448 = scmp.lt.s32.totalorder %s22, 3
      %p449 = pnand %p447, %p448
      %p450 = pneg %p449
      // Predicated region
      $region73: #{gnn6_forward.1} parent=5 // pred_check
        _
      $region74: #{gnn6_forward.1} parent=5 // pred_check_branch
        %452 = sbr.rel (%p449) target = $region76
      $region75: #{gnn6_forward.1} parent=5 // pred_region
        %s453 = ssub.s32 %s22, 1
        // Predicated region
        $region77: #{gnn6_forward.1} parent=75 // pred_check
          %p454 = pneg %p137
        $region78: #{gnn6_forward.1} parent=75 // pred_check_branch
          %456 = sbr.rel (%p454) target = $region80
        $region79: #{gnn6_forward.1} parent=75 // pred_region
          %457 = dma.done [#allocation4], 32
        $region80: #{gnn6_forward.1} parent=75 // pred_fallthru
          _
        // Predicated region
        $region81: #{gnn6_forward.1} parent=75 // pred_check
          %p458 = pneg %p221
        $region82: #{gnn6_forward.1} parent=75 // pred_check_branch
          %460 = sbr.rel (%p458) target = $region84
        $region83: #{gnn6_forward.1} parent=75 // pred_region
          %461 = dma.done [#allocation6], 32
        $region84: #{gnn6_forward.1} parent=75 // pred_fallthru
          _
        // Predicated region
        $region85: #{gnn6_forward.1} parent=75 // pred_check
          %p462 = pneg %p305
        $region86: #{gnn6_forward.1} parent=75 // pred_check_branch
          %464 = sbr.rel (%p462) target = $region88
        $region87: #{gnn6_forward.1} parent=75 // pred_region
          %465 = dma.done [#allocation6], 32
        $region88: #{gnn6_forward.1} parent=75 // pred_fallthru
          _
        %466 = sfence
        %p467 = scmp.lt.s32.totalorder %s27, 1
        %s468 = scalar_select %p467, %s27, 1
        %s469 = smul.addr %s468, 16
        %s470 = smul.addr %s469, 8
        %s471 = scalar_lea.vmem %s0, %s470
        %p472 = pneg %p48
        %p473 = pneg %p45
        %p474 = scmp.lt.s32.totalorder %s27, 1
        %s475 = scalar_select %p474, %s27, 1
        %s476 = smul.addr %s475, 16
        %s477 = smul.addr %s476, 4
        %s478 = scalar_lea.vmem %s1, %s477
        %p479 = pneg %p74
        %p480 = pneg %p71
        %p481 = pneg %p95
        %p482 = pneg %p92
        %p483 = pneg %p116
        %p484 = pneg %p113
        %p485 = pneg %p137
        %p486 = pneg %p134
        %p487 = pneg %p158
        %p488 = pneg %p155
        %p489 = pneg %p179
        %p490 = pneg %p176
        %p491 = pneg %p200
        %p492 = pneg %p197
        %p493 = pneg %p221
        %p494 = pneg %p218
        %p495 = pneg %p242
        %p496 = pneg %p239
        %p497 = pneg %p263
        %p498 = pneg %p260
        %p499 = pneg %p284
        %p500 = pneg %p281
        %p501 = pneg %p305
        %p502 = pneg %p302
        %p503 = pneg %p326
        %p504 = pneg %p323
        %p505 = pneg %p352
        %p506 = pneg %p349
        %p507 = scmp.lt.s32.totalorder %s27, 1
        %s508 = scalar_select %p507, %s27, 1
        %s509 = smul.addr %s508, 16
        %s510 = smul.addr %s509, 8
        %s511 = scalar_lea.vmem %s14, %s510
        %p512 = scmp.lt.s32.totalorder %s27, 1
        %s513 = scalar_select %p512, %s27, 1
        %s514 = smul.addr %s513, 16
        %s515 = smul.addr %s514, 8
        %s516 = scalar_lea.vmem %s0, %s515
        %p517 = scmp.lt.s32.totalorder %s27, 1
        %s518 = scalar_select %p517, %s27, 1
        %s519 = smul.addr %s518, 16
        %s520 = smul.addr %s519, 4
        %s521 = scalar_lea.vmem %s1, %s520
        %p522 = scmp.lt.s32.totalorder %s27, 1
        %s523 = scalar_select %p522, %s27, 1
        %s524 = smul.addr %s523, 16
        %s525 = smul.addr %s524, 8
        %s526 = scalar_lea.vmem %s14, %s525
        %v528 = vld [vmem:[%s521] sm:$0xf]
        %v529 = vld [vmem:[%s521 + $0x4] sm:$0xf]
        %v530 = vld [vmem:[%s521 + $0x8] sm:$0xf]
        %v531 = vld [vmem:[%s521 + $0xc] sm:$0xf]
        %v532 = vld [vmem:[%s521 + $0x10] sm:$0xf]
        %v533 = vld [vmem:[%s521 + $0x14] sm:$0xf]
        %v534 = vld [vmem:[%s521 + $0x18] sm:$0xf]
        %v535 = vld [vmem:[%s521 + $0x1c] sm:$0xf]
        %v536 = vld [vmem:[%s521 + $0x20] sm:$0xf]
        %v537 = vld [vmem:[%s521 + $0x24] sm:$0xf]
        %v538 = vld [vmem:[%s521 + $0x28] sm:$0xf]
        %v539 = vld [vmem:[%s521 + $0x2c] sm:$0xf]
        %v540 = vld [vmem:[%s521 + $0x30] sm:$0xf]
        %v541 = vld [vmem:[%s521 + $0x34] sm:$0xf]
        %v542 = vld [vmem:[%s521 + $0x38] sm:$0xf]
        %v543 = vld [vmem:[%s521 + $0x3c] sm:$0xf]
        %v544 = vunpack.c.l.bf16 %v528
        %v545 = vunpack.c.l.bf16 %v529
        %v546 = vunpack.c.l.bf16 %v530
        %v547 = vunpack.c.l.bf16 %v531
        %v548 = vunpack.c.l.bf16 %v532
        %v549 = vunpack.c.l.bf16 %v533
        %v550 = vunpack.c.l.bf16 %v534
        %v551 = vunpack.c.l.bf16 %v535
        %v552 = vunpack.c.l.bf16 %v536
        %v553 = vunpack.c.l.bf16 %v537
        %v554 = vunpack.c.l.bf16 %v538
        %v555 = vunpack.c.l.bf16 %v539
        %v556 = vunpack.c.l.bf16 %v540
        %v557 = vunpack.c.l.bf16 %v541
        %v558 = vunpack.c.l.bf16 %v542
        %v559 = vunpack.c.l.bf16 %v543
        %v560 = vld [vmem:[%s516] sm:$0xff]
        %v561 = vld [vmem:[%s516 + $0x8] sm:$0xff]
        %v562 = vld [vmem:[%s516 + $0x10] sm:$0xff]
        %v563 = vld [vmem:[%s516 + $0x18] sm:$0xff]
        %v564 = vld [vmem:[%s516 + $0x20] sm:$0xff]
        %v565 = vld [vmem:[%s516 + $0x28] sm:$0xff]
        %v566 = vld [vmem:[%s516 + $0x30] sm:$0xff]
        %v567 = vld [vmem:[%s516 + $0x38] sm:$0xff]
        %v568 = vld [vmem:[%s516 + $0x40] sm:$0xff]
        %v569 = vld [vmem:[%s516 + $0x48] sm:$0xff]
        %v570 = vld [vmem:[%s516 + $0x50] sm:$0xff]
        %v571 = vld [vmem:[%s516 + $0x58] sm:$0xff]
        %v572 = vld [vmem:[%s516 + $0x60] sm:$0xff]
        %v573 = vld [vmem:[%s516 + $0x68] sm:$0xff]
        %v574 = vld [vmem:[%s516 + $0x70] sm:$0xff]
        %v575 = vld [vmem:[%s516 + $0x78] sm:$0xff]
        %v576 = vpack.c.bf16 %v561, %v560
        %v577 = vpack.c.bf16 %v563, %v562
        %v578 = vpack.c.bf16 %v565, %v564
        %v579 = vpack.c.bf16 %v567, %v566
        %v580 = vpack.c.bf16 %v569, %v568
        %v581 = vpack.c.bf16 %v571, %v570
        %v582 = vpack.c.bf16 %v573, %v572
        %v583 = vpack.c.bf16 %v575, %v574
        %v584 = vld [vmem:[%s2] sm:$0xf]
        %v585 = vld [vmem:[%s2 + $0x4] sm:$0xf]
        %v586 = vld [vmem:[%s2 + $0x8] sm:$0xf]
        %v587 = vld [vmem:[%s2 + $0xc] sm:$0xf]
        %v588 = vld [vmem:[%s3] sm:$0x1]
        %v590 = vlaneseq
        %v591 = vshrl.u32 %v590, 7
        %v592 = vsub.s32 0, %v591
        %v593 = vrot.slane %v588, %v592
        %v599 = vunpack.c.l.b16 %v584
        %v600 = vunpack.c.l.b16 %v585
        %v601 = vunpack.c.l.b16 %v586
        %v602 = vunpack.c.l.b16 %v587
        %v603 = vpack.c.b16 %v600, %v599
        %v604 = vpack.c.b16 %v602, %v601
        %vm607 = vcmask 261120
        %v609 = vsel %vm607, %v576, 0
        %v612 = vsel %vm607, %v577, 0
        %v615 = vsel %vm607, %v578, 0
        %v618 = vsel %vm607, %v579, 0
        %v621 = vsel %vm607, %v580, 0
        %v624 = vsel %vm607, %v581, 0
        %v627 = vsel %vm607, %v582, 0
        %v630 = vsel %vm607, %v583, 0
        %632 = vmatprep.subr.bf16.mxu0 0
        %633 = vmatpush1.bf16.msra.mxu0 %v603
        %634 = vmatprep.subr.bf16.mxu0 0
        %635 = vmatpush1.bf16.msra.mxu0 %v604
        %636 = vmatprep.subr.bf16.mxu0 0
        %637 = vmatpush1.bf16.msra.mxu0 0
        %638 = vmatprep.subr.bf16.mxu0 0
        %639 = vmatpush1.bf16.msra.mxu0 0
        %640 = vmatprep.subr.bf16.mxu0 0
        %641 = vmatpush1.bf16.msra.mxu0 0
        %642 = vmatprep.subr.bf16.mxu0 0
        %643 = vmatpush1.bf16.msra.mxu0 0
        %644 = vmatprep.subr.bf16.mxu0 0
        %645 = vmatpush1.bf16.msra.mxu0 0
        %646 = vmatprep.subr.bf16.mxu0 0
        %647 = vmatpush1.bf16.msra.mxu0 0
        %648 = vmatprep.subr.bf16.mxu0 0
        %649 = vmatpush1.bf16.msra.mxu0 0
        %650 = vmatprep.subr.bf16.mxu0 0
        %651 = vmatpush1.bf16.msra.mxu0 0
        %652 = vmatprep.subr.bf16.mxu0 0
        %653 = vmatpush1.bf16.msra.mxu0 0
        %654 = vmatprep.subr.bf16.mxu0 0
        %655 = vmatpush1.bf16.msra.mxu0 0
        %656 = vmatprep.subr.bf16.mxu0 0
        %657 = vmatpush1.bf16.msra.mxu0 0
        %658 = vmatprep.subr.bf16.mxu0 0
        %659 = vmatpush1.bf16.msra.mxu0 0
        %660 = vmatprep.subr.bf16.mxu0 0
        %661 = vmatpush1.bf16.msra.mxu0 0
        %662 = vmatprep.subr.bf16.mxu0 0
        %663 = vmatpush1.bf16.msra.mxu0 0
        %664 = vmatprep.mubr.bf16.mxu0 0
        %665 = vmatmul.mubr.bf16.gmra.mrb[0].mxu0 %v609
        %v666 = vpop.f32.mrb[0].mxu0
        %v667 = vadd.f32 %v593, %v666
        %v668 = vpop.f32.mrb[0].mxu0
        %v669 = vpop.f32.mrb[0].mxu0
        %v670 = vadd.f32 %v593, %v669
        %v671 = vpop.f32.mrb[0].mxu0
        %672 = vmatprep.mubr.bf16.mxu0 0
        %673 = vmatmul.mubr.bf16.gmra.mrb[0].mxu0 %v612
        %v674 = vpop.f32.mrb[0].mxu0
        %v675 = vadd.f32 %v593, %v674
        %v676 = vpop.f32.mrb[0].mxu0
        %v677 = vpop.f32.mrb[0].mxu0
        %v678 = vadd.f32 %v593, %v677
        %v679 = vpop.f32.mrb[0].mxu0
        %680 = vmatprep.mubr.bf16.mxu0 0
        %681 = vmatmul.mubr.bf16.gmra.mrb[0].mxu0 %v615
        %v682 = vpop.f32.mrb[0].mxu0
        %v683 = vadd.f32 %v593, %v682
        %v684 = vpop.f32.mrb[0].mxu0
        %v685 = vpop.f32.mrb[0].mxu0
        %v686 = vadd.f32 %v593, %v685
        %v687 = vpop.f32.mrb[0].mxu0
        %688 = vmatprep.mubr.bf16.mxu0 0
        %689 = vmatmul.mubr.bf16.gmra.mrb[0].mxu0 %v618
        %v690 = vpop.f32.mrb[0].mxu0
        %v691 = vadd.f32 %v593, %v690
        %v692 = vpop.f32.mrb[0].mxu0
        %v693 = vpop.f32.mrb[0].mxu0
        %v694 = vadd.f32 %v593, %v693
        %v695 = vpop.f32.mrb[0].mxu0
        %696 = vmatprep.mubr.bf16.mxu0 0
        %697 = vmatmul.mubr.bf16.gmra.mrb[0].mxu0 %v621
        %v698 = vpop.f32.mrb[0].mxu0
        %v699 = vadd.f32 %v593, %v698
        %v700 = vpop.f32.mrb[0].mxu0
        %v701 = vpop.f32.mrb[0].mxu0
        %v702 = vadd.f32 %v593, %v701
        %v703 = vpop.f32.mrb[0].mxu0
        %704 = vmatprep.mubr.bf16.mxu0 0
        %705 = vmatmul.mubr.bf16.gmra.mrb[0].mxu0 %v624
        %v706 = vpop.f32.mrb[0].mxu0
        %v707 = vadd.f32 %v593, %v706
        %v708 = vpop.f32.mrb[0].mxu0
        %v709 = vpop.f32.mrb[0].mxu0
        %v710 = vadd.f32 %v593, %v709
        %v711 = vpop.f32.mrb[0].mxu0
        %712 = vmatprep.mubr.bf16.mxu0 0
        %713 = vmatmul.mubr.bf16.gmra.mrb[0].mxu0 %v627
        %v714 = vpop.f32.mrb[0].mxu0
        %v715 = vadd.f32 %v593, %v714
        %v716 = vpop.f32.mrb[0].mxu0
        %v717 = vpop.f32.mrb[0].mxu0
        %v718 = vadd.f32 %v593, %v717
        %v719 = vpop.f32.mrb[0].mxu0
        %720 = vmatprep.mubr.bf16.mxu0 0
        %721 = vmatmul.mubr.bf16.gmra.mrb[0].mxu0 %v630
        %v722 = vpop.f32.mrb[0].mxu0
        %v723 = vadd.f32 %v593, %v722
        %v724 = vpop.f32.mrb[0].mxu0
        %v725 = vpop.f32.mrb[0].mxu0
        %v726 = vadd.f32 %v593, %v725
        %v727 = vpop.f32.mrb[0].mxu0
        %728 = vdwg.mxu0
        %729 = vxpose.xlu0.b32.start [1/16] %v667, 128
        %730 = vxpose.xlu0.b32.cont [2/16] %v670, 128
        %731 = vxpose.xlu0.b32.cont [3/16] %v675, 128
        %732 = vxpose.xlu0.b32.cont [4/16] %v678, 128
        %733 = vxpose.xlu0.b32.cont [5/16] %v683, 128
        %734 = vxpose.xlu0.b32.cont [6/16] %v686, 128
        %735 = vxpose.xlu0.b32.cont [7/16] %v691, 128
        %736 = vxpose.xlu0.b32.cont [8/16] %v694, 128
        %737 = vxpose.xlu0.b32.cont [9/16] %v699, 128
        %738 = vxpose.xlu0.b32.cont [10/16] %v702, 128
        %739 = vxpose.xlu0.b32.cont [11/16] %v707, 128
        %740 = vxpose.xlu0.b32.cont [12/16] %v710, 128
        %741 = vxpose.xlu0.b32.cont [13/16] %v715, 128
        %742 = vxpose.xlu0.b32.cont [14/16] %v718, 128
        %743 = vxpose.xlu0.b32.cont [15/16] %v723, 128
        %744 = vxpose.xlu0.b32.end [16/16] %v726, 128
        %v745 = vpop.trf.xlu0
        %v746 = vpop.trf.xlu0
        %v747 = vpop.trf.xlu0
        %v748 = vpop.trf.xlu0
        %v749 = vpop.trf.xlu0
        %v750 = vpop.trf.xlu0
        %v751 = vpop.trf.xlu0
        %v752 = vpop.trf.xlu0
        %v753 = vpop.trf.xlu0
        %v754 = vpop.trf.xlu0
        %v755 = vpop.trf.xlu0
        %v756 = vpop.trf.xlu0
        %v757 = vpop.trf.xlu0
        %v758 = vpop.trf.xlu0
        %v759 = vpop.trf.xlu0
        %v760 = vpop.trf.xlu0
        %761 = vst [vmem:[#allocation2] sm:$0xff] %v745
        %762 = vst [vmem:[#allocation2 + $0x8] sm:$0xff] %v746
        %763 = vst [vmem:[#allocation2 + $0x10] sm:$0xff] %v747
        %764 = vst [vmem:[#allocation2 + $0x18] sm:$0xff] %v748
        %765 = vst [vmem:[#allocation2 + $0x20] sm:$0xff] %v749
        %766 = vst [vmem:[#allocation2 + $0x28] sm:$0xff] %v750
        %767 = vst [vmem:[#allocation2 + $0x30] sm:$0xff] %v751
        %768 = vst [vmem:[#allocation2 + $0x38] sm:$0xff] %v752
        %769 = vst [vmem:[#allocation2 + $0x40] sm:$0xff] %v753
        %770 = vst [vmem:[#allocation2 + $0x48] sm:$0xff] %v754
        %771 = vst [vmem:[#allocation2 + $0x50] sm:$0xff] %v755
        %772 = vst [vmem:[#allocation2 + $0x58] sm:$0xff] %v756
        %773 = vst [vmem:[#allocation2 + $0x60] sm:$0xff] %v757
        %774 = vst [vmem:[#allocation2 + $0x68] sm:$0xff] %v758
        %775 = vst [vmem:[#allocation2 + $0x70] sm:$0xff] %v759
        %776 = vst [vmem:[#allocation2 + $0x78] sm:$0xff] %v760
        %v777 = vlaneseq
        %v778 = vand.u32 %v777, 127
        loop: start=0, step=1, limit=32
        $region89: #{gnn6_forward.1} parent=75 // loop_pre_header
          _
        $region90: #{gnn6_forward.1} parent=75 // loop_header
          %s780 = sphi 0, %s784
          %p781 = scmp.ge.s32.totalorder %s780, 32
          %v785 = vphi 0.0, %v1019
          %v786 = vphi 0.0, %v1020
          %v787 = vphi 0.0, %v1021
          %v788 = vphi 0.0, %v1022
          %v789 = vphi 0.0, %v1023
          %v790 = vphi 0.0, %v1024
          %v791 = vphi 0.0, %v1025
          %v792 = vphi 0.0, %v1026
          %v793 = vphi 0.0, %v1027
          %v794 = vphi 0.0, %v1028
          %v795 = vphi 0.0, %v1029
          %v796 = vphi 0.0, %v1030
          %v797 = vphi 0.0, %v1031
          %v798 = vphi 0.0, %v1032
          %v799 = vphi 0.0, %v1033
          %v800 = vphi 0.0, %v1034
        $region91: #{gnn6_forward.1} parent=75 // loop_header_branch
          %783 = sbr.rel (%p781) target = $region95
        $region92: #{gnn6_forward.1} parent=75 // loop_body
          %v801 = vstv %s780
          %vm802 = vcmp.eq.s32.totalorder %v778, %v801
          %819 = vrot.lane.b32.xlu0 %v667, 64
          %v820 = vpop.permute.xlu0 %819
          %821 = vrot.lane.b32.xlu0 %v670, 64
          %v822 = vpop.permute.xlu0 %821
          %823 = vrot.lane.b32.xlu0 %v675, 64
          %v824 = vpop.permute.xlu0 %823
          %825 = vrot.lane.b32.xlu0 %v678, 64
          %v826 = vpop.permute.xlu0 %825
          %827 = vrot.lane.b32.xlu0 %v683, 64
          %v828 = vpop.permute.xlu0 %827
          %829 = vrot.lane.b32.xlu0 %v686, 64
          %v830 = vpop.permute.xlu0 %829
          %831 = vrot.lane.b32.xlu0 %v691, 64
          %v832 = vpop.permute.xlu0 %831
          %833 = vrot.lane.b32.xlu0 %v694, 64
          %v834 = vpop.permute.xlu0 %833
          %835 = vrot.lane.b32.xlu0 %v699, 64
          %v836 = vpop.permute.xlu0 %835
          %837 = vrot.lane.b32.xlu0 %v702, 64
          %v838 = vpop.permute.xlu0 %837
          %839 = vrot.lane.b32.xlu0 %v707, 64
          %v840 = vpop.permute.xlu0 %839
          %841 = vrot.lane.b32.xlu0 %v710, 64
          %v842 = vpop.permute.xlu0 %841
          %843 = vrot.lane.b32.xlu0 %v715, 64
          %v844 = vpop.permute.xlu0 %843
          %845 = vrot.lane.b32.xlu0 %v718, 64
          %v846 = vpop.permute.xlu0 %845
          %847 = vrot.lane.b32.xlu0 %v723, 64
          %v848 = vpop.permute.xlu0 %847
          %849 = vrot.lane.b32.xlu0 %v726, 64
          %v850 = vpop.permute.xlu0 %849
          %v867 = vsel %vm802, %v820, 0.0
          %v868 = vsel %vm802, %v822, 0.0
          %v869 = vsel %vm802, %v824, 0.0
          %v870 = vsel %vm802, %v826, 0.0
          %v871 = vsel %vm802, %v828, 0.0
          %v872 = vsel %vm802, %v830, 0.0
          %v873 = vsel %vm802, %v832, 0.0
          %v874 = vsel %vm802, %v834, 0.0
          %v875 = vsel %vm802, %v836, 0.0
          %v876 = vsel %vm802, %v838, 0.0
          %v877 = vsel %vm802, %v840, 0.0
          %v878 = vsel %vm802, %v842, 0.0
          %v879 = vsel %vm802, %v844, 0.0
          %v880 = vsel %vm802, %v846, 0.0
          %v881 = vsel %vm802, %v848, 0.0
          %v882 = vsel %vm802, %v850, 0.0
          %v883 = vsel %vm607, %v867, 0.0
          %884 = vadd.xlane.f32.xlu0 %v883
          %v885 = vpop.xlane.xlu0 %884
          %v886 = vsel %vm607, %v868, 0.0
          %887 = vadd.xlane.f32.xlu0 %v886
          %v888 = vpop.xlane.xlu0 %887
          %v889 = vsel %vm607, %v869, 0.0
          %890 = vadd.xlane.f32.xlu0 %v889
          %v891 = vpop.xlane.xlu0 %890
          %v892 = vsel %vm607, %v870, 0.0
          %893 = vadd.xlane.f32.xlu0 %v892
          %v894 = vpop.xlane.xlu0 %893
          %v895 = vsel %vm607, %v871, 0.0
          %896 = vadd.xlane.f32.xlu0 %v895
          %v897 = vpop.xlane.xlu0 %896
          %v898 = vsel %vm607, %v872, 0.0
          %899 = vadd.xlane.f32.xlu0 %v898
          %v900 = vpop.xlane.xlu0 %899
          %v901 = vsel %vm607, %v873, 0.0
          %902 = vadd.xlane.f32.xlu0 %v901
          %v903 = vpop.xlane.xlu0 %902
          %v904 = vsel %vm607, %v874, 0.0
          %905 = vadd.xlane.f32.xlu0 %v904
          %v906 = vpop.xlane.xlu0 %905
          %v907 = vsel %vm607, %v875, 0.0
          %908 = vadd.xlane.f32.xlu0 %v907
          %v909 = vpop.xlane.xlu0 %908
          %v910 = vsel %vm607, %v876, 0.0
          %911 = vadd.xlane.f32.xlu0 %v910
          %v912 = vpop.xlane.xlu0 %911
          %v913 = vsel %vm607, %v877, 0.0
          %914 = vadd.xlane.f32.xlu0 %v913
          %v915 = vpop.xlane.xlu0 %914
          %v916 = vsel %vm607, %v878, 0.0
          %917 = vadd.xlane.f32.xlu0 %v916
          %v918 = vpop.xlane.xlu0 %917
          %v919 = vsel %vm607, %v879, 0.0
          %920 = vadd.xlane.f32.xlu0 %v919
          %v921 = vpop.xlane.xlu0 %920
          %v922 = vsel %vm607, %v880, 0.0
          %923 = vadd.xlane.f32.xlu0 %v922
          %v924 = vpop.xlane.xlu0 %923
          %v925 = vsel %vm607, %v881, 0.0
          %926 = vadd.xlane.f32.xlu0 %v925
          %v927 = vpop.xlane.xlu0 %926
          %v928 = vsel %vm607, %v882, 0.0
          %929 = vadd.xlane.f32.xlu0 %v928
          %v930 = vpop.xlane.xlu0 %929
          %s931 = scalar_lea.vmem [#allocation2], %s780
          %v932 = vld [vmem:[%s931] sm:$0x1]
          %v933 = vlaneseq
          %v934 = vshrl.u32 %v933, 7
          %v935 = vsub.s32 0, %v934
          %v936 = vrot.slane %v932, %v935
          %v937 = vadd.f32 %v885, %v936
          %v938 = vadd.f32 %v888, %v936
          %v939 = vadd.f32 %v891, %v936
          %v940 = vadd.f32 %v894, %v936
          %v941 = vadd.f32 %v897, %v936
          %v942 = vadd.f32 %v900, %v936
          %v943 = vadd.f32 %v903, %v936
          %v944 = vadd.f32 %v906, %v936
          %v945 = vadd.f32 %v909, %v936
          %v946 = vadd.f32 %v912, %v936
          %v947 = vadd.f32 %v915, %v936
          %v948 = vadd.f32 %v918, %v936
          %v949 = vadd.f32 %v921, %v936
          %v950 = vadd.f32 %v924, %v936
          %v951 = vadd.f32 %v927, %v936
          %v952 = vadd.f32 %v930, %v936
          %vm953 = vcmp.gt.f32.partialorder %v937, 0.0
          %vm954 = vcmp.gt.f32.partialorder %v938, 0.0
          %vm955 = vcmp.gt.f32.partialorder %v939, 0.0
          %vm956 = vcmp.gt.f32.partialorder %v940, 0.0
          %vm957 = vcmp.gt.f32.partialorder %v941, 0.0
          %vm958 = vcmp.gt.f32.partialorder %v942, 0.0
          %vm959 = vcmp.gt.f32.partialorder %v943, 0.0
          %vm960 = vcmp.gt.f32.partialorder %v944, 0.0
          %vm961 = vcmp.gt.f32.partialorder %v945, 0.0
          %vm962 = vcmp.gt.f32.partialorder %v946, 0.0
          %vm963 = vcmp.gt.f32.partialorder %v947, 0.0
          %vm964 = vcmp.gt.f32.partialorder %v948, 0.0
          %vm965 = vcmp.gt.f32.partialorder %v949, 0.0
          %vm966 = vcmp.gt.f32.partialorder %v950, 0.0
          %vm967 = vcmp.gt.f32.partialorder %v951, 0.0
          %vm968 = vcmp.gt.f32.partialorder %v952, 0.0
          %v969 = vmul.f32 %v937, 0.2
          %v970 = vmul.f32 %v938, 0.2
          %v971 = vmul.f32 %v939, 0.2
          %v972 = vmul.f32 %v940, 0.2
          %v973 = vmul.f32 %v941, 0.2
          %v974 = vmul.f32 %v942, 0.2
          %v975 = vmul.f32 %v943, 0.2
          %v976 = vmul.f32 %v944, 0.2
          %v977 = vmul.f32 %v945, 0.2
          %v978 = vmul.f32 %v946, 0.2
          %v979 = vmul.f32 %v947, 0.2
          %v980 = vmul.f32 %v948, 0.2
          %v981 = vmul.f32 %v949, 0.2
          %v982 = vmul.f32 %v950, 0.2
          %v983 = vmul.f32 %v951, 0.2
          %v984 = vmul.f32 %v952, 0.2
          %v985 = vsel %vm953, %v937, %v969
          %v986 = vsel %vm954, %v938, %v970
          %v987 = vsel %vm955, %v939, %v971
          %v988 = vsel %vm956, %v940, %v972
          %v989 = vsel %vm957, %v941, %v973
          %v990 = vsel %vm958, %v942, %v974
          %v991 = vsel %vm959, %v943, %v975
          %v992 = vsel %vm960, %v944, %v976
          %v993 = vsel %vm961, %v945, %v977
          %v994 = vsel %vm962, %v946, %v978
          %v995 = vsel %vm963, %v947, %v979
          %v996 = vsel %vm964, %v948, %v980
          %v997 = vsel %vm965, %v949, %v981
          %v998 = vsel %vm966, %v950, %v982
          %v999 = vsel %vm967, %v951, %v983
          %v1000 = vsel %vm968, %v952, %v984
          %s1001 = sld [smem:[#allocation3 + %s780]]
          %v1002 = vstv %s1001
          %v1003 = vmul.f32 %v1002, %v985
          %v1004 = vmul.f32 %v1002, %v986
          %v1005 = vmul.f32 %v1002, %v987
          %v1006 = vmul.f32 %v1002, %v988
          %v1007 = vmul.f32 %v1002, %v989
          %v1008 = vmul.f32 %v1002, %v990
          %v1009 = vmul.f32 %v1002, %v991
          %v1010 = vmul.f32 %v1002, %v992
          %v1011 = vmul.f32 %v1002, %v993
          %v1012 = vmul.f32 %v1002, %v994
          %v1013 = vmul.f32 %v1002, %v995
          %v1014 = vmul.f32 %v1002, %v996
          %v1015 = vmul.f32 %v1002, %v997
          %v1016 = vmul.f32 %v1002, %v998
          %v1017 = vmul.f32 %v1002, %v999
          %v1018 = vmul.f32 %v1002, %v1000
          %v1019 = vadd.f32 %v785, %v1003
          %v1020 = vadd.f32 %v786, %v1004
          %v1021 = vadd.f32 %v787, %v1005
          %v1022 = vadd.f32 %v788, %v1006
          %v1023 = vadd.f32 %v789, %v1007
          %v1024 = vadd.f32 %v790, %v1008
          %v1025 = vadd.f32 %v791, %v1009
          %v1026 = vadd.f32 %v792, %v1010
          %v1027 = vadd.f32 %v793, %v1011
          %v1028 = vadd.f32 %v794, %v1012
          %v1029 = vadd.f32 %v795, %v1013
          %v1030 = vadd.f32 %v796, %v1014
          %v1031 = vadd.f32 %v797, %v1015
          %v1032 = vadd.f32 %v798, %v1016
          %v1033 = vadd.f32 %v799, %v1017
          %v1034 = vadd.f32 %v800, %v1018
        $region93: #{gnn6_forward.1} parent=75 // loop_footer
          %s784 = sadd.s32 1, %s780
        $region94: #{gnn6_forward.1} parent=75 // loop_footer_branch
          %779 = sbr.rel target = $region90
        $region95: #{gnn6_forward.1} parent=75 // loop_exit
          _
        %1035 = vmax.xlane.f32.xlu0 %v785
        %v1036 = vpop.xlane.xlu0 %1035
        %1037 = vmax.xlane.f32.xlu0 %v786
        %v1038 = vpop.xlane.xlu0 %1037
        %1039 = vmax.xlane.f32.xlu0 %v787
        %v1040 = vpop.xlane.xlu0 %1039
        %1041 = vmax.xlane.f32.xlu0 %v788
        %v1042 = vpop.xlane.xlu0 %1041
        %1043 = vmax.xlane.f32.xlu0 %v789
        %v1044 = vpop.xlane.xlu0 %1043
        %1045 = vmax.xlane.f32.xlu0 %v790
        %v1046 = vpop.xlane.xlu0 %1045
        %1047 = vmax.xlane.f32.xlu0 %v791
        %v1048 = vpop.xlane.xlu0 %1047
        %1049 = vmax.xlane.f32.xlu0 %v792
        %v1050 = vpop.xlane.xlu0 %1049
        %1051 = vmax.xlane.f32.xlu0 %v793
        %v1052 = vpop.xlane.xlu0 %1051
        %1053 = vmax.xlane.f32.xlu0 %v794
        %v1054 = vpop.xlane.xlu0 %1053
        %1055 = vmax.xlane.f32.xlu0 %v795
        %v1056 = vpop.xlane.xlu0 %1055
        %1057 = vmax.xlane.f32.xlu0 %v796
        %v1058 = vpop.xlane.xlu0 %1057
        %1059 = vmax.xlane.f32.xlu0 %v797
        %v1060 = vpop.xlane.xlu0 %1059
        %1061 = vmax.xlane.f32.xlu0 %v798
        %v1062 = vpop.xlane.xlu0 %1061
        %1063 = vmax.xlane.f32.xlu0 %v799
        %v1064 = vpop.xlane.xlu0 %1063
        %1065 = vmax.xlane.f32.xlu0 %v800
        %v1066 = vpop.xlane.xlu0 %1065
        %v1067 = vsub.f32 %v785, %v1036
        %v1068 = vsub.f32 %v786, %v1038
        %v1069 = vsub.f32 %v787, %v1040
        %v1070 = vsub.f32 %v788, %v1042
        %v1071 = vsub.f32 %v789, %v1044
        %v1072 = vsub.f32 %v790, %v1046
        %v1073 = vsub.f32 %v791, %v1048
        %v1074 = vsub.f32 %v792, %v1050
        %v1075 = vsub.f32 %v793, %v1052
        %v1076 = vsub.f32 %v794, %v1054
        %v1077 = vsub.f32 %v795, %v1056
        %v1078 = vsub.f32 %v796, %v1058
        %v1079 = vsub.f32 %v797, %v1060
        %v1080 = vsub.f32 %v798, %v1062
        %v1081 = vsub.f32 %v799, %v1064
        %v1082 = vsub.f32 %v800, %v1066
        %v1083 = vmul.f32 %v1067, 1.442695
        %v1084 = vpow.pop %v1083
        %v1085 = vmul.f32 %v1068, 1.442695
        %v1086 = vpow.pop %v1085
        %v1087 = vmul.f32 %v1069, 1.442695
        %v1088 = vpow.pop %v1087
        %v1089 = vmul.f32 %v1070, 1.442695
        %v1090 = vpow.pop %v1089
        %v1091 = vmul.f32 %v1071, 1.442695
        %v1092 = vpow.pop %v1091
        %v1093 = vmul.f32 %v1072, 1.442695
        %v1094 = vpow.pop %v1093
        %v1095 = vmul.f32 %v1073, 1.442695
        %v1096 = vpow.pop %v1095
        %v1097 = vmul.f32 %v1074, 1.442695
        %v1098 = vpow.pop %v1097
        %v1099 = vmul.f32 %v1075, 1.442695
        %v1100 = vpow.pop %v1099
        %v1101 = vmul.f32 %v1076, 1.442695
        %v1102 = vpow.pop %v1101
        %v1103 = vmul.f32 %v1077, 1.442695
        %v1104 = vpow.pop %v1103
        %v1105 = vmul.f32 %v1078, 1.442695
        %v1106 = vpow.pop %v1105
        %v1107 = vmul.f32 %v1079, 1.442695
        %v1108 = vpow.pop %v1107
        %v1109 = vmul.f32 %v1080, 1.442695
        %v1110 = vpow.pop %v1109
        %v1111 = vmul.f32 %v1081, 1.442695
        %v1112 = vpow.pop %v1111
        %v1113 = vmul.f32 %v1082, 1.442695
        %v1114 = vpow.pop %v1113
        %v1115 = vmul.f32 %v1084, %v544
        %v1116 = vmul.f32 %v1086, %v545
        %v1117 = vmul.f32 %v1088, %v546
        %v1118 = vmul.f32 %v1090, %v547
        %v1119 = vmul.f32 %v1092, %v548
        %v1120 = vmul.f32 %v1094, %v549
        %v1121 = vmul.f32 %v1096, %v550
        %v1122 = vmul.f32 %v1098, %v551
        %v1123 = vmul.f32 %v1100, %v552
        %v1124 = vmul.f32 %v1102, %v553
        %v1125 = vmul.f32 %v1104, %v554
        %v1126 = vmul.f32 %v1106, %v555
        %v1127 = vmul.f32 %v1108, %v556
        %v1128 = vmul.f32 %v1110, %v557
        %v1129 = vmul.f32 %v1112, %v558
        %v1130 = vmul.f32 %v1114, %v559
        %1131 = vadd.xlane.f32.xlu0 %v1115
        %v1132 = vpop.xlane.xlu0 %1131
        %1133 = vadd.xlane.f32.xlu0 %v1116
        %v1134 = vpop.xlane.xlu0 %1133
        %1135 = vadd.xlane.f32.xlu0 %v1117
        %v1136 = vpop.xlane.xlu0 %1135
        %1137 = vadd.xlane.f32.xlu0 %v1118
        %v1138 = vpop.xlane.xlu0 %1137
        %1139 = vadd.xlane.f32.xlu0 %v1119
        %v1140 = vpop.xlane.xlu0 %1139
        %1141 = vadd.xlane.f32.xlu0 %v1120
        %v1142 = vpop.xlane.xlu0 %1141
        %1143 = vadd.xlane.f32.xlu0 %v1121
        %v1144 = vpop.xlane.xlu0 %1143
        %1145 = vadd.xlane.f32.xlu0 %v1122
        %v1146 = vpop.xlane.xlu0 %1145
        %1147 = vadd.xlane.f32.xlu0 %v1123
        %v1148 = vpop.xlane.xlu0 %1147
        %1149 = vadd.xlane.f32.xlu0 %v1124
        %v1150 = vpop.xlane.xlu0 %1149
        %1151 = vadd.xlane.f32.xlu0 %v1125
        %v1152 = vpop.xlane.xlu0 %1151
        %1153 = vadd.xlane.f32.xlu0 %v1126
        %v1154 = vpop.xlane.xlu0 %1153
        %1155 = vadd.xlane.f32.xlu0 %v1127
        %v1156 = vpop.xlane.xlu0 %1155
        %1157 = vadd.xlane.f32.xlu0 %v1128
        %v1158 = vpop.xlane.xlu0 %1157
        %1159 = vadd.xlane.f32.xlu0 %v1129
        %v1160 = vpop.xlane.xlu0 %1159
        %1161 = vadd.xlane.f32.xlu0 %v1130
        %v1162 = vpop.xlane.xlu0 %1161
        %v1163 = vmax.f32 %v1132, 1e-20
        %v1164 = vmax.f32 %v1134, 1e-20
        %v1165 = vmax.f32 %v1136, 1e-20
        %v1166 = vmax.f32 %v1138, 1e-20
        %v1167 = vmax.f32 %v1140, 1e-20
        %v1168 = vmax.f32 %v1142, 1e-20
        %v1169 = vmax.f32 %v1144, 1e-20
        %v1170 = vmax.f32 %v1146, 1e-20
        %v1171 = vmax.f32 %v1148, 1e-20
        %v1172 = vmax.f32 %v1150, 1e-20
        %v1173 = vmax.f32 %v1152, 1e-20
        %v1174 = vmax.f32 %v1154, 1e-20
        %v1175 = vmax.f32 %v1156, 1e-20
        %v1176 = vmax.f32 %v1158, 1e-20
        %v1177 = vmax.f32 %v1160, 1e-20
        %v1178 = vmax.f32 %v1162, 1e-20
        %v1179 = vrcp.pop %v1163
        %v1180 = vrcp.pop %v1164
        %v1181 = vrcp.pop %v1165
        %v1182 = vrcp.pop %v1166
        %v1183 = vrcp.pop %v1167
        %v1184 = vrcp.pop %v1168
        %v1185 = vrcp.pop %v1169
        %v1186 = vrcp.pop %v1170
        %v1187 = vrcp.pop %v1171
        %v1188 = vrcp.pop %v1172
        %v1189 = vrcp.pop %v1173
        %v1190 = vrcp.pop %v1174
        %v1191 = vrcp.pop %v1175
        %v1192 = vrcp.pop %v1176
        %v1193 = vrcp.pop %v1177
        %v1194 = vrcp.pop %v1178
        %v1195 = vmul.f32 %v1115, %v1179
        %v1196 = vmul.f32 %v1116, %v1180
        %v1197 = vmul.f32 %v1117, %v1181
        %v1198 = vmul.f32 %v1118, %v1182
        %v1199 = vmul.f32 %v1119, %v1183
        %v1200 = vmul.f32 %v1120, %v1184
        %v1201 = vmul.f32 %v1121, %v1185
        %v1202 = vmul.f32 %v1122, %v1186
        %v1203 = vmul.f32 %v1123, %v1187
        %v1204 = vmul.f32 %v1124, %v1188
        %v1205 = vmul.f32 %v1125, %v1189
        %v1206 = vmul.f32 %v1126, %v1190
        %v1207 = vmul.f32 %v1127, %v1191
        %v1208 = vmul.f32 %v1128, %v1192
        %v1209 = vmul.f32 %v1129, %v1193
        %v1210 = vmul.f32 %v1130, %v1194
        %v1211 = vpack.c.bf16 %v1196, %v1195
        %v1212 = vpack.c.bf16 %v1198, %v1197
        %v1213 = vpack.c.bf16 %v1200, %v1199
        %v1214 = vpack.c.bf16 %v1202, %v1201
        %v1215 = vpack.c.bf16 %v1204, %v1203
        %v1216 = vpack.c.bf16 %v1206, %v1205
        %v1217 = vpack.c.bf16 %v1208, %v1207
        %v1218 = vpack.c.bf16 %v1210, %v1209
        %v1219 = vpack.c.bf16 %v670, %v667
        %v1220 = vpack.c.bf16 %v678, %v675
        %v1221 = vpack.c.bf16 %v686, %v683
        %v1222 = vpack.c.bf16 %v694, %v691
        %v1223 = vpack.c.bf16 %v702, %v699
        %v1224 = vpack.c.bf16 %v710, %v707
        %v1225 = vpack.c.bf16 %v718, %v715
        %v1226 = vpack.c.bf16 %v726, %v723
        loop: start=0, step=1, limit=32
        $region96: #{gnn6_forward.1} parent=75 // loop_pre_header
          _
        $region97: #{gnn6_forward.1} parent=75 // loop_header
          %s1228 = sphi 0, %s1232
          %p1229 = scmp.ge.s32.totalorder %s1228, 32
          %v1233 = vphi 0.0, %v1475
          %v1234 = vphi 0.0, %v1476
          %v1235 = vphi 0.0, %v1477
          %v1236 = vphi 0.0, %v1478
          %v1237 = vphi 0.0, %v1479
          %v1238 = vphi 0.0, %v1480
          %v1239 = vphi 0.0, %v1481
          %v1240 = vphi 0.0, %v1482
          %v1241 = vphi 0.0, %v1483
          %v1242 = vphi 0.0, %v1484
          %v1243 = vphi 0.0, %v1485
          %v1244 = vphi 0.0, %v1486
          %v1245 = vphi 0.0, %v1487
          %v1246 = vphi 0.0, %v1488
          %v1247 = vphi 0.0, %v1489
          %v1248 = vphi 0.0, %v1490
        $region98: #{gnn6_forward.1} parent=75 // loop_header_branch
          %1231 = sbr.rel (%p1229) target = $region102
        $region99: #{gnn6_forward.1} parent=75 // loop_body
          %v1249 = vstv %s1228
          %vm1250 = vcmp.eq.s32.totalorder %v778, %v1249
          %1267 = vrot.lane.b32.xlu0 %v667, 32
          %v1268 = vpop.permute.xlu0 %1267
          %1269 = vrot.lane.b32.xlu0 %v670, 32
          %v1270 = vpop.permute.xlu0 %1269
          %1271 = vrot.lane.b32.xlu0 %v675, 32
          %v1272 = vpop.permute.xlu0 %1271
          %1273 = vrot.lane.b32.xlu0 %v678, 32
          %v1274 = vpop.permute.xlu0 %1273
          %1275 = vrot.lane.b32.xlu0 %v683, 32
          %v1276 = vpop.permute.xlu0 %1275
          %1277 = vrot.lane.b32.xlu0 %v686, 32
          %v1278 = vpop.permute.xlu0 %1277
          %1279 = vrot.lane.b32.xlu0 %v691, 32
          %v1280 = vpop.permute.xlu0 %1279
          %1281 = vrot.lane.b32.xlu0 %v694, 32
          %v1282 = vpop.permute.xlu0 %1281
          %1283 = vrot.lane.b32.xlu0 %v699, 32
          %v1284 = vpop.permute.xlu0 %1283
          %1285 = vrot.lane.b32.xlu0 %v702, 32
          %v1286 = vpop.permute.xlu0 %1285
          %1287 = vrot.lane.b32.xlu0 %v707, 32
          %v1288 = vpop.permute.xlu0 %1287
          %1289 = vrot.lane.b32.xlu0 %v710, 32
          %v1290 = vpop.permute.xlu0 %1289
          %1291 = vrot.lane.b32.xlu0 %v715, 32
          %v1292 = vpop.permute.xlu0 %1291
          %1293 = vrot.lane.b32.xlu0 %v718, 32
          %v1294 = vpop.permute.xlu0 %1293
          %1295 = vrot.lane.b32.xlu0 %v723, 32
          %v1296 = vpop.permute.xlu0 %1295
          %1297 = vrot.lane.b32.xlu0 %v726, 32
          %v1298 = vpop.permute.xlu0 %1297
          %v1315 = vsel %vm1250, %v1268, 0.0
          %v1316 = vsel %vm1250, %v1270, 0.0
          %v1317 = vsel %vm1250, %v1272, 0.0
          %v1318 = vsel %vm1250, %v1274, 0.0
          %v1319 = vsel %vm1250, %v1276, 0.0
          %v1320 = vsel %vm1250, %v1278, 0.0
          %v1321 = vsel %vm1250, %v1280, 0.0
          %v1322 = vsel %vm1250, %v1282, 0.0
          %v1323 = vsel %vm1250, %v1284, 0.0
          %v1324 = vsel %vm1250, %v1286, 0.0
          %v1325 = vsel %vm1250, %v1288, 0.0
          %v1326 = vsel %vm1250, %v1290, 0.0
          %v1327 = vsel %vm1250, %v1292, 0.0
          %v1328 = vsel %vm1250, %v1294, 0.0
          %v1329 = vsel %vm1250, %v1296, 0.0
          %v1330 = vsel %vm1250, %v1298, 0.0
          %v1331 = vsel %vm607, %v1315, 0.0
          %1332 = vadd.xlane.f32.xlu0 %v1331
          %v1333 = vpop.xlane.xlu0 %1332
          %v1334 = vsel %vm607, %v1316, 0.0
          %1335 = vadd.xlane.f32.xlu0 %v1334
          %v1336 = vpop.xlane.xlu0 %1335
          %v1337 = vsel %vm607, %v1317, 0.0
          %1338 = vadd.xlane.f32.xlu0 %v1337
          %v1339 = vpop.xlane.xlu0 %1338
          %v1340 = vsel %vm607, %v1318, 0.0
          %1341 = vadd.xlane.f32.xlu0 %v1340
          %v1342 = vpop.xlane.xlu0 %1341
          %v1343 = vsel %vm607, %v1319, 0.0
          %1344 = vadd.xlane.f32.xlu0 %v1343
          %v1345 = vpop.xlane.xlu0 %1344
          %v1346 = vsel %vm607, %v1320, 0.0
          %1347 = vadd.xlane.f32.xlu0 %v1346
          %v1348 = vpop.xlane.xlu0 %1347
          %v1349 = vsel %vm607, %v1321, 0.0
          %1350 = vadd.xlane.f32.xlu0 %v1349
          %v1351 = vpop.xlane.xlu0 %1350
          %v1352 = vsel %vm607, %v1322, 0.0
          %1353 = vadd.xlane.f32.xlu0 %v1352
          %v1354 = vpop.xlane.xlu0 %1353
          %v1355 = vsel %vm607, %v1323, 0.0
          %1356 = vadd.xlane.f32.xlu0 %v1355
          %v1357 = vpop.xlane.xlu0 %1356
          %v1358 = vsel %vm607, %v1324, 0.0
          %1359 = vadd.xlane.f32.xlu0 %v1358
          %v1360 = vpop.xlane.xlu0 %1359
          %v1361 = vsel %vm607, %v1325, 0.0
          %1362 = vadd.xlane.f32.xlu0 %v1361
          %v1363 = vpop.xlane.xlu0 %1362
          %v1364 = vsel %vm607, %v1326, 0.0
          %1365 = vadd.xlane.f32.xlu0 %v1364
          %v1366 = vpop.xlane.xlu0 %1365
          %v1367 = vsel %vm607, %v1327, 0.0
          %1368 = vadd.xlane.f32.xlu0 %v1367
          %v1369 = vpop.xlane.xlu0 %1368
          %v1370 = vsel %vm607, %v1328, 0.0
          %1371 = vadd.xlane.f32.xlu0 %v1370
          %v1372 = vpop.xlane.xlu0 %1371
          %v1373 = vsel %vm607, %v1329, 0.0
          %1374 = vadd.xlane.f32.xlu0 %v1373
          %v1375 = vpop.xlane.xlu0 %1374
          %v1376 = vsel %vm607, %v1330, 0.0
          %1377 = vadd.xlane.f32.xlu0 %v1376
          %v1378 = vpop.xlane.xlu0 %1377
          %s1379 = sadd.s32 %s1228, 32
          %s1380 = scalar_lea.vmem [#allocation2], %s1379
          %v1381 = vld [vmem:[%s1380] sm:$0x1]
          %v1382 = vlaneseq
          %v1383 = vshrl.u32 %v1382, 7
          %v1384 = vsub.s32 0, %v1383
          %v1385 = vrot.slane %v1381, %v1384
          %v1386 = vadd.f32 %v1333, %v1385
          %v1387 = vadd.f32 %v1336, %v1385
          %v1388 = vadd.f32 %v1339, %v1385
          %v1389 = vadd.f32 %v1342, %v1385
          %v1390 = vadd.f32 %v1345, %v1385
          %v1391 = vadd.f32 %v1348, %v1385
          %v1392 = vadd.f32 %v1351, %v1385
          %v1393 = vadd.f32 %v1354, %v1385
          %v1394 = vadd.f32 %v1357, %v1385
          %v1395 = vadd.f32 %v1360, %v1385
          %v1396 = vadd.f32 %v1363, %v1385
          %v1397 = vadd.f32 %v1366, %v1385
          %v1398 = vadd.f32 %v1369, %v1385
          %v1399 = vadd.f32 %v1372, %v1385
          %v1400 = vadd.f32 %v1375, %v1385
          %v1401 = vadd.f32 %v1378, %v1385
          %vm1402 = vcmp.gt.f32.partialorder %v1386, 0.0
          %vm1403 = vcmp.gt.f32.partialorder %v1387, 0.0
          %vm1404 = vcmp.gt.f32.partialorder %v1388, 0.0
          %vm1405 = vcmp.gt.f32.partialorder %v1389, 0.0
          %vm1406 = vcmp.gt.f32.partialorder %v1390, 0.0
          %vm1407 = vcmp.gt.f32.partialorder %v1391, 0.0
          %vm1408 = vcmp.gt.f32.partialorder %v1392, 0.0
          %vm1409 = vcmp.gt.f32.partialorder %v1393, 0.0
          %vm1410 = vcmp.gt.f32.partialorder %v1394, 0.0
          %vm1411 = vcmp.gt.f32.partialorder %v1395, 0.0
          %vm1412 = vcmp.gt.f32.partialorder %v1396, 0.0
          %vm1413 = vcmp.gt.f32.partialorder %v1397, 0.0
          %vm1414 = vcmp.gt.f32.partialorder %v1398, 0.0
          %vm1415 = vcmp.gt.f32.partialorder %v1399, 0.0
          %vm1416 = vcmp.gt.f32.partialorder %v1400, 0.0
          %vm1417 = vcmp.gt.f32.partialorder %v1401, 0.0
          %v1418 = vmul.f32 %v1386, 0.2
          %v1419 = vmul.f32 %v1387, 0.2
          %v1420 = vmul.f32 %v1388, 0.2
          %v1421 = vmul.f32 %v1389, 0.2
          %v1422 = vmul.f32 %v1390, 0.2
          %v1423 = vmul.f32 %v1391, 0.2
          %v1424 = vmul.f32 %v1392, 0.2
          %v1425 = vmul.f32 %v1393, 0.2
          %v1426 = vmul.f32 %v1394, 0.2
          %v1427 = vmul.f32 %v1395, 0.2
          %v1428 = vmul.f32 %v1396, 0.2
          %v1429 = vmul.f32 %v1397, 0.2
          %v1430 = vmul.f32 %v1398, 0.2
          %v1431 = vmul.f32 %v1399, 0.2
          %v1432 = vmul.f32 %v1400, 0.2
          %v1433 = vmul.f32 %v1401, 0.2
          %v1434 = vsel %vm1402, %v1386, %v1418
          %v1435 = vsel %vm1403, %v1387, %v1419
          %v1436 = vsel %vm1404, %v1388, %v1420
          %v1437 = vsel %vm1405, %v1389, %v1421
          %v1438 = vsel %vm1406, %v1390, %v1422
          %v1439 = vsel %vm1407, %v1391, %v1423
          %v1440 = vsel %vm1408, %v1392, %v1424
          %v1441 = vsel %vm1409, %v1393, %v1425
          %v1442 = vsel %vm1410, %v1394, %v1426
          %v1443 = vsel %vm1411, %v1395, %v1427
          %v1444 = vsel %vm1412, %v1396, %v1428
          %v1445 = vsel %vm1413, %v1397, %v1429
          %v1446 = vsel %vm1414, %v1398, %v1430
          %v1447 = vsel %vm1415, %v1399, %v1431
          %v1448 = vsel %vm1416, %v1400, %v1432
          %v1449 = vsel %vm1417, %v1401, %v1433
          %s1450 = sshra.s32 %s1228, 7
          %s1451 = sand.u32 %s1228, 127
          %s1452 = sadd.s32 %s1450, 1
          %s1453 = smul.u32 %s1452, 128
          %s1454 = sshra.s32 %s1228, 7
          %s1455 = sand.u32 %s1228, 127
          %s1456 = sadd.s32 %s1453, %s1455
          %s1457 = sld [smem:[#allocation3 + %s1456]]
          %v1458 = vstv %s1457
          %v1459 = vmul.f32 %v1458, %v1434
          %v1460 = vmul.f32 %v1458, %v1435
          %v1461 = vmul.f32 %v1458, %v1436
          %v1462 = vmul.f32 %v1458, %v1437
          %v1463 = vmul.f32 %v1458, %v1438
          %v1464 = vmul.f32 %v1458, %v1439
          %v1465 = vmul.f32 %v1458, %v1440
          %v1466 = vmul.f32 %v1458, %v1441
          %v1467 = vmul.f32 %v1458, %v1442
          %v1468 = vmul.f32 %v1458, %v1443
          %v1469 = vmul.f32 %v1458, %v1444
          %v1470 = vmul.f32 %v1458, %v1445
          %v1471 = vmul.f32 %v1458, %v1446
          %v1472 = vmul.f32 %v1458, %v1447
          %v1473 = vmul.f32 %v1458, %v1448
          %v1474 = vmul.f32 %v1458, %v1449
          %v1475 = vadd.f32 %v1233, %v1459
          %v1476 = vadd.f32 %v1234, %v1460
          %v1477 = vadd.f32 %v1235, %v1461
          %v1478 = vadd.f32 %v1236, %v1462
          %v1479 = vadd.f32 %v1237, %v1463
          %v1480 = vadd.f32 %v1238, %v1464
          %v1481 = vadd.f32 %v1239, %v1465
          %v1482 = vadd.f32 %v1240, %v1466
          %v1483 = vadd.f32 %v1241, %v1467
          %v1484 = vadd.f32 %v1242, %v1468
          %v1485 = vadd.f32 %v1243, %v1469
          %v1486 = vadd.f32 %v1244, %v1470
          %v1487 = vadd.f32 %v1245, %v1471
          %v1488 = vadd.f32 %v1246, %v1472
          %v1489 = vadd.f32 %v1247, %v1473
          %v1490 = vadd.f32 %v1248, %v1474
        $region100: #{gnn6_forward.1} parent=75 // loop_footer
          %s1232 = sadd.s32 1, %s1228
        $region101: #{gnn6_forward.1} parent=75 // loop_footer_branch
          %1227 = sbr.rel target = $region97
        $region102: #{gnn6_forward.1} parent=75 // loop_exit
          _
        %1491 = vmax.xlane.f32.xlu0 %v1233
        %v1492 = vpop.xlane.xlu0 %1491
        %1493 = vmax.xlane.f32.xlu0 %v1234
        %v1494 = vpop.xlane.xlu0 %1493
        %1495 = vmax.xlane.f32.xlu0 %v1235
        %v1496 = vpop.xlane.xlu0 %1495
        %1497 = vmax.xlane.f32.xlu0 %v1236
        %v1498 = vpop.xlane.xlu0 %1497
        %1499 = vmax.xlane.f32.xlu0 %v1237
        %v1500 = vpop.xlane.xlu0 %1499
        %1501 = vmax.xlane.f32.xlu0 %v1238
        %v1502 = vpop.xlane.xlu0 %1501
        %1503 = vmax.xlane.f32.xlu0 %v1239
        %v1504 = vpop.xlane.xlu0 %1503
        %1505 = vmax.xlane.f32.xlu0 %v1240
        %v1506 = vpop.xlane.xlu0 %1505
        %1507 = vmax.xlane.f32.xlu0 %v1241
        %v1508 = vpop.xlane.xlu0 %1507
        %1509 = vmax.xlane.f32.xlu0 %v1242
        %v1510 = vpop.xlane.xlu0 %1509
        %1511 = vmax.xlane.f32.xlu0 %v1243
        %v1512 = vpop.xlane.xlu0 %1511
        %1513 = vmax.xlane.f32.xlu0 %v1244
        %v1514 = vpop.xlane.xlu0 %1513
        %1515 = vmax.xlane.f32.xlu0 %v1245
        %v1516 = vpop.xlane.xlu0 %1515
        %1517 = vmax.xlane.f32.xlu0 %v1246
        %v1518 = vpop.xlane.xlu0 %1517
        %1519 = vmax.xlane.f32.xlu0 %v1247
        %v1520 = vpop.xlane.xlu0 %1519
        %1521 = vmax.xlane.f32.xlu0 %v1248
        %v1522 = vpop.xlane.xlu0 %1521
        %v1523 = vsub.f32 %v1233, %v1492
        %v1524 = vsub.f32 %v1234, %v1494
        %v1525 = vsub.f32 %v1235, %v1496
        %v1526 = vsub.f32 %v1236, %v1498
        %v1527 = vsub.f32 %v1237, %v1500
        %v1528 = vsub.f32 %v1238, %v1502
        %v1529 = vsub.f32 %v1239, %v1504
        %v1530 = vsub.f32 %v1240, %v1506
        %v1531 = vsub.f32 %v1241, %v1508
        %v1532 = vsub.f32 %v1242, %v1510
        %v1533 = vsub.f32 %v1243, %v1512
        %v1534 = vsub.f32 %v1244, %v1514
        %v1535 = vsub.f32 %v1245, %v1516
        %v1536 = vsub.f32 %v1246, %v1518
        %v1537 = vsub.f32 %v1247, %v1520
        %v1538 = vsub.f32 %v1248, %v1522
        %v1539 = vmul.f32 %v1523, 1.442695
        %v1540 = vpow.pop %v1539
        %v1541 = vmul.f32 %v1524, 1.442695
        %v1542 = vpow.pop %v1541
        %v1543 = vmul.f32 %v1525, 1.442695
        %v1544 = vpow.pop %v1543
        %v1545 = vmul.f32 %v1526, 1.442695
        %v1546 = vpow.pop %v1545
        %v1547 = vmul.f32 %v1527, 1.442695
        %v1548 = vpow.pop %v1547
        %v1549 = vmul.f32 %v1528, 1.442695
        %v1550 = vpow.pop %v1549
        %v1551 = vmul.f32 %v1529, 1.442695
        %v1552 = vpow.pop %v1551
        %v1553 = vmul.f32 %v1530, 1.442695
        %v1554 = vpow.pop %v1553
        %v1555 = vmul.f32 %v1531, 1.442695
        %v1556 = vpow.pop %v1555
        %v1557 = vmul.f32 %v1532, 1.442695
        %v1558 = vpow.pop %v1557
        %v1559 = vmul.f32 %v1533, 1.442695
        %v1560 = vpow.pop %v1559
        %v1561 = vmul.f32 %v1534, 1.442695
        %v1562 = vpow.pop %v1561
        %v1563 = vmul.f32 %v1535, 1.442695
        %v1564 = vpow.pop %v1563
        %v1565 = vmul.f32 %v1536, 1.442695
        %v1566 = vpow.pop %v1565
        %v1567 = vmul.f32 %v1537, 1.442695
        %v1568 = vpow.pop %v1567
        %v1569 = vmul.f32 %v1538, 1.442695
        %v1570 = vpow.pop %v1569
        %v1571 = vmul.f32 %v1540, %v544
        %v1572 = vmul.f32 %v1542, %v545
        %v1573 = vmul.f32 %v1544, %v546
        %v1574 = vmul.f32 %v1546, %v547
        %v1575 = vmul.f32 %v1548, %v548
        %v1576 = vmul.f32 %v1550, %v549
        %v1577 = vmul.f32 %v1552, %v550
        %v1578 = vmul.f32 %v1554, %v551
        %v1579 = vmul.f32 %v1556, %v552
        %v1580 = vmul.f32 %v1558, %v553
        %v1581 = vmul.f32 %v1560, %v554
        %v1582 = vmul.f32 %v1562, %v555
        %v1583 = vmul.f32 %v1564, %v556
        %v1584 = vmul.f32 %v1566, %v557
        %v1585 = vmul.f32 %v1568, %v558
        %v1586 = vmul.f32 %v1570, %v559
        %1587 = vadd.xlane.f32.xlu0 %v1571
        %v1588 = vpop.xlane.xlu0 %1587
        %1589 = vadd.xlane.f32.xlu0 %v1572
        %v1590 = vpop.xlane.xlu0 %1589
        %1591 = vadd.xlane.f32.xlu0 %v1573
        %v1592 = vpop.xlane.xlu0 %1591
        %1593 = vadd.xlane.f32.xlu0 %v1574
        %v1594 = vpop.xlane.xlu0 %1593
        %1595 = vadd.xlane.f32.xlu0 %v1575
        %v1596 = vpop.xlane.xlu0 %1595
        %1597 = vadd.xlane.f32.xlu0 %v1576
        %v1598 = vpop.xlane.xlu0 %1597
        %1599 = vadd.xlane.f32.xlu0 %v1577
        %v1600 = vpop.xlane.xlu0 %1599
        %1601 = vadd.xlane.f32.xlu0 %v1578
        %v1602 = vpop.xlane.xlu0 %1601
        %1603 = vadd.xlane.f32.xlu0 %v1579
        %v1604 = vpop.xlane.xlu0 %1603
        %1605 = vadd.xlane.f32.xlu0 %v1580
        %v1606 = vpop.xlane.xlu0 %1605
        %1607 = vadd.xlane.f32.xlu0 %v1581
        %v1608 = vpop.xlane.xlu0 %1607
        %1609 = vadd.xlane.f32.xlu0 %v1582
        %v1610 = vpop.xlane.xlu0 %1609
        %1611 = vadd.xlane.f32.xlu0 %v1583
        %v1612 = vpop.xlane.xlu0 %1611
        %1613 = vadd.xlane.f32.xlu0 %v1584
        %v1614 = vpop.xlane.xlu0 %1613
        %1615 = vadd.xlane.f32.xlu0 %v1585
        %v1616 = vpop.xlane.xlu0 %1615
        %1617 = vadd.xlane.f32.xlu0 %v1586
        %v1618 = vpop.xlane.xlu0 %1617
        %v1619 = vmax.f32 %v1588, 1e-20
        %v1620 = vmax.f32 %v1590, 1e-20
        %v1621 = vmax.f32 %v1592, 1e-20
        %v1622 = vmax.f32 %v1594, 1e-20
        %v1623 = vmax.f32 %v1596, 1e-20
        %v1624 = vmax.f32 %v1598, 1e-20
        %v1625 = vmax.f32 %v1600, 1e-20
        %v1626 = vmax.f32 %v1602, 1e-20
        %v1627 = vmax.f32 %v1604, 1e-20
        %v1628 = vmax.f32 %v1606, 1e-20
        %v1629 = vmax.f32 %v1608, 1e-20
        %v1630 = vmax.f32 %v1610, 1e-20
        %v1631 = vmax.f32 %v1612, 1e-20
        %v1632 = vmax.f32 %v1614, 1e-20
        %v1633 = vmax.f32 %v1616, 1e-20
        %v1634 = vmax.f32 %v1618, 1e-20
        %v1635 = vrcp.pop %v1619
        %v1636 = vrcp.pop %v1620
        %v1637 = vrcp.pop %v1621
        %v1638 = vrcp.pop %v1622
        %v1639 = vrcp.pop %v1623
        %v1640 = vrcp.pop %v1624
        %v1641 = vrcp.pop %v1625
        %v1642 = vrcp.pop %v1626
        %v1643 = vrcp.pop %v1627
        %v1644 = vrcp.pop %v1628
        %v1645 = vrcp.pop %v1629
        %v1646 = vrcp.pop %v1630
        %v1647 = vrcp.pop %v1631
        %v1648 = vrcp.pop %v1632
        %v1649 = vrcp.pop %v1633
        %v1650 = vrcp.pop %v1634
        %v1651 = vmul.f32 %v1571, %v1635
        %v1652 = vmul.f32 %v1572, %v1636
        %v1653 = vmul.f32 %v1573, %v1637
        %v1654 = vmul.f32 %v1574, %v1638
        %v1655 = vmul.f32 %v1575, %v1639
        %v1656 = vmul.f32 %v1576, %v1640
        %v1657 = vmul.f32 %v1577, %v1641
        %v1658 = vmul.f32 %v1578, %v1642
        %v1659 = vmul.f32 %v1579, %v1643
        %v1660 = vmul.f32 %v1580, %v1644
        %v1661 = vmul.f32 %v1581, %v1645
        %v1662 = vmul.f32 %v1582, %v1646
        %v1663 = vmul.f32 %v1583, %v1647
        %v1664 = vmul.f32 %v1584, %v1648
        %v1665 = vmul.f32 %v1585, %v1649
        %v1666 = vmul.f32 %v1586, %v1650
        %v1667 = vpack.c.bf16 %v1652, %v1651
        %v1668 = vpack.c.bf16 %v1654, %v1653
        %v1669 = vpack.c.bf16 %v1656, %v1655
        %v1670 = vpack.c.bf16 %v1658, %v1657
        %v1671 = vpack.c.bf16 %v1660, %v1659
        %v1672 = vpack.c.bf16 %v1662, %v1661
        %v1673 = vpack.c.bf16 %v1664, %v1663
        %v1674 = vpack.c.bf16 %v1666, %v1665
        %1683 = vrot.lane.b32.xlu0 %v1219, 96
        %v1684 = vpop.permute.xlu0 %1683
        %1685 = vrot.lane.b32.xlu0 %v1220, 96
        %v1686 = vpop.permute.xlu0 %1685
        %1687 = vrot.lane.b32.xlu0 %v1221, 96
        %v1688 = vpop.permute.xlu0 %1687
        %1689 = vrot.lane.b32.xlu0 %v1222, 96
        %v1690 = vpop.permute.xlu0 %1689
        %1691 = vrot.lane.b32.xlu0 %v1223, 96
        %v1692 = vpop.permute.xlu0 %1691
        %1693 = vrot.lane.b32.xlu0 %v1224, 96
        %v1694 = vpop.permute.xlu0 %1693
        %1695 = vrot.lane.b32.xlu0 %v1225, 96
        %v1696 = vpop.permute.xlu0 %1695
        %1697 = vrot.lane.b32.xlu0 %v1226, 96
        %v1698 = vpop.permute.xlu0 %1697
        %1707 = vmatprep.subr.bf16.mxu0 0
        %1708 = vmatpush1.bf16.msra.mxu0 %v1684
        %1709 = vmatprep.subr.bf16.mxu0 0
        %1710 = vmatpush1.bf16.msra.mxu0 %v1686
        %1711 = vmatprep.subr.bf16.mxu0 0
        %1712 = vmatpush1.bf16.msra.mxu0 %v1688
        %1713 = vmatprep.subr.bf16.mxu0 0
        %1714 = vmatpush1.bf16.msra.mxu0 %v1690
        %1715 = vmatprep.subr.bf16.mxu0 0
        %1716 = vmatpush1.bf16.msra.mxu0 %v1692
        %1717 = vmatprep.subr.bf16.mxu0 0
        %1718 = vmatpush1.bf16.msra.mxu0 %v1694
        %1719 = vmatprep.subr.bf16.mxu0 0
        %1720 = vmatpush1.bf16.msra.mxu0 %v1696
        %1721 = vmatprep.subr.bf16.mxu0 0
        %1722 = vmatpush1.bf16.msra.mxu0 %v1698
        %1723 = vmatprep.subr.bf16.mxu0 0
        %1724 = vmatpush1.bf16.msra.mxu0 0
        %1725 = vmatprep.subr.bf16.mxu0 0
        %1726 = vmatpush1.bf16.msra.mxu0 0
        %1727 = vmatprep.subr.bf16.mxu0 0
        %1728 = vmatpush1.bf16.msra.mxu0 0
        %1729 = vmatprep.subr.bf16.mxu0 0
        %1730 = vmatpush1.bf16.msra.mxu0 0
        %1731 = vmatprep.subr.bf16.mxu0 0
        %1732 = vmatpush1.bf16.msra.mxu0 0
        %1733 = vmatprep.subr.bf16.mxu0 0
        %1734 = vmatpush1.bf16.msra.mxu0 0
        %1735 = vmatprep.subr.bf16.mxu0 0
        %1736 = vmatpush1.bf16.msra.mxu0 0
        %1737 = vmatprep.subr.bf16.mxu0 0
        %1738 = vmatpush1.bf16.msra.mxu0 0
        %1739 = vmatprep.mubr.bf16.mxu0 0
        %1740 = vmatmul.mubr.bf16.gmra.mrb[0].mxu0 %v1667
        %v1741 = vpop.f32.mrb[0].mxu0
        %v1742 = vadd.f32 0.0, %v1741
        %v1743 = vpop.f32.mrb[0].mxu0
        %v1744 = vpop.f32.mrb[0].mxu0
        %v1745 = vadd.f32 0.0, %v1744
        %v1746 = vpop.f32.mrb[0].mxu0
        %1747 = vmatprep.mubr.bf16.mxu0 0
        %1748 = vmatmul.mubr.bf16.gmra.mrb[0].mxu0 %v1668
        %v1749 = vpop.f32.mrb[0].mxu0
        %v1750 = vadd.f32 0.0, %v1749
        %v1751 = vpop.f32.mrb[0].mxu0
        %v1752 = vpop.f32.mrb[0].mxu0
        %v1753 = vadd.f32 0.0, %v1752
        %v1754 = vpop.f32.mrb[0].mxu0
        %1755 = vmatprep.mubr.bf16.mxu0 0
        %1756 = vmatmul.mubr.bf16.gmra.mrb[0].mxu0 %v1669
        %v1757 = vpop.f32.mrb[0].mxu0
        %v1758 = vadd.f32 0.0, %v1757
        %v1759 = vpop.f32.mrb[0].mxu0
        %v1760 = vpop.f32.mrb[0].mxu0
        %v1761 = vadd.f32 0.0, %v1760
        %v1762 = vpop.f32.mrb[0].mxu0
        %1763 = vmatprep.mubr.bf16.mxu0 0
        %1764 = vmatmul.mubr.bf16.gmra.mrb[0].mxu0 %v1670
        %v1765 = vpop.f32.mrb[0].mxu0
        %v1766 = vadd.f32 0.0, %v1765
        %v1767 = vpop.f32.mrb[0].mxu0
        %v1768 = vpop.f32.mrb[0].mxu0
        %v1769 = vadd.f32 0.0, %v1768
        %v1770 = vpop.f32.mrb[0].mxu0
        %1771 = vmatprep.mubr.bf16.mxu0 0
        %1772 = vmatmul.mubr.bf16.gmra.mrb[0].mxu0 %v1671
        %v1773 = vpop.f32.mrb[0].mxu0
        %v1774 = vadd.f32 0.0, %v1773
        %v1775 = vpop.f32.mrb[0].mxu0
        %v1776 = vpop.f32.mrb[0].mxu0
        %v1777 = vadd.f32 0.0, %v1776
        %v1778 = vpop.f32.mrb[0].mxu0
        %1779 = vmatprep.mubr.bf16.mxu0 0
        %1780 = vmatmul.mubr.bf16.gmra.mrb[0].mxu0 %v1672
        %v1781 = vpop.f32.mrb[0].mxu0
        %v1782 = vadd.f32 0.0, %v1781
        %v1783 = vpop.f32.mrb[0].mxu0
        %v1784 = vpop.f32.mrb[0].mxu0
        %v1785 = vadd.f32 0.0, %v1784
        %v1786 = vpop.f32.mrb[0].mxu0
        %1787 = vmatprep.mubr.bf16.mxu0 0
        %1788 = vmatmul.mubr.bf16.gmra.mrb[0].mxu0 %v1673
        %v1789 = vpop.f32.mrb[0].mxu0
        %v1790 = vadd.f32 0.0, %v1789
        %v1791 = vpop.f32.mrb[0].mxu0
        %v1792 = vpop.f32.mrb[0].mxu0
        %v1793 = vadd.f32 0.0, %v1792
        %v1794 = vpop.f32.mrb[0].mxu0
        %1795 = vmatprep.mubr.bf16.mxu0 0
        %1796 = vmatmul.mubr.bf16.gmra.mrb[0].mxu0 %v1674
        %v1797 = vpop.f32.mrb[0].mxu0
        %v1798 = vadd.f32 0.0, %v1797
        %v1799 = vpop.f32.mrb[0].mxu0
        %v1800 = vpop.f32.mrb[0].mxu0
        %v1801 = vadd.f32 0.0, %v1800
        %v1802 = vpop.f32.mrb[0].mxu0
        %1803 = vdwg.mxu0
        %1804 = vmatprep.subr.bf16.mxu0 0
        %1805 = vmatpush1.bf16.msra.mxu0 %v1219
        %1806 = vmatprep.subr.bf16.mxu0 0
        %1807 = vmatpush1.bf16.msra.mxu0 %v1220
        %1808 = vmatprep.subr.bf16.mxu0 0
        %1809 = vmatpush1.bf16.msra.mxu0 %v1221
        %1810 = vmatprep.subr.bf16.mxu0 0
        %1811 = vmatpush1.bf16.msra.mxu0 %v1222
        %1812 = vmatprep.subr.bf16.mxu0 0
        %1813 = vmatpush1.bf16.msra.mxu0 %v1223
        %1814 = vmatprep.subr.bf16.mxu0 0
        %1815 = vmatpush1.bf16.msra.mxu0 %v1224
        %1816 = vmatprep.subr.bf16.mxu0 0
        %1817 = vmatpush1.bf16.msra.mxu0 %v1225
        %1818 = vmatprep.subr.bf16.mxu0 0
        %1819 = vmatpush1.bf16.msra.mxu0 %v1226
        %1820 = vmatprep.subr.bf16.mxu0 0
        %1821 = vmatpush1.bf16.msra.mxu0 0
        %1822 = vmatprep.subr.bf16.mxu0 0
        %1823 = vmatpush1.bf16.msra.mxu0 0
        %1824 = vmatprep.subr.bf16.mxu0 0
        %1825 = vmatpush1.bf16.msra.mxu0 0
        %1826 = vmatprep.subr.bf16.mxu0 0
        %1827 = vmatpush1.bf16.msra.mxu0 0
        %1828 = vmatprep.subr.bf16.mxu0 0
        %1829 = vmatpush1.bf16.msra.mxu0 0
        %1830 = vmatprep.subr.bf16.mxu0 0
        %1831 = vmatpush1.bf16.msra.mxu0 0
        %1832 = vmatprep.subr.bf16.mxu0 0
        %1833 = vmatpush1.bf16.msra.mxu0 0
        %1834 = vmatprep.subr.bf16.mxu0 0
        %1835 = vmatpush1.bf16.msra.mxu0 0
        %1836 = vmatprep.mubr.bf16.mxu0 0
        %1837 = vmatmul.mubr.bf16.gmra.mrb[0].mxu0 %v1211
        %v1838 = vpop.f32.mrb[0].mxu0
        %v1839 = vadd.f32 %v1742, %v1838
        %v1840 = vpop.f32.mrb[0].mxu0
        %v1841 = vpop.f32.mrb[0].mxu0
        %v1842 = vadd.f32 %v1745, %v1841
        %v1843 = vpop.f32.mrb[0].mxu0
        %1844 = vmatprep.mubr.bf16.mxu0 0
        %1845 = vmatmul.mubr.bf16.gmra.mrb[0].mxu0 %v1212
        %v1846 = vpop.f32.mrb[0].mxu0
        %v1847 = vadd.f32 %v1750, %v1846
        %v1848 = vpop.f32.mrb[0].mxu0
        %v1849 = vpop.f32.mrb[0].mxu0
        %v1850 = vadd.f32 %v1753, %v1849
        %v1851 = vpop.f32.mrb[0].mxu0
        %1852 = vmatprep.mubr.bf16.mxu0 0
        %1853 = vmatmul.mubr.bf16.gmra.mrb[0].mxu0 %v1213
        %v1854 = vpop.f32.mrb[0].mxu0
        %v1855 = vadd.f32 %v1758, %v1854
        %v1856 = vpop.f32.mrb[0].mxu0
        %v1857 = vpop.f32.mrb[0].mxu0
        %v1858 = vadd.f32 %v1761, %v1857
        %v1859 = vpop.f32.mrb[0].mxu0
        %1860 = vmatprep.mubr.bf16.mxu0 0
        %1861 = vmatmul.mubr.bf16.gmra.mrb[0].mxu0 %v1214
        %v1862 = vpop.f32.mrb[0].mxu0
        %v1863 = vadd.f32 %v1766, %v1862
        %v1864 = vpop.f32.mrb[0].mxu0
        %v1865 = vpop.f32.mrb[0].mxu0
        %v1866 = vadd.f32 %v1769, %v1865
        %v1867 = vpop.f32.mrb[0].mxu0
        %1868 = vmatprep.mubr.bf16.mxu0 0
        %1869 = vmatmul.mubr.bf16.gmra.mrb[0].mxu0 %v1215
        %v1870 = vpop.f32.mrb[0].mxu0
        %v1871 = vadd.f32 %v1774, %v1870
        %v1872 = vpop.f32.mrb[0].mxu0
        %v1873 = vpop.f32.mrb[0].mxu0
        %v1874 = vadd.f32 %v1777, %v1873
        %v1875 = vpop.f32.mrb[0].mxu0
        %1876 = vmatprep.mubr.bf16.mxu0 0
        %1877 = vmatmul.mubr.bf16.gmra.mrb[0].mxu0 %v1216
        %v1878 = vpop.f32.mrb[0].mxu0
        %v1879 = vadd.f32 %v1782, %v1878
        %v1880 = vpop.f32.mrb[0].mxu0
        %v1881 = vpop.f32.mrb[0].mxu0
        %v1882 = vadd.f32 %v1785, %v1881
        %v1883 = vpop.f32.mrb[0].mxu0
        %1884 = vmatprep.mubr.bf16.mxu0 0
        %1885 = vmatmul.mubr.bf16.gmra.mrb[0].mxu0 %v1217
        %v1886 = vpop.f32.mrb[0].mxu0
        %v1887 = vadd.f32 %v1790, %v1886
        %v1888 = vpop.f32.mrb[0].mxu0
        %v1889 = vpop.f32.mrb[0].mxu0
        %v1890 = vadd.f32 %v1793, %v1889
        %v1891 = vpop.f32.mrb[0].mxu0
        %1892 = vmatprep.mubr.bf16.mxu0 0
        %1893 = vmatmul.mubr.bf16.gmra.mrb[0].mxu0 %v1218
        %v1894 = vpop.f32.mrb[0].mxu0
        %v1895 = vadd.f32 %v1798, %v1894
        %v1896 = vpop.f32.mrb[0].mxu0
        %v1897 = vpop.f32.mrb[0].mxu0
        %v1898 = vadd.f32 %v1801, %v1897
        %v1899 = vpop.f32.mrb[0].mxu0
        %1900 = vdwg.mxu0
        %v1901 = vmul.f32 %v1839, 0.5
        %v1902 = vmul.f32 %v1842, 0.5
        %v1903 = vmul.f32 %v1847, 0.5
        %v1904 = vmul.f32 %v1850, 0.5
        %v1905 = vmul.f32 %v1855, 0.5
        %v1906 = vmul.f32 %v1858, 0.5
        %v1907 = vmul.f32 %v1863, 0.5
        %v1908 = vmul.f32 %v1866, 0.5
        %v1909 = vmul.f32 %v1871, 0.5
        %v1910 = vmul.f32 %v1874, 0.5
        %v1911 = vmul.f32 %v1879, 0.5
        %v1912 = vmul.f32 %v1882, 0.5
        %v1913 = vmul.f32 %v1887, 0.5
        %v1914 = vmul.f32 %v1890, 0.5
        %v1915 = vmul.f32 %v1895, 0.5
        %v1916 = vmul.f32 %v1898, 0.5
        %v1917 = vld [vmem:[%s5] sm:$0x1]
        %v1919 = vlaneseq
        %v1920 = vshrl.u32 %v1919, 7
        %v1921 = vsub.s32 0, %v1920
        %v1922 = vrot.slane %v1917, %v1921
        %v1924 = vadd.f32 %v1901, %v1922
        %v1925 = vadd.f32 %v1902, %v1922
        %v1926 = vadd.f32 %v1903, %v1922
        %v1927 = vadd.f32 %v1904, %v1922
        %v1928 = vadd.f32 %v1905, %v1922
        %v1929 = vadd.f32 %v1906, %v1922
        %v1930 = vadd.f32 %v1907, %v1922
        %v1931 = vadd.f32 %v1908, %v1922
        %v1932 = vadd.f32 %v1909, %v1922
        %v1933 = vadd.f32 %v1910, %v1922
        %v1934 = vadd.f32 %v1911, %v1922
        %v1935 = vadd.f32 %v1912, %v1922
        %v1936 = vadd.f32 %v1913, %v1922
        %v1937 = vadd.f32 %v1914, %v1922
        %v1938 = vadd.f32 %v1915, %v1922
        %v1939 = vadd.f32 %v1916, %v1922
        %v1940 = vmax.f32 %v1924, 0.0
        %v1941 = vmax.f32 %v1925, 0.0
        %v1942 = vmax.f32 %v1926, 0.0
        %v1943 = vmax.f32 %v1927, 0.0
        %v1944 = vmax.f32 %v1928, 0.0
        %v1945 = vmax.f32 %v1929, 0.0
        %v1946 = vmax.f32 %v1930, 0.0
        %v1947 = vmax.f32 %v1931, 0.0
        %v1948 = vmax.f32 %v1932, 0.0
        %v1949 = vmax.f32 %v1933, 0.0
        %v1950 = vmax.f32 %v1934, 0.0
        %v1951 = vmax.f32 %v1935, 0.0
        %v1952 = vmax.f32 %v1936, 0.0
        %v1953 = vmax.f32 %v1937, 0.0
        %v1954 = vmax.f32 %v1938, 0.0
        %v1955 = vmax.f32 %v1939, 0.0
        %v1956 = vpack.c.bf16 %v1941, %v1940
        %v1957 = vpack.c.bf16 %v1943, %v1942
        %v1958 = vpack.c.bf16 %v1945, %v1944
        %v1959 = vpack.c.bf16 %v1947, %v1946
        %v1960 = vpack.c.bf16 %v1949, %v1948
        %v1961 = vpack.c.bf16 %v1951, %v1950
        %v1962 = vpack.c.bf16 %v1953, %v1952
        %v1963 = vpack.c.bf16 %v1955, %v1954
        %v1964 = vld [vmem:[%s6] sm:$0xf]
        %v1965 = vld [vmem:[%s6 + $0x4] sm:$0xf]
        %v1966 = vld [vmem:[%s6 + $0x8] sm:$0xf]
        %v1967 = vld [vmem:[%s6 + $0xc] sm:$0xf]
        %v1968 = vld [vmem:[%s7] sm:$0x1]
        %v1970 = vlaneseq
        %v1971 = vshrl.u32 %v1970, 7
        %v1972 = vsub.s32 0, %v1971
        %v1973 = vrot.slane %v1968, %v1972
        %v1979 = vunpack.c.l.b16 %v1964
        %v1980 = vunpack.c.l.b16 %v1965
        %v1981 = vunpack.c.l.b16 %v1966
        %v1982 = vunpack.c.l.b16 %v1967
        %v1983 = vpack.c.b16 %v1980, %v1979
        %v1984 = vpack.c.b16 %v1982, %v1981
        %v1988 = vsel %vm607, %v1956, 0
        %v1991 = vsel %vm607, %v1957, 0
        %v1994 = vsel %vm607, %v1958, 0
        %v1997 = vsel %vm607, %v1959, 0
        %v2000 = vsel %vm607, %v1960, 0
        %v2003 = vsel %vm607, %v1961, 0
        %v2006 = vsel %vm607, %v1962, 0
        %v2009 = vsel %vm607, %v1963, 0
        %2011 = vmatprep.subr.bf16.mxu0 0
        %2012 = vmatpush1.bf16.msra.mxu0 %v1983
        %2013 = vmatprep.subr.bf16.mxu0 0
        %2014 = vmatpush1.bf16.msra.mxu0 %v1984
        %2015 = vmatprep.subr.bf16.mxu0 0
        %2016 = vmatpush1.bf16.msra.mxu0 0
        %2017 = vmatprep.subr.bf16.mxu0 0
        %2018 = vmatpush1.bf16.msra.mxu0 0
        %2019 = vmatprep.subr.bf16.mxu0 0
        %2020 = vmatpush1.bf16.msra.mxu0 0
        %2021 = vmatprep.subr.bf16.mxu0 0
        %2022 = vmatpush1.bf16.msra.mxu0 0
        %2023 = vmatprep.subr.bf16.mxu0 0
        %2024 = vmatpush1.bf16.msra.mxu0 0
        %2025 = vmatprep.subr.bf16.mxu0 0
        %2026 = vmatpush1.bf16.msra.mxu0 0
        %2027 = vmatprep.subr.bf16.mxu0 0
        %2028 = vmatpush1.bf16.msra.mxu0 0
        %2029 = vmatprep.subr.bf16.mxu0 0
        %2030 = vmatpush1.bf16.msra.mxu0 0
        %2031 = vmatprep.subr.bf16.mxu0 0
        %2032 = vmatpush1.bf16.msra.mxu0 0
        %2033 = vmatprep.subr.bf16.mxu0 0
        %2034 = vmatpush1.bf16.msra.mxu0 0
        %2035 = vmatprep.subr.bf16.mxu0 0
        %2036 = vmatpush1.bf16.msra.mxu0 0
        %2037 = vmatprep.subr.bf16.mxu0 0
        %2038 = vmatpush1.bf16.msra.mxu0 0
        %2039 = vmatprep.subr.bf16.mxu0 0
        %2040 = vmatpush1.bf16.msra.mxu0 0
        %2041 = vmatprep.subr.bf16.mxu0 0
        %2042 = vmatpush1.bf16.msra.mxu0 0
        %2043 = vmatprep.mubr.bf16.mxu0 0
        %2044 = vmatmul.mubr.bf16.gmra.mrb[0].mxu0 %v1988
        %v2045 = vpop.f32.mrb[0].mxu0
        %v2046 = vadd.f32 %v1973, %v2045
        %v2047 = vpop.f32.mrb[0].mxu0
        %v2048 = vpop.f32.mrb[0].mxu0
        %v2049 = vadd.f32 %v1973, %v2048
        %v2050 = vpop.f32.mrb[0].mxu0
        %2051 = vmatprep.mubr.bf16.mxu0 0
        %2052 = vmatmul.mubr.bf16.gmra.mrb[0].mxu0 %v1991
        %v2053 = vpop.f32.mrb[0].mxu0
        %v2054 = vadd.f32 %v1973, %v2053
        %v2055 = vpop.f32.mrb[0].mxu0
        %v2056 = vpop.f32.mrb[0].mxu0
        %v2057 = vadd.f32 %v1973, %v2056
        %v2058 = vpop.f32.mrb[0].mxu0
        %2059 = vmatprep.mubr.bf16.mxu0 0
        %2060 = vmatmul.mubr.bf16.gmra.mrb[0].mxu0 %v1994
        %v2061 = vpop.f32.mrb[0].mxu0
        %v2062 = vadd.f32 %v1973, %v2061
        %v2063 = vpop.f32.mrb[0].mxu0
        %v2064 = vpop.f32.mrb[0].mxu0
        %v2065 = vadd.f32 %v1973, %v2064
        %v2066 = vpop.f32.mrb[0].mxu0
        %2067 = vmatprep.mubr.bf16.mxu0 0
        %2068 = vmatmul.mubr.bf16.gmra.mrb[0].mxu0 %v1997
        %v2069 = vpop.f32.mrb[0].mxu0
        %v2070 = vadd.f32 %v1973, %v2069
        %v2071 = vpop.f32.mrb[0].mxu0
        %v2072 = vpop.f32.mrb[0].mxu0
        %v2073 = vadd.f32 %v1973, %v2072
        %v2074 = vpop.f32.mrb[0].mxu0
        %2075 = vmatprep.mubr.bf16.mxu0 0
        %2076 = vmatmul.mubr.bf16.gmra.mrb[0].mxu0 %v2000
        %v2077 = vpop.f32.mrb[0].mxu0
        %v2078 = vadd.f32 %v1973, %v2077
        %v2079 = vpop.f32.mrb[0].mxu0
        %v2080 = vpop.f32.mrb[0].mxu0
        %v2081 = vadd.f32 %v1973, %v2080
        %v2082 = vpop.f32.mrb[0].mxu0
        %2083 = vmatprep.mubr.bf16.mxu0 0
        %2084 = vmatmul.mubr.bf16.gmra.mrb[0].mxu0 %v2003
        %v2085 = vpop.f32.mrb[0].mxu0
        %v2086 = vadd.f32 %v1973, %v2085
        %v2087 = vpop.f32.mrb[0].mxu0
        %v2088 = vpop.f32.mrb[0].mxu0
        %v2089 = vadd.f32 %v1973, %v2088
        %v2090 = vpop.f32.mrb[0].mxu0
        %2091 = vmatprep.mubr.bf16.mxu0 0
        %2092 = vmatmul.mubr.bf16.gmra.mrb[0].mxu0 %v2006
        %v2093 = vpop.f32.mrb[0].mxu0
        %v2094 = vadd.f32 %v1973, %v2093
        %v2095 = vpop.f32.mrb[0].mxu0
        %v2096 = vpop.f32.mrb[0].mxu0
        %v2097 = vadd.f32 %v1973, %v2096
        %v2098 = vpop.f32.mrb[0].mxu0
        %2099 = vmatprep.mubr.bf16.mxu0 0
        %2100 = vmatmul.mubr.bf16.gmra.mrb[0].mxu0 %v2009
        %v2101 = vpop.f32.mrb[0].mxu0
        %v2102 = vadd.f32 %v1973, %v2101
        %v2103 = vpop.f32.mrb[0].mxu0
        %v2104 = vpop.f32.mrb[0].mxu0
        %v2105 = vadd.f32 %v1973, %v2104
        %v2106 = vpop.f32.mrb[0].mxu0
        %2107 = vdwg.mxu0
        %2108 = vxpose.xlu0.b32.start [1/16] %v2046, 128
        %2109 = vxpose.xlu0.b32.cont [2/16] %v2049, 128
        %2110 = vxpose.xlu0.b32.cont [3/16] %v2054, 128
        %2111 = vxpose.xlu0.b32.cont [4/16] %v2057, 128
        %2112 = vxpose.xlu0.b32.cont [5/16] %v2062, 128
        %2113 = vxpose.xlu0.b32.cont [6/16] %v2065, 128
        %2114 = vxpose.xlu0.b32.cont [7/16] %v2070, 128
        %2115 = vxpose.xlu0.b32.cont [8/16] %v2073, 128
        %2116 = vxpose.xlu0.b32.cont [9/16] %v2078, 128
        %2117 = vxpose.xlu0.b32.cont [10/16] %v2081, 128
        %2118 = vxpose.xlu0.b32.cont [11/16] %v2086, 128
        %2119 = vxpose.xlu0.b32.cont [12/16] %v2089, 128
        %2120 = vxpose.xlu0.b32.cont [13/16] %v2094, 128
        %2121 = vxpose.xlu0.b32.cont [14/16] %v2097, 128
        %2122 = vxpose.xlu0.b32.cont [15/16] %v2102, 128
        %2123 = vxpose.xlu0.b32.end [16/16] %v2105, 128
        %v2124 = vpop.trf.xlu0
        %v2125 = vpop.trf.xlu0
        %v2126 = vpop.trf.xlu0
        %v2127 = vpop.trf.xlu0
        %v2128 = vpop.trf.xlu0
        %v2129 = vpop.trf.xlu0
        %v2130 = vpop.trf.xlu0
        %v2131 = vpop.trf.xlu0
        %v2132 = vpop.trf.xlu0
        %v2133 = vpop.trf.xlu0
        %v2134 = vpop.trf.xlu0
        %v2135 = vpop.trf.xlu0
        %v2136 = vpop.trf.xlu0
        %v2137 = vpop.trf.xlu0
        %v2138 = vpop.trf.xlu0
        %v2139 = vpop.trf.xlu0
        %2140 = vst [vmem:[#allocation2] sm:$0xff] %v2124
        %2141 = vst [vmem:[#allocation2 + $0x8] sm:$0xff] %v2125
        %2142 = vst [vmem:[#allocation2 + $0x10] sm:$0xff] %v2126
        %2143 = vst [vmem:[#allocation2 + $0x18] sm:$0xff] %v2127
        %2144 = vst [vmem:[#allocation2 + $0x20] sm:$0xff] %v2128
        %2145 = vst [vmem:[#allocation2 + $0x28] sm:$0xff] %v2129
        %2146 = vst [vmem:[#allocation2 + $0x30] sm:$0xff] %v2130
        %2147 = vst [vmem:[#allocation2 + $0x38] sm:$0xff] %v2131
        %2148 = vst [vmem:[#allocation2 + $0x40] sm:$0xff] %v2132
        %2149 = vst [vmem:[#allocation2 + $0x48] sm:$0xff] %v2133
        %2150 = vst [vmem:[#allocation2 + $0x50] sm:$0xff] %v2134
        %2151 = vst [vmem:[#allocation2 + $0x58] sm:$0xff] %v2135
        %2152 = vst [vmem:[#allocation2 + $0x60] sm:$0xff] %v2136
        %2153 = vst [vmem:[#allocation2 + $0x68] sm:$0xff] %v2137
        %2154 = vst [vmem:[#allocation2 + $0x70] sm:$0xff] %v2138
        %2155 = vst [vmem:[#allocation2 + $0x78] sm:$0xff] %v2139
        loop: start=0, step=1, limit=32
        $region103: #{gnn6_forward.1} parent=75 // loop_pre_header
          _
        $region104: #{gnn6_forward.1} parent=75 // loop_header
          %s2157 = sphi 0, %s2161
          %p2158 = scmp.ge.s32.totalorder %s2157, 32
          %v2162 = vphi 0.0, %v2396
          %v2163 = vphi 0.0, %v2397
          %v2164 = vphi 0.0, %v2398
          %v2165 = vphi 0.0, %v2399
          %v2166 = vphi 0.0, %v2400
          %v2167 = vphi 0.0, %v2401
          %v2168 = vphi 0.0, %v2402
          %v2169 = vphi 0.0, %v2403
          %v2170 = vphi 0.0, %v2404
          %v2171 = vphi 0.0, %v2405
          %v2172 = vphi 0.0, %v2406
          %v2173 = vphi 0.0, %v2407
          %v2174 = vphi 0.0, %v2408
          %v2175 = vphi 0.0, %v2409
          %v2176 = vphi 0.0, %v2410
          %v2177 = vphi 0.0, %v2411
        $region105: #{gnn6_forward.1} parent=75 // loop_header_branch
          %2160 = sbr.rel (%p2158) target = $region109
        $region106: #{gnn6_forward.1} parent=75 // loop_body
          %v2178 = vstv %s2157
          %vm2179 = vcmp.eq.s32.totalorder %v778, %v2178
          %2196 = vrot.lane.b32.xlu0 %v2046, 64
          %v2197 = vpop.permute.xlu0 %2196
          %2198 = vrot.lane.b32.xlu0 %v2049, 64
          %v2199 = vpop.permute.xlu0 %2198
          %2200 = vrot.lane.b32.xlu0 %v2054, 64
          %v2201 = vpop.permute.xlu0 %2200
          %2202 = vrot.lane.b32.xlu0 %v2057, 64
          %v2203 = vpop.permute.xlu0 %2202
          %2204 = vrot.lane.b32.xlu0 %v2062, 64
          %v2205 = vpop.permute.xlu0 %2204
          %2206 = vrot.lane.b32.xlu0 %v2065, 64
          %v2207 = vpop.permute.xlu0 %2206
          %2208 = vrot.lane.b32.xlu0 %v2070, 64
          %v2209 = vpop.permute.xlu0 %2208
          %2210 = vrot.lane.b32.xlu0 %v2073, 64
          %v2211 = vpop.permute.xlu0 %2210
          %2212 = vrot.lane.b32.xlu0 %v2078, 64
          %v2213 = vpop.permute.xlu0 %2212
          %2214 = vrot.lane.b32.xlu0 %v2081, 64
          %v2215 = vpop.permute.xlu0 %2214
          %2216 = vrot.lane.b32.xlu0 %v2086, 64
          %v2217 = vpop.permute.xlu0 %2216
          %2218 = vrot.lane.b32.xlu0 %v2089, 64
          %v2219 = vpop.permute.xlu0 %2218
          %2220 = vrot.lane.b32.xlu0 %v2094, 64
          %v2221 = vpop.permute.xlu0 %2220
          %2222 = vrot.lane.b32.xlu0 %v2097, 64
          %v2223 = vpop.permute.xlu0 %2222
          %2224 = vrot.lane.b32.xlu0 %v2102, 64
          %v2225 = vpop.permute.xlu0 %2224
          %2226 = vrot.lane.b32.xlu0 %v2105, 64
          %v2227 = vpop.permute.xlu0 %2226
          %v2244 = vsel %vm2179, %v2197, 0.0
          %v2245 = vsel %vm2179, %v2199, 0.0
          %v2246 = vsel %vm2179, %v2201, 0.0
          %v2247 = vsel %vm2179, %v2203, 0.0
          %v2248 = vsel %vm2179, %v2205, 0.0
          %v2249 = vsel %vm2179, %v2207, 0.0
          %v2250 = vsel %vm2179, %v2209, 0.0
          %v2251 = vsel %vm2179, %v2211, 0.0
          %v2252 = vsel %vm2179, %v2213, 0.0
          %v2253 = vsel %vm2179, %v2215, 0.0
          %v2254 = vsel %vm2179, %v2217, 0.0
          %v2255 = vsel %vm2179, %v2219, 0.0
          %v2256 = vsel %vm2179, %v2221, 0.0
          %v2257 = vsel %vm2179, %v2223, 0.0
          %v2258 = vsel %vm2179, %v2225, 0.0
          %v2259 = vsel %vm2179, %v2227, 0.0
          %v2260 = vsel %vm607, %v2244, 0.0
          %2261 = vadd.xlane.f32.xlu0 %v2260
          %v2262 = vpop.xlane.xlu0 %2261
          %v2263 = vsel %vm607, %v2245, 0.0
          %2264 = vadd.xlane.f32.xlu0 %v2263
          %v2265 = vpop.xlane.xlu0 %2264
          %v2266 = vsel %vm607, %v2246, 0.0
          %2267 = vadd.xlane.f32.xlu0 %v2266
          %v2268 = vpop.xlane.xlu0 %2267
          %v2269 = vsel %vm607, %v2247, 0.0
          %2270 = vadd.xlane.f32.xlu0 %v2269
          %v2271 = vpop.xlane.xlu0 %2270
          %v2272 = vsel %vm607, %v2248, 0.0
          %2273 = vadd.xlane.f32.xlu0 %v2272
          %v2274 = vpop.xlane.xlu0 %2273
          %v2275 = vsel %vm607, %v2249, 0.0
          %2276 = vadd.xlane.f32.xlu0 %v2275
          %v2277 = vpop.xlane.xlu0 %2276
          %v2278 = vsel %vm607, %v2250, 0.0
          %2279 = vadd.xlane.f32.xlu0 %v2278
          %v2280 = vpop.xlane.xlu0 %2279
          %v2281 = vsel %vm607, %v2251, 0.0
          %2282 = vadd.xlane.f32.xlu0 %v2281
          %v2283 = vpop.xlane.xlu0 %2282
          %v2284 = vsel %vm607, %v2252, 0.0
          %2285 = vadd.xlane.f32.xlu0 %v2284
          %v2286 = vpop.xlane.xlu0 %2285
          %v2287 = vsel %vm607, %v2253, 0.0
          %2288 = vadd.xlane.f32.xlu0 %v2287
          %v2289 = vpop.xlane.xlu0 %2288
          %v2290 = vsel %vm607, %v2254, 0.0
          %2291 = vadd.xlane.f32.xlu0 %v2290
          %v2292 = vpop.xlane.xlu0 %2291
          %v2293 = vsel %vm607, %v2255, 0.0
          %2294 = vadd.xlane.f32.xlu0 %v2293
          %v2295 = vpop.xlane.xlu0 %2294
          %v2296 = vsel %vm607, %v2256, 0.0
          %2297 = vadd.xlane.f32.xlu0 %v2296
          %v2298 = vpop.xlane.xlu0 %2297
          %v2299 = vsel %vm607, %v2257, 0.0
          %2300 = vadd.xlane.f32.xlu0 %v2299
          %v2301 = vpop.xlane.xlu0 %2300
          %v2302 = vsel %vm607, %v2258, 0.0
          %2303 = vadd.xlane.f32.xlu0 %v2302
          %v2304 = vpop.xlane.xlu0 %2303
          %v2305 = vsel %vm607, %v2259, 0.0
          %2306 = vadd.xlane.f32.xlu0 %v2305
          %v2307 = vpop.xlane.xlu0 %2306
          %s2308 = scalar_lea.vmem [#allocation2], %s2157
          %v2309 = vld [vmem:[%s2308] sm:$0x1]
          %v2310 = vlaneseq
          %v2311 = vshrl.u32 %v2310, 7
          %v2312 = vsub.s32 0, %v2311
          %v2313 = vrot.slane %v2309, %v2312
          %v2314 = vadd.f32 %v2262, %v2313
          %v2315 = vadd.f32 %v2265, %v2313
          %v2316 = vadd.f32 %v2268, %v2313
          %v2317 = vadd.f32 %v2271, %v2313
          %v2318 = vadd.f32 %v2274, %v2313
          %v2319 = vadd.f32 %v2277, %v2313
          %v2320 = vadd.f32 %v2280, %v2313
          %v2321 = vadd.f32 %v2283, %v2313
          %v2322 = vadd.f32 %v2286, %v2313
          %v2323 = vadd.f32 %v2289, %v2313
          %v2324 = vadd.f32 %v2292, %v2313
          %v2325 = vadd.f32 %v2295, %v2313
          %v2326 = vadd.f32 %v2298, %v2313
          %v2327 = vadd.f32 %v2301, %v2313
          %v2328 = vadd.f32 %v2304, %v2313
          %v2329 = vadd.f32 %v2307, %v2313
          %vm2330 = vcmp.gt.f32.partialorder %v2314, 0.0
          %vm2331 = vcmp.gt.f32.partialorder %v2315, 0.0
          %vm2332 = vcmp.gt.f32.partialorder %v2316, 0.0
          %vm2333 = vcmp.gt.f32.partialorder %v2317, 0.0
          %vm2334 = vcmp.gt.f32.partialorder %v2318, 0.0
          %vm2335 = vcmp.gt.f32.partialorder %v2319, 0.0
          %vm2336 = vcmp.gt.f32.partialorder %v2320, 0.0
          %vm2337 = vcmp.gt.f32.partialorder %v2321, 0.0
          %vm2338 = vcmp.gt.f32.partialorder %v2322, 0.0
          %vm2339 = vcmp.gt.f32.partialorder %v2323, 0.0
          %vm2340 = vcmp.gt.f32.partialorder %v2324, 0.0
          %vm2341 = vcmp.gt.f32.partialorder %v2325, 0.0
          %vm2342 = vcmp.gt.f32.partialorder %v2326, 0.0
          %vm2343 = vcmp.gt.f32.partialorder %v2327, 0.0
          %vm2344 = vcmp.gt.f32.partialorder %v2328, 0.0
          %vm2345 = vcmp.gt.f32.partialorder %v2329, 0.0
          %v2346 = vmul.f32 %v2314, 0.2
          %v2347 = vmul.f32 %v2315, 0.2
          %v2348 = vmul.f32 %v2316, 0.2
          %v2349 = vmul.f32 %v2317, 0.2
          %v2350 = vmul.f32 %v2318, 0.2
          %v2351 = vmul.f32 %v2319, 0.2
          %v2352 = vmul.f32 %v2320, 0.2
          %v2353 = vmul.f32 %v2321, 0.2
          %v2354 = vmul.f32 %v2322, 0.2
          %v2355 = vmul.f32 %v2323, 0.2
          %v2356 = vmul.f32 %v2324, 0.2
          %v2357 = vmul.f32 %v2325, 0.2
          %v2358 = vmul.f32 %v2326, 0.2
          %v2359 = vmul.f32 %v2327, 0.2
          %v2360 = vmul.f32 %v2328, 0.2
          %v2361 = vmul.f32 %v2329, 0.2
          %v2362 = vsel %vm2330, %v2314, %v2346
          %v2363 = vsel %vm2331, %v2315, %v2347
          %v2364 = vsel %vm2332, %v2316, %v2348
          %v2365 = vsel %vm2333, %v2317, %v2349
          %v2366 = vsel %vm2334, %v2318, %v2350
          %v2367 = vsel %vm2335, %v2319, %v2351
          %v2368 = vsel %vm2336, %v2320, %v2352
          %v2369 = vsel %vm2337, %v2321, %v2353
          %v2370 = vsel %vm2338, %v2322, %v2354
          %v2371 = vsel %vm2339, %v2323, %v2355
          %v2372 = vsel %vm2340, %v2324, %v2356
          %v2373 = vsel %vm2341, %v2325, %v2357
          %v2374 = vsel %vm2342, %v2326, %v2358
          %v2375 = vsel %vm2343, %v2327, %v2359
          %v2376 = vsel %vm2344, %v2328, %v2360
          %v2377 = vsel %vm2345, %v2329, %v2361
          %s2378 = sld [smem:[#allocation5 + %s2157]]
          %v2379 = vstv %s2378
          %v2380 = vmul.f32 %v2379, %v2362
          %v2381 = vmul.f32 %v2379, %v2363
          %v2382 = vmul.f32 %v2379, %v2364
          %v2383 = vmul.f32 %v2379, %v2365
          %v2384 = vmul.f32 %v2379, %v2366
          %v2385 = vmul.f32 %v2379, %v2367
          %v2386 = vmul.f32 %v2379, %v2368
          %v2387 = vmul.f32 %v2379, %v2369
          %v2388 = vmul.f32 %v2379, %v2370
          %v2389 = vmul.f32 %v2379, %v2371
          %v2390 = vmul.f32 %v2379, %v2372
          %v2391 = vmul.f32 %v2379, %v2373
          %v2392 = vmul.f32 %v2379, %v2374
          %v2393 = vmul.f32 %v2379, %v2375
          %v2394 = vmul.f32 %v2379, %v2376
          %v2395 = vmul.f32 %v2379, %v2377
          %v2396 = vadd.f32 %v2162, %v2380
          %v2397 = vadd.f32 %v2163, %v2381
          %v2398 = vadd.f32 %v2164, %v2382
          %v2399 = vadd.f32 %v2165, %v2383
          %v2400 = vadd.f32 %v2166, %v2384
          %v2401 = vadd.f32 %v2167, %v2385
          %v2402 = vadd.f32 %v2168, %v2386
          %v2403 = vadd.f32 %v2169, %v2387
          %v2404 = vadd.f32 %v2170, %v2388
          %v2405 = vadd.f32 %v2171, %v2389
          %v2406 = vadd.f32 %v2172, %v2390
          %v2407 = vadd.f32 %v2173, %v2391
          %v2408 = vadd.f32 %v2174, %v2392
          %v2409 = vadd.f32 %v2175, %v2393
          %v2410 = vadd.f32 %v2176, %v2394
          %v2411 = vadd.f32 %v2177, %v2395
        $region107: #{gnn6_forward.1} parent=75 // loop_footer
          %s2161 = sadd.s32 1, %s2157
        $region108: #{gnn6_forward.1} parent=75 // loop_footer_branch
          %2156 = sbr.rel target = $region104
        $region109: #{gnn6_forward.1} parent=75 // loop_exit
          _
        %2412 = vmax.xlane.f32.xlu0 %v2162
        %v2413 = vpop.xlane.xlu0 %2412
        %2414 = vmax.xlane.f32.xlu0 %v2163
        %v2415 = vpop.xlane.xlu0 %2414
        %2416 = vmax.xlane.f32.xlu0 %v2164
        %v2417 = vpop.xlane.xlu0 %2416
        %2418 = vmax.xlane.f32.xlu0 %v2165
        %v2419 = vpop.xlane.xlu0 %2418
        %2420 = vmax.xlane.f32.xlu0 %v2166
        %v2421 = vpop.xlane.xlu0 %2420
        %2422 = vmax.xlane.f32.xlu0 %v2167
        %v2423 = vpop.xlane.xlu0 %2422
        %2424 = vmax.xlane.f32.xlu0 %v2168
        %v2425 = vpop.xlane.xlu0 %2424
        %2426 = vmax.xlane.f32.xlu0 %v2169
        %v2427 = vpop.xlane.xlu0 %2426
        %2428 = vmax.xlane.f32.xlu0 %v2170
        %v2429 = vpop.xlane.xlu0 %2428
        %2430 = vmax.xlane.f32.xlu0 %v2171
        %v2431 = vpop.xlane.xlu0 %2430
        %2432 = vmax.xlane.f32.xlu0 %v2172
        %v2433 = vpop.xlane.xlu0 %2432
        %2434 = vmax.xlane.f32.xlu0 %v2173
        %v2435 = vpop.xlane.xlu0 %2434
        %2436 = vmax.xlane.f32.xlu0 %v2174
        %v2437 = vpop.xlane.xlu0 %2436
        %2438 = vmax.xlane.f32.xlu0 %v2175
        %v2439 = vpop.xlane.xlu0 %2438
        %2440 = vmax.xlane.f32.xlu0 %v2176
        %v2441 = vpop.xlane.xlu0 %2440
        %2442 = vmax.xlane.f32.xlu0 %v2177
        %v2443 = vpop.xlane.xlu0 %2442
        %v2444 = vsub.f32 %v2162, %v2413
        %v2445 = vsub.f32 %v2163, %v2415
        %v2446 = vsub.f32 %v2164, %v2417
        %v2447 = vsub.f32 %v2165, %v2419
        %v2448 = vsub.f32 %v2166, %v2421
        %v2449 = vsub.f32 %v2167, %v2423
        %v2450 = vsub.f32 %v2168, %v2425
        %v2451 = vsub.f32 %v2169, %v2427
        %v2452 = vsub.f32 %v2170, %v2429
        %v2453 = vsub.f32 %v2171, %v2431
        %v2454 = vsub.f32 %v2172, %v2433
        %v2455 = vsub.f32 %v2173, %v2435
        %v2456 = vsub.f32 %v2174, %v2437
        %v2457 = vsub.f32 %v2175, %v2439
        %v2458 = vsub.f32 %v2176, %v2441
        %v2459 = vsub.f32 %v2177, %v2443
        %v2460 = vmul.f32 %v2444, 1.442695
        %v2461 = vpow.pop %v2460
        %v2462 = vmul.f32 %v2445, 1.442695
        %v2463 = vpow.pop %v2462
        %v2464 = vmul.f32 %v2446, 1.442695
        %v2465 = vpow.pop %v2464
        %v2466 = vmul.f32 %v2447, 1.442695
        %v2467 = vpow.pop %v2466
        %v2468 = vmul.f32 %v2448, 1.442695
        %v2469 = vpow.pop %v2468
        %v2470 = vmul.f32 %v2449, 1.442695
        %v2471 = vpow.pop %v2470
        %v2472 = vmul.f32 %v2450, 1.442695
        %v2473 = vpow.pop %v2472
        %v2474 = vmul.f32 %v2451, 1.442695
        %v2475 = vpow.pop %v2474
        %v2476 = vmul.f32 %v2452, 1.442695
        %v2477 = vpow.pop %v2476
        %v2478 = vmul.f32 %v2453, 1.442695
        %v2479 = vpow.pop %v2478
        %v2480 = vmul.f32 %v2454, 1.442695
        %v2481 = vpow.pop %v2480
        %v2482 = vmul.f32 %v2455, 1.442695
        %v2483 = vpow.pop %v2482
        %v2484 = vmul.f32 %v2456, 1.442695
        %v2485 = vpow.pop %v2484
        %v2486 = vmul.f32 %v2457, 1.442695
        %v2487 = vpow.pop %v2486
        %v2488 = vmul.f32 %v2458, 1.442695
        %v2489 = vpow.pop %v2488
        %v2490 = vmul.f32 %v2459, 1.442695
        %v2491 = vpow.pop %v2490
        %v2492 = vmul.f32 %v2461, %v544
        %v2493 = vmul.f32 %v2463, %v545
        %v2494 = vmul.f32 %v2465, %v546
        %v2495 = vmul.f32 %v2467, %v547
        %v2496 = vmul.f32 %v2469, %v548
        %v2497 = vmul.f32 %v2471, %v549
        %v2498 = vmul.f32 %v2473, %v550
        %v2499 = vmul.f32 %v2475, %v551
        %v2500 = vmul.f32 %v2477, %v552
        %v2501 = vmul.f32 %v2479, %v553
        %v2502 = vmul.f32 %v2481, %v554
        %v2503 = vmul.f32 %v2483, %v555
        %v2504 = vmul.f32 %v2485, %v556
        %v2505 = vmul.f32 %v2487, %v557
        %v2506 = vmul.f32 %v2489, %v558
        %v2507 = vmul.f32 %v2491, %v559
        %2508 = vadd.xlane.f32.xlu0 %v2492
        %v2509 = vpop.xlane.xlu0 %2508
        %2510 = vadd.xlane.f32.xlu0 %v2493
        %v2511 = vpop.xlane.xlu0 %2510
        %2512 = vadd.xlane.f32.xlu0 %v2494
        %v2513 = vpop.xlane.xlu0 %2512
        %2514 = vadd.xlane.f32.xlu0 %v2495
        %v2515 = vpop.xlane.xlu0 %2514
        %2516 = vadd.xlane.f32.xlu0 %v2496
        %v2517 = vpop.xlane.xlu0 %2516
        %2518 = vadd.xlane.f32.xlu0 %v2497
        %v2519 = vpop.xlane.xlu0 %2518
        %2520 = vadd.xlane.f32.xlu0 %v2498
        %v2521 = vpop.xlane.xlu0 %2520
        %2522 = vadd.xlane.f32.xlu0 %v2499
        %v2523 = vpop.xlane.xlu0 %2522
        %2524 = vadd.xlane.f32.xlu0 %v2500
        %v2525 = vpop.xlane.xlu0 %2524
        %2526 = vadd.xlane.f32.xlu0 %v2501
        %v2527 = vpop.xlane.xlu0 %2526
        %2528 = vadd.xlane.f32.xlu0 %v2502
        %v2529 = vpop.xlane.xlu0 %2528
        %2530 = vadd.xlane.f32.xlu0 %v2503
        %v2531 = vpop.xlane.xlu0 %2530
        %2532 = vadd.xlane.f32.xlu0 %v2504
        %v2533 = vpop.xlane.xlu0 %2532
        %2534 = vadd.xlane.f32.xlu0 %v2505
        %v2535 = vpop.xlane.xlu0 %2534
        %2536 = vadd.xlane.f32.xlu0 %v2506
        %v2537 = vpop.xlane.xlu0 %2536
        %2538 = vadd.xlane.f32.xlu0 %v2507
        %v2539 = vpop.xlane.xlu0 %2538
        %v2540 = vmax.f32 %v2509, 1e-20
        %v2541 = vmax.f32 %v2511, 1e-20
        %v2542 = vmax.f32 %v2513, 1e-20
        %v2543 = vmax.f32 %v2515, 1e-20
        %v2544 = vmax.f32 %v2517, 1e-20
        %v2545 = vmax.f32 %v2519, 1e-20
        %v2546 = vmax.f32 %v2521, 1e-20
        %v2547 = vmax.f32 %v2523, 1e-20
        %v2548 = vmax.f32 %v2525, 1e-20
        %v2549 = vmax.f32 %v2527, 1e-20
        %v2550 = vmax.f32 %v2529, 1e-20
        %v2551 = vmax.f32 %v2531, 1e-20
        %v2552 = vmax.f32 %v2533, 1e-20
        %v2553 = vmax.f32 %v2535, 1e-20
        %v2554 = vmax.f32 %v2537, 1e-20
        %v2555 = vmax.f32 %v2539, 1e-20
        %v2556 = vrcp.pop %v2540
        %v2557 = vrcp.pop %v2541
        %v2558 = vrcp.pop %v2542
        %v2559 = vrcp.pop %v2543
        %v2560 = vrcp.pop %v2544
        %v2561 = vrcp.pop %v2545
        %v2562 = vrcp.pop %v2546
        %v2563 = vrcp.pop %v2547
        %v2564 = vrcp.pop %v2548
        %v2565 = vrcp.pop %v2549
        %v2566 = vrcp.pop %v2550
        %v2567 = vrcp.pop %v2551
        %v2568 = vrcp.pop %v2552
        %v2569 = vrcp.pop %v2553
        %v2570 = vrcp.pop %v2554
        %v2571 = vrcp.pop %v2555
        %v2572 = vmul.f32 %v2492, %v2556
        %v2573 = vmul.f32 %v2493, %v2557
        %v2574 = vmul.f32 %v2494, %v2558
        %v2575 = vmul.f32 %v2495, %v2559
        %v2576 = vmul.f32 %v2496, %v2560
        %v2577 = vmul.f32 %v2497, %v2561
        %v2578 = vmul.f32 %v2498, %v2562
        %v2579 = vmul.f32 %v2499, %v2563
        %v2580 = vmul.f32 %v2500, %v2564
        %v2581 = vmul.f32 %v2501, %v2565
        %v2582 = vmul.f32 %v2502, %v2566
        %v2583 = vmul.f32 %v2503, %v2567
        %v2584 = vmul.f32 %v2504, %v2568
        %v2585 = vmul.f32 %v2505, %v2569
        %v2586 = vmul.f32 %v2506, %v2570
        %v2587 = vmul.f32 %v2507, %v2571
        %v2588 = vpack.c.bf16 %v2573, %v2572
        %v2589 = vpack.c.bf16 %v2575, %v2574
        %v2590 = vpack.c.bf16 %v2577, %v2576
        %v2591 = vpack.c.bf16 %v2579, %v2578
        %v2592 = vpack.c.bf16 %v2581, %v2580
        %v2593 = vpack.c.bf16 %v2583, %v2582
        %v2594 = vpack.c.bf16 %v2585, %v2584
        %v2595 = vpack.c.bf16 %v2587, %v2586
        %v2596 = vpack.c.bf16 %v2049, %v2046
        %v2597 = vpack.c.bf16 %v2057, %v2054
        %v2598 = vpack.c.bf16 %v2065, %v2062
        %v2599 = vpack.c.bf16 %v2073, %v2070
        %v2600 = vpack.c.bf16 %v2081, %v2078
        %v2601 = vpack.c.bf16 %v2089, %v2086
        %v2602 = vpack.c.bf16 %v2097, %v2094
        %v2603 = vpack.c.bf16 %v2105, %v2102
        loop: start=0, step=1, limit=32
        $region110: #{gnn6_forward.1} parent=75 // loop_pre_header
          _
        $region111: #{gnn6_forward.1} parent=75 // loop_header
          %s2605 = sphi 0, %s2609
          %p2606 = scmp.ge.s32.totalorder %s2605, 32
          %v2610 = vphi 0.0, %v2852
          %v2611 = vphi 0.0, %v2853
          %v2612 = vphi 0.0, %v2854
          %v2613 = vphi 0.0, %v2855
          %v2614 = vphi 0.0, %v2856
          %v2615 = vphi 0.0, %v2857
          %v2616 = vphi 0.0, %v2858
          %v2617 = vphi 0.0, %v2859
          %v2618 = vphi 0.0, %v2860
          %v2619 = vphi 0.0, %v2861
          %v2620 = vphi 0.0, %v2862
          %v2621 = vphi 0.0, %v2863
          %v2622 = vphi 0.0, %v2864
          %v2623 = vphi 0.0, %v2865
          %v2624 = vphi 0.0, %v2866
          %v2625 = vphi 0.0, %v2867
        $region112: #{gnn6_forward.1} parent=75 // loop_header_branch
          %2608 = sbr.rel (%p2606) target = $region116
        $region113: #{gnn6_forward.1} parent=75 // loop_body
          %v2626 = vstv %s2605
          %vm2627 = vcmp.eq.s32.totalorder %v778, %v2626
          %2644 = vrot.lane.b32.xlu0 %v2046, 32
          %v2645 = vpop.permute.xlu0 %2644
          %2646 = vrot.lane.b32.xlu0 %v2049, 32
          %v2647 = vpop.permute.xlu0 %2646
          %2648 = vrot.lane.b32.xlu0 %v2054, 32
          %v2649 = vpop.permute.xlu0 %2648
          %2650 = vrot.lane.b32.xlu0 %v2057, 32
          %v2651 = vpop.permute.xlu0 %2650
          %2652 = vrot.lane.b32.xlu0 %v2062, 32
          %v2653 = vpop.permute.xlu0 %2652
          %2654 = vrot.lane.b32.xlu0 %v2065, 32
          %v2655 = vpop.permute.xlu0 %2654
          %2656 = vrot.lane.b32.xlu0 %v2070, 32
          %v2657 = vpop.permute.xlu0 %2656
          %2658 = vrot.lane.b32.xlu0 %v2073, 32
          %v2659 = vpop.permute.xlu0 %2658
          %2660 = vrot.lane.b32.xlu0 %v2078, 32
          %v2661 = vpop.permute.xlu0 %2660
          %2662 = vrot.lane.b32.xlu0 %v2081, 32
          %v2663 = vpop.permute.xlu0 %2662
          %2664 = vrot.lane.b32.xlu0 %v2086, 32
          %v2665 = vpop.permute.xlu0 %2664
          %2666 = vrot.lane.b32.xlu0 %v2089, 32
          %v2667 = vpop.permute.xlu0 %2666
          %2668 = vrot.lane.b32.xlu0 %v2094, 32
          %v2669 = vpop.permute.xlu0 %2668
          %2670 = vrot.lane.b32.xlu0 %v2097, 32
          %v2671 = vpop.permute.xlu0 %2670
          %2672 = vrot.lane.b32.xlu0 %v2102, 32
          %v2673 = vpop.permute.xlu0 %2672
          %2674 = vrot.lane.b32.xlu0 %v2105, 32
          %v2675 = vpop.permute.xlu0 %2674
          %v2692 = vsel %vm2627, %v2645, 0.0
          %v2693 = vsel %vm2627, %v2647, 0.0
          %v2694 = vsel %vm2627, %v2649, 0.0
          %v2695 = vsel %vm2627, %v2651, 0.0
          %v2696 = vsel %vm2627, %v2653, 0.0
          %v2697 = vsel %vm2627, %v2655, 0.0
          %v2698 = vsel %vm2627, %v2657, 0.0
          %v2699 = vsel %vm2627, %v2659, 0.0
          %v2700 = vsel %vm2627, %v2661, 0.0
          %v2701 = vsel %vm2627, %v2663, 0.0
          %v2702 = vsel %vm2627, %v2665, 0.0
          %v2703 = vsel %vm2627, %v2667, 0.0
          %v2704 = vsel %vm2627, %v2669, 0.0
          %v2705 = vsel %vm2627, %v2671, 0.0
          %v2706 = vsel %vm2627, %v2673, 0.0
          %v2707 = vsel %vm2627, %v2675, 0.0
          %v2708 = vsel %vm607, %v2692, 0.0
          %2709 = vadd.xlane.f32.xlu0 %v2708
          %v2710 = vpop.xlane.xlu0 %2709
          %v2711 = vsel %vm607, %v2693, 0.0
          %2712 = vadd.xlane.f32.xlu0 %v2711
          %v2713 = vpop.xlane.xlu0 %2712
          %v2714 = vsel %vm607, %v2694, 0.0
          %2715 = vadd.xlane.f32.xlu0 %v2714
          %v2716 = vpop.xlane.xlu0 %2715
          %v2717 = vsel %vm607, %v2695, 0.0
          %2718 = vadd.xlane.f32.xlu0 %v2717
          %v2719 = vpop.xlane.xlu0 %2718
          %v2720 = vsel %vm607, %v2696, 0.0
          %2721 = vadd.xlane.f32.xlu0 %v2720
          %v2722 = vpop.xlane.xlu0 %2721
          %v2723 = vsel %vm607, %v2697, 0.0
          %2724 = vadd.xlane.f32.xlu0 %v2723
          %v2725 = vpop.xlane.xlu0 %2724
          %v2726 = vsel %vm607, %v2698, 0.0
          %2727 = vadd.xlane.f32.xlu0 %v2726
          %v2728 = vpop.xlane.xlu0 %2727
          %v2729 = vsel %vm607, %v2699, 0.0
          %2730 = vadd.xlane.f32.xlu0 %v2729
          %v2731 = vpop.xlane.xlu0 %2730
          %v2732 = vsel %vm607, %v2700, 0.0
          %2733 = vadd.xlane.f32.xlu0 %v2732
          %v2734 = vpop.xlane.xlu0 %2733
          %v2735 = vsel %vm607, %v2701, 0.0
          %2736 = vadd.xlane.f32.xlu0 %v2735
          %v2737 = vpop.xlane.xlu0 %2736
          %v2738 = vsel %vm607, %v2702, 0.0
          %2739 = vadd.xlane.f32.xlu0 %v2738
          %v2740 = vpop.xlane.xlu0 %2739
          %v2741 = vsel %vm607, %v2703, 0.0
          %2742 = vadd.xlane.f32.xlu0 %v2741
          %v2743 = vpop.xlane.xlu0 %2742
          %v2744 = vsel %vm607, %v2704, 0.0
          %2745 = vadd.xlane.f32.xlu0 %v2744
          %v2746 = vpop.xlane.xlu0 %2745
          %v2747 = vsel %vm607, %v2705, 0.0
          %2748 = vadd.xlane.f32.xlu0 %v2747
          %v2749 = vpop.xlane.xlu0 %2748
          %v2750 = vsel %vm607, %v2706, 0.0
          %2751 = vadd.xlane.f32.xlu0 %v2750
          %v2752 = vpop.xlane.xlu0 %2751
          %v2753 = vsel %vm607, %v2707, 0.0
          %2754 = vadd.xlane.f32.xlu0 %v2753
          %v2755 = vpop.xlane.xlu0 %2754
          %s2756 = sadd.s32 %s2605, 32
          %s2757 = scalar_lea.vmem [#allocation2], %s2756
          %v2758 = vld [vmem:[%s2757] sm:$0x1]
          %v2759 = vlaneseq
          %v2760 = vshrl.u32 %v2759, 7
          %v2761 = vsub.s32 0, %v2760
          %v2762 = vrot.slane %v2758, %v2761
          %v2763 = vadd.f32 %v2710, %v2762
          %v2764 = vadd.f32 %v2713, %v2762
          %v2765 = vadd.f32 %v2716, %v2762
          %v2766 = vadd.f32 %v2719, %v2762
          %v2767 = vadd.f32 %v2722, %v2762
          %v2768 = vadd.f32 %v2725, %v2762
          %v2769 = vadd.f32 %v2728, %v2762
          %v2770 = vadd.f32 %v2731, %v2762
          %v2771 = vadd.f32 %v2734, %v2762
          %v2772 = vadd.f32 %v2737, %v2762
          %v2773 = vadd.f32 %v2740, %v2762
          %v2774 = vadd.f32 %v2743, %v2762
          %v2775 = vadd.f32 %v2746, %v2762
          %v2776 = vadd.f32 %v2749, %v2762
          %v2777 = vadd.f32 %v2752, %v2762
          %v2778 = vadd.f32 %v2755, %v2762
          %vm2779 = vcmp.gt.f32.partialorder %v2763, 0.0
          %vm2780 = vcmp.gt.f32.partialorder %v2764, 0.0
          %vm2781 = vcmp.gt.f32.partialorder %v2765, 0.0
          %vm2782 = vcmp.gt.f32.partialorder %v2766, 0.0
          %vm2783 = vcmp.gt.f32.partialorder %v2767, 0.0
          %vm2784 = vcmp.gt.f32.partialorder %v2768, 0.0
          %vm2785 = vcmp.gt.f32.partialorder %v2769, 0.0
          %vm2786 = vcmp.gt.f32.partialorder %v2770, 0.0
          %vm2787 = vcmp.gt.f32.partialorder %v2771, 0.0
          %vm2788 = vcmp.gt.f32.partialorder %v2772, 0.0
          %vm2789 = vcmp.gt.f32.partialorder %v2773, 0.0
          %vm2790 = vcmp.gt.f32.partialorder %v2774, 0.0
          %vm2791 = vcmp.gt.f32.partialorder %v2775, 0.0
          %vm2792 = vcmp.gt.f32.partialorder %v2776, 0.0
          %vm2793 = vcmp.gt.f32.partialorder %v2777, 0.0
          %vm2794 = vcmp.gt.f32.partialorder %v2778, 0.0
          %v2795 = vmul.f32 %v2763, 0.2
          %v2796 = vmul.f32 %v2764, 0.2
          %v2797 = vmul.f32 %v2765, 0.2
          %v2798 = vmul.f32 %v2766, 0.2
          %v2799 = vmul.f32 %v2767, 0.2
          %v2800 = vmul.f32 %v2768, 0.2
          %v2801 = vmul.f32 %v2769, 0.2
          %v2802 = vmul.f32 %v2770, 0.2
          %v2803 = vmul.f32 %v2771, 0.2
          %v2804 = vmul.f32 %v2772, 0.2
          %v2805 = vmul.f32 %v2773, 0.2
          %v2806 = vmul.f32 %v2774, 0.2
          %v2807 = vmul.f32 %v2775, 0.2
          %v2808 = vmul.f32 %v2776, 0.2
          %v2809 = vmul.f32 %v2777, 0.2
          %v2810 = vmul.f32 %v2778, 0.2
          %v2811 = vsel %vm2779, %v2763, %v2795
          %v2812 = vsel %vm2780, %v2764, %v2796
          %v2813 = vsel %vm2781, %v2765, %v2797
          %v2814 = vsel %vm2782, %v2766, %v2798
          %v2815 = vsel %vm2783, %v2767, %v2799
          %v2816 = vsel %vm2784, %v2768, %v2800
          %v2817 = vsel %vm2785, %v2769, %v2801
          %v2818 = vsel %vm2786, %v2770, %v2802
          %v2819 = vsel %vm2787, %v2771, %v2803
          %v2820 = vsel %vm2788, %v2772, %v2804
          %v2821 = vsel %vm2789, %v2773, %v2805
          %v2822 = vsel %vm2790, %v2774, %v2806
          %v2823 = vsel %vm2791, %v2775, %v2807
          %v2824 = vsel %vm2792, %v2776, %v2808
          %v2825 = vsel %vm2793, %v2777, %v2809
          %v2826 = vsel %vm2794, %v2778, %v2810
          %s2827 = sshra.s32 %s2605, 7
          %s2828 = sand.u32 %s2605, 127
          %s2829 = sadd.s32 %s2827, 1
          %s2830 = smul.u32 %s2829, 128
          %s2831 = sshra.s32 %s2605, 7
          %s2832 = sand.u32 %s2605, 127
          %s2833 = sadd.s32 %s2830, %s2832
          %s2834 = sld [smem:[#allocation5 + %s2833]]
          %v2835 = vstv %s2834
          %v2836 = vmul.f32 %v2835, %v2811
          %v2837 = vmul.f32 %v2835, %v2812
          %v2838 = vmul.f32 %v2835, %v2813
          %v2839 = vmul.f32 %v2835, %v2814
          %v2840 = vmul.f32 %v2835, %v2815
          %v2841 = vmul.f32 %v2835, %v2816
          %v2842 = vmul.f32 %v2835, %v2817
          %v2843 = vmul.f32 %v2835, %v2818
          %v2844 = vmul.f32 %v2835, %v2819
          %v2845 = vmul.f32 %v2835, %v2820
          %v2846 = vmul.f32 %v2835, %v2821
          %v2847 = vmul.f32 %v2835, %v2822
          %v2848 = vmul.f32 %v2835, %v2823
          %v2849 = vmul.f32 %v2835, %v2824
          %v2850 = vmul.f32 %v2835, %v2825
          %v2851 = vmul.f32 %v2835, %v2826
          %v2852 = vadd.f32 %v2610, %v2836
          %v2853 = vadd.f32 %v2611, %v2837
          %v2854 = vadd.f32 %v2612, %v2838
          %v2855 = vadd.f32 %v2613, %v2839
          %v2856 = vadd.f32 %v2614, %v2840
          %v2857 = vadd.f32 %v2615, %v2841
          %v2858 = vadd.f32 %v2616, %v2842
          %v2859 = vadd.f32 %v2617, %v2843
          %v2860 = vadd.f32 %v2618, %v2844
          %v2861 = vadd.f32 %v2619, %v2845
          %v2862 = vadd.f32 %v2620, %v2846
          %v2863 = vadd.f32 %v2621, %v2847
          %v2864 = vadd.f32 %v2622, %v2848
          %v2865 = vadd.f32 %v2623, %v2849
          %v2866 = vadd.f32 %v2624, %v2850
          %v2867 = vadd.f32 %v2625, %v2851
        $region114: #{gnn6_forward.1} parent=75 // loop_footer
          %s2609 = sadd.s32 1, %s2605
        $region115: #{gnn6_forward.1} parent=75 // loop_footer_branch
          %2604 = sbr.rel target = $region111
        $region116: #{gnn6_forward.1} parent=75 // loop_exit
          _
        %2868 = vmax.xlane.f32.xlu0 %v2610
        %v2869 = vpop.xlane.xlu0 %2868
        %2870 = vmax.xlane.f32.xlu0 %v2611
        %v2871 = vpop.xlane.xlu0 %2870
        %2872 = vmax.xlane.f32.xlu0 %v2612
        %v2873 = vpop.xlane.xlu0 %2872
        %2874 = vmax.xlane.f32.xlu0 %v2613
        %v2875 = vpop.xlane.xlu0 %2874
        %2876 = vmax.xlane.f32.xlu0 %v2614
        %v2877 = vpop.xlane.xlu0 %2876
        %2878 = vmax.xlane.f32.xlu0 %v2615
        %v2879 = vpop.xlane.xlu0 %2878
        %2880 = vmax.xlane.f32.xlu0 %v2616
        %v2881 = vpop.xlane.xlu0 %2880
        %2882 = vmax.xlane.f32.xlu0 %v2617
        %v2883 = vpop.xlane.xlu0 %2882
        %2884 = vmax.xlane.f32.xlu0 %v2618
        %v2885 = vpop.xlane.xlu0 %2884
        %2886 = vmax.xlane.f32.xlu0 %v2619
        %v2887 = vpop.xlane.xlu0 %2886
        %2888 = vmax.xlane.f32.xlu0 %v2620
        %v2889 = vpop.xlane.xlu0 %2888
        %2890 = vmax.xlane.f32.xlu0 %v2621
        %v2891 = vpop.xlane.xlu0 %2890
        %2892 = vmax.xlane.f32.xlu0 %v2622
        %v2893 = vpop.xlane.xlu0 %2892
        %2894 = vmax.xlane.f32.xlu0 %v2623
        %v2895 = vpop.xlane.xlu0 %2894
        %2896 = vmax.xlane.f32.xlu0 %v2624
        %v2897 = vpop.xlane.xlu0 %2896
        %2898 = vmax.xlane.f32.xlu0 %v2625
        %v2899 = vpop.xlane.xlu0 %2898
        %v2900 = vsub.f32 %v2610, %v2869
        %v2901 = vsub.f32 %v2611, %v2871
        %v2902 = vsub.f32 %v2612, %v2873
        %v2903 = vsub.f32 %v2613, %v2875
        %v2904 = vsub.f32 %v2614, %v2877
        %v2905 = vsub.f32 %v2615, %v2879
        %v2906 = vsub.f32 %v2616, %v2881
        %v2907 = vsub.f32 %v2617, %v2883
        %v2908 = vsub.f32 %v2618, %v2885
        %v2909 = vsub.f32 %v2619, %v2887
        %v2910 = vsub.f32 %v2620, %v2889
        %v2911 = vsub.f32 %v2621, %v2891
        %v2912 = vsub.f32 %v2622, %v2893
        %v2913 = vsub.f32 %v2623, %v2895
        %v2914 = vsub.f32 %v2624, %v2897
        %v2915 = vsub.f32 %v2625, %v2899
        %v2916 = vmul.f32 %v2900, 1.442695
        %v2917 = vpow.pop %v2916
        %v2918 = vmul.f32 %v2901, 1.442695
        %v2919 = vpow.pop %v2918
        %v2920 = vmul.f32 %v2902, 1.442695
        %v2921 = vpow.pop %v2920
        %v2922 = vmul.f32 %v2903, 1.442695
        %v2923 = vpow.pop %v2922
        %v2924 = vmul.f32 %v2904, 1.442695
        %v2925 = vpow.pop %v2924
        %v2926 = vmul.f32 %v2905, 1.442695
        %v2927 = vpow.pop %v2926
        %v2928 = vmul.f32 %v2906, 1.442695
        %v2929 = vpow.pop %v2928
        %v2930 = vmul.f32 %v2907, 1.442695
        %v2931 = vpow.pop %v2930
        %v2932 = vmul.f32 %v2908, 1.442695
        %v2933 = vpow.pop %v2932
        %v2934 = vmul.f32 %v2909, 1.442695
        %v2935 = vpow.pop %v2934
        %v2936 = vmul.f32 %v2910, 1.442695
        %v2937 = vpow.pop %v2936
        %v2938 = vmul.f32 %v2911, 1.442695
        %v2939 = vpow.pop %v2938
        %v2940 = vmul.f32 %v2912, 1.442695
        %v2941 = vpow.pop %v2940
        %v2942 = vmul.f32 %v2913, 1.442695
        %v2943 = vpow.pop %v2942
        %v2944 = vmul.f32 %v2914, 1.442695
        %v2945 = vpow.pop %v2944
        %v2946 = vmul.f32 %v2915, 1.442695
        %v2947 = vpow.pop %v2946
        %v2948 = vmul.f32 %v2917, %v544
        %v2949 = vmul.f32 %v2919, %v545
        %v2950 = vmul.f32 %v2921, %v546
        %v2951 = vmul.f32 %v2923, %v547
        %v2952 = vmul.f32 %v2925, %v548
        %v2953 = vmul.f32 %v2927, %v549
        %v2954 = vmul.f32 %v2929, %v550
        %v2955 = vmul.f32 %v2931, %v551
        %v2956 = vmul.f32 %v2933, %v552
        %v2957 = vmul.f32 %v2935, %v553
        %v2958 = vmul.f32 %v2937, %v554
        %v2959 = vmul.f32 %v2939, %v555
        %v2960 = vmul.f32 %v2941, %v556
        %v2961 = vmul.f32 %v2943, %v557
        %v2962 = vmul.f32 %v2945, %v558
        %v2963 = vmul.f32 %v2947, %v559
        %2964 = vadd.xlane.f32.xlu0 %v2948
        %v2965 = vpop.xlane.xlu0 %2964
        %2966 = vadd.xlane.f32.xlu0 %v2949
        %v2967 = vpop.xlane.xlu0 %2966
        %2968 = vadd.xlane.f32.xlu0 %v2950
        %v2969 = vpop.xlane.xlu0 %2968
        %2970 = vadd.xlane.f32.xlu0 %v2951
        %v2971 = vpop.xlane.xlu0 %2970
        %2972 = vadd.xlane.f32.xlu0 %v2952
        %v2973 = vpop.xlane.xlu0 %2972
        %2974 = vadd.xlane.f32.xlu0 %v2953
        %v2975 = vpop.xlane.xlu0 %2974
        %2976 = vadd.xlane.f32.xlu0 %v2954
        %v2977 = vpop.xlane.xlu0 %2976
        %2978 = vadd.xlane.f32.xlu0 %v2955
        %v2979 = vpop.xlane.xlu0 %2978
        %2980 = vadd.xlane.f32.xlu0 %v2956
        %v2981 = vpop.xlane.xlu0 %2980
        %2982 = vadd.xlane.f32.xlu0 %v2957
        %v2983 = vpop.xlane.xlu0 %2982
        %2984 = vadd.xlane.f32.xlu0 %v2958
        %v2985 = vpop.xlane.xlu0 %2984
        %2986 = vadd.xlane.f32.xlu0 %v2959
        %v2987 = vpop.xlane.xlu0 %2986
        %2988 = vadd.xlane.f32.xlu0 %v2960
        %v2989 = vpop.xlane.xlu0 %2988
        %2990 = vadd.xlane.f32.xlu0 %v2961
        %v2991 = vpop.xlane.xlu0 %2990
        %2992 = vadd.xlane.f32.xlu0 %v2962
        %v2993 = vpop.xlane.xlu0 %2992
        %2994 = vadd.xlane.f32.xlu0 %v2963
        %v2995 = vpop.xlane.xlu0 %2994
        %v2996 = vmax.f32 %v2965, 1e-20
        %v2997 = vmax.f32 %v2967, 1e-20
        %v2998 = vmax.f32 %v2969, 1e-20
        %v2999 = vmax.f32 %v2971, 1e-20
        %v3000 = vmax.f32 %v2973, 1e-20
        %v3001 = vmax.f32 %v2975, 1e-20
        %v3002 = vmax.f32 %v2977, 1e-20
        %v3003 = vmax.f32 %v2979, 1e-20
        %v3004 = vmax.f32 %v2981, 1e-20
        %v3005 = vmax.f32 %v2983, 1e-20
        %v3006 = vmax.f32 %v2985, 1e-20
        %v3007 = vmax.f32 %v2987, 1e-20
        %v3008 = vmax.f32 %v2989, 1e-20
        %v3009 = vmax.f32 %v2991, 1e-20
        %v3010 = vmax.f32 %v2993, 1e-20
        %v3011 = vmax.f32 %v2995, 1e-20
        %v3012 = vrcp.pop %v2996
        %v3013 = vrcp.pop %v2997
        %v3014 = vrcp.pop %v2998
        %v3015 = vrcp.pop %v2999
        %v3016 = vrcp.pop %v3000
        %v3017 = vrcp.pop %v3001
        %v3018 = vrcp.pop %v3002
        %v3019 = vrcp.pop %v3003
        %v3020 = vrcp.pop %v3004
        %v3021 = vrcp.pop %v3005
        %v3022 = vrcp.pop %v3006
        %v3023 = vrcp.pop %v3007
        %v3024 = vrcp.pop %v3008
        %v3025 = vrcp.pop %v3009
        %v3026 = vrcp.pop %v3010
        %v3027 = vrcp.pop %v3011
        %v3028 = vmul.f32 %v2948, %v3012
        %v3029 = vmul.f32 %v2949, %v3013
        %v3030 = vmul.f32 %v2950, %v3014
        %v3031 = vmul.f32 %v2951, %v3015
        %v3032 = vmul.f32 %v2952, %v3016
        %v3033 = vmul.f32 %v2953, %v3017
        %v3034 = vmul.f32 %v2954, %v3018
        %v3035 = vmul.f32 %v2955, %v3019
        %v3036 = vmul.f32 %v2956, %v3020
        %v3037 = vmul.f32 %v2957, %v3021
        %v3038 = vmul.f32 %v2958, %v3022
        %v3039 = vmul.f32 %v2959, %v3023
        %v3040 = vmul.f32 %v2960, %v3024
        %v3041 = vmul.f32 %v2961, %v3025
        %v3042 = vmul.f32 %v2962, %v3026
        %v3043 = vmul.f32 %v2963, %v3027
        %v3044 = vpack.c.bf16 %v3029, %v3028
        %v3045 = vpack.c.bf16 %v3031, %v3030
        %v3046 = vpack.c.bf16 %v3033, %v3032
        %v3047 = vpack.c.bf16 %v3035, %v3034
        %v3048 = vpack.c.bf16 %v3037, %v3036
        %v3049 = vpack.c.bf16 %v3039, %v3038
        %v3050 = vpack.c.bf16 %v3041, %v3040
        %v3051 = vpack.c.bf16 %v3043, %v3042
        %3060 = vrot.lane.b32.xlu0 %v2596, 96
        %v3061 = vpop.permute.xlu0 %3060
        %3062 = vrot.lane.b32.xlu0 %v2597, 96
        %v3063 = vpop.permute.xlu0 %3062
        %3064 = vrot.lane.b32.xlu0 %v2598, 96
        %v3065 = vpop.permute.xlu0 %3064
        %3066 = vrot.lane.b32.xlu0 %v2599, 96
        %v3067 = vpop.permute.xlu0 %3066
        %3068 = vrot.lane.b32.xlu0 %v2600, 96
        %v3069 = vpop.permute.xlu0 %3068
        %3070 = vrot.lane.b32.xlu0 %v2601, 96
        %v3071 = vpop.permute.xlu0 %3070
        %3072 = vrot.lane.b32.xlu0 %v2602, 96
        %v3073 = vpop.permute.xlu0 %3072
        %3074 = vrot.lane.b32.xlu0 %v2603, 96
        %v3075 = vpop.permute.xlu0 %3074
        %3084 = vmatprep.subr.bf16.mxu0 0
        %3085 = vmatpush1.bf16.msra.mxu0 %v3061
        %3086 = vmatprep.subr.bf16.mxu0 0
        %3087 = vmatpush1.bf16.msra.mxu0 %v3063
        %3088 = vmatprep.subr.bf16.mxu0 0
        %3089 = vmatpush1.bf16.msra.mxu0 %v3065
        %3090 = vmatprep.subr.bf16.mxu0 0
        %3091 = vmatpush1.bf16.msra.mxu0 %v3067
        %3092 = vmatprep.subr.bf16.mxu0 0
        %3093 = vmatpush1.bf16.msra.mxu0 %v3069
        %3094 = vmatprep.subr.bf16.mxu0 0
        %3095 = vmatpush1.bf16.msra.mxu0 %v3071
        %3096 = vmatprep.subr.bf16.mxu0 0
        %3097 = vmatpush1.bf16.msra.mxu0 %v3073
        %3098 = vmatprep.subr.bf16.mxu0 0
        %3099 = vmatpush1.bf16.msra.mxu0 %v3075
        %3100 = vmatprep.subr.bf16.mxu0 0
        %3101 = vmatpush1.bf16.msra.mxu0 0
        %3102 = vmatprep.subr.bf16.mxu0 0
        %3103 = vmatpush1.bf16.msra.mxu0 0
        %3104 = vmatprep.subr.bf16.mxu0 0
        %3105 = vmatpush1.bf16.msra.mxu0 0
        %3106 = vmatprep.subr.bf16.mxu0 0
        %3107 = vmatpush1.bf16.msra.mxu0 0
        %3108 = vmatprep.subr.bf16.mxu0 0
        %3109 = vmatpush1.bf16.msra.mxu0 0
        %3110 = vmatprep.subr.bf16.mxu0 0
        %3111 = vmatpush1.bf16.msra.mxu0 0
        %3112 = vmatprep.subr.bf16.mxu0 0
        %3113 = vmatpush1.bf16.msra.mxu0 0
        %3114 = vmatprep.subr.bf16.mxu0 0
        %3115 = vmatpush1.bf16.msra.mxu0 0
        %3116 = vmatprep.mubr.bf16.mxu0 0
        %3117 = vmatmul.mubr.bf16.gmra.mrb[0].mxu0 %v3044
        %v3118 = vpop.f32.mrb[0].mxu0
        %v3119 = vadd.f32 0.0, %v3118
        %v3120 = vpop.f32.mrb[0].mxu0
        %v3121 = vpop.f32.mrb[0].mxu0
        %v3122 = vadd.f32 0.0, %v3121
        %v3123 = vpop.f32.mrb[0].mxu0
        %3124 = vmatprep.mubr.bf16.mxu0 0
        %3125 = vmatmul.mubr.bf16.gmra.mrb[0].mxu0 %v3045
        %v3126 = vpop.f32.mrb[0].mxu0
        %v3127 = vadd.f32 0.0, %v3126
        %v3128 = vpop.f32.mrb[0].mxu0
        %v3129 = vpop.f32.mrb[0].mxu0
        %v3130 = vadd.f32 0.0, %v3129
        %v3131 = vpop.f32.mrb[0].mxu0
        %3132 = vmatprep.mubr.bf16.mxu0 0
        %3133 = vmatmul.mubr.bf16.gmra.mrb[0].mxu0 %v3046
        %v3134 = vpop.f32.mrb[0].mxu0
        %v3135 = vadd.f32 0.0, %v3134
        %v3136 = vpop.f32.mrb[0].mxu0
        %v3137 = vpop.f32.mrb[0].mxu0
        %v3138 = vadd.f32 0.0, %v3137
        %v3139 = vpop.f32.mrb[0].mxu0
        %3140 = vmatprep.mubr.bf16.mxu0 0
        %3141 = vmatmul.mubr.bf16.gmra.mrb[0].mxu0 %v3047
        %v3142 = vpop.f32.mrb[0].mxu0
        %v3143 = vadd.f32 0.0, %v3142
        %v3144 = vpop.f32.mrb[0].mxu0
        %v3145 = vpop.f32.mrb[0].mxu0
        %v3146 = vadd.f32 0.0, %v3145
        %v3147 = vpop.f32.mrb[0].mxu0
        %3148 = vmatprep.mubr.bf16.mxu0 0
        %3149 = vmatmul.mubr.bf16.gmra.mrb[0].mxu0 %v3048
        %v3150 = vpop.f32.mrb[0].mxu0
        %v3151 = vadd.f32 0.0, %v3150
        %v3152 = vpop.f32.mrb[0].mxu0
        %v3153 = vpop.f32.mrb[0].mxu0
        %v3154 = vadd.f32 0.0, %v3153
        %v3155 = vpop.f32.mrb[0].mxu0
        %3156 = vmatprep.mubr.bf16.mxu0 0
        %3157 = vmatmul.mubr.bf16.gmra.mrb[0].mxu0 %v3049
        %v3158 = vpop.f32.mrb[0].mxu0
        %v3159 = vadd.f32 0.0, %v3158
        %v3160 = vpop.f32.mrb[0].mxu0
        %v3161 = vpop.f32.mrb[0].mxu0
        %v3162 = vadd.f32 0.0, %v3161
        %v3163 = vpop.f32.mrb[0].mxu0
        %3164 = vmatprep.mubr.bf16.mxu0 0
        %3165 = vmatmul.mubr.bf16.gmra.mrb[0].mxu0 %v3050
        %v3166 = vpop.f32.mrb[0].mxu0
        %v3167 = vadd.f32 0.0, %v3166
        %v3168 = vpop.f32.mrb[0].mxu0
        %v3169 = vpop.f32.mrb[0].mxu0
        %v3170 = vadd.f32 0.0, %v3169
        %v3171 = vpop.f32.mrb[0].mxu0
        %3172 = vmatprep.mubr.bf16.mxu0 0
        %3173 = vmatmul.mubr.bf16.gmra.mrb[0].mxu0 %v3051
        %v3174 = vpop.f32.mrb[0].mxu0
        %v3175 = vadd.f32 0.0, %v3174
        %v3176 = vpop.f32.mrb[0].mxu0
        %v3177 = vpop.f32.mrb[0].mxu0
        %v3178 = vadd.f32 0.0, %v3177
        %v3179 = vpop.f32.mrb[0].mxu0
        %3180 = vdwg.mxu0
        %3181 = vmatprep.subr.bf16.mxu0 0
        %3182 = vmatpush1.bf16.msra.mxu0 %v2596
        %3183 = vmatprep.subr.bf16.mxu0 0
        %3184 = vmatpush1.bf16.msra.mxu0 %v2597
        %3185 = vmatprep.subr.bf16.mxu0 0
        %3186 = vmatpush1.bf16.msra.mxu0 %v2598
        %3187 = vmatprep.subr.bf16.mxu0 0
        %3188 = vmatpush1.bf16.msra.mxu0 %v2599
        %3189 = vmatprep.subr.bf16.mxu0 0
        %3190 = vmatpush1.bf16.msra.mxu0 %v2600
        %3191 = vmatprep.subr.bf16.mxu0 0
        %3192 = vmatpush1.bf16.msra.mxu0 %v2601
        %3193 = vmatprep.subr.bf16.mxu0 0
        %3194 = vmatpush1.bf16.msra.mxu0 %v2602
        %3195 = vmatprep.subr.bf16.mxu0 0
        %3196 = vmatpush1.bf16.msra.mxu0 %v2603
        %3197 = vmatprep.subr.bf16.mxu0 0
        %3198 = vmatpush1.bf16.msra.mxu0 0
        %3199 = vmatprep.subr.bf16.mxu0 0
        %3200 = vmatpush1.bf16.msra.mxu0 0
        %3201 = vmatprep.subr.bf16.mxu0 0
        %3202 = vmatpush1.bf16.msra.mxu0 0
        %3203 = vmatprep.subr.bf16.mxu0 0
        %3204 = vmatpush1.bf16.msra.mxu0 0
        %3205 = vmatprep.subr.bf16.mxu0 0
        %3206 = vmatpush1.bf16.msra.mxu0 0
        %3207 = vmatprep.subr.bf16.mxu0 0
        %3208 = vmatpush1.bf16.msra.mxu0 0
        %3209 = vmatprep.subr.bf16.mxu0 0
        %3210 = vmatpush1.bf16.msra.mxu0 0
        %3211 = vmatprep.subr.bf16.mxu0 0
        %3212 = vmatpush1.bf16.msra.mxu0 0
        %3213 = vmatprep.mubr.bf16.mxu0 0
        %3214 = vmatmul.mubr.bf16.gmra.mrb[0].mxu0 %v2588
        %v3215 = vpop.f32.mrb[0].mxu0
        %v3216 = vadd.f32 %v3119, %v3215
        %v3217 = vpop.f32.mrb[0].mxu0
        %v3218 = vpop.f32.mrb[0].mxu0
        %v3219 = vadd.f32 %v3122, %v3218
        %v3220 = vpop.f32.mrb[0].mxu0
        %3221 = vmatprep.mubr.bf16.mxu0 0
        %3222 = vmatmul.mubr.bf16.gmra.mrb[0].mxu0 %v2589
        %v3223 = vpop.f32.mrb[0].mxu0
        %v3224 = vadd.f32 %v3127, %v3223
        %v3225 = vpop.f32.mrb[0].mxu0
        %v3226 = vpop.f32.mrb[0].mxu0
        %v3227 = vadd.f32 %v3130, %v3226
        %v3228 = vpop.f32.mrb[0].mxu0
        %3229 = vmatprep.mubr.bf16.mxu0 0
        %3230 = vmatmul.mubr.bf16.gmra.mrb[0].mxu0 %v2590
        %v3231 = vpop.f32.mrb[0].mxu0
        %v3232 = vadd.f32 %v3135, %v3231
        %v3233 = vpop.f32.mrb[0].mxu0
        %v3234 = vpop.f32.mrb[0].mxu0
        %v3235 = vadd.f32 %v3138, %v3234
        %v3236 = vpop.f32.mrb[0].mxu0
        %3237 = vmatprep.mubr.bf16.mxu0 0
        %3238 = vmatmul.mubr.bf16.gmra.mrb[0].mxu0 %v2591
        %v3239 = vpop.f32.mrb[0].mxu0
        %v3240 = vadd.f32 %v3143, %v3239
        %v3241 = vpop.f32.mrb[0].mxu0
        %v3242 = vpop.f32.mrb[0].mxu0
        %v3243 = vadd.f32 %v3146, %v3242
        %v3244 = vpop.f32.mrb[0].mxu0
        %3245 = vmatprep.mubr.bf16.mxu0 0
        %3246 = vmatmul.mubr.bf16.gmra.mrb[0].mxu0 %v2592
        %v3247 = vpop.f32.mrb[0].mxu0
        %v3248 = vadd.f32 %v3151, %v3247
        %v3249 = vpop.f32.mrb[0].mxu0
        %v3250 = vpop.f32.mrb[0].mxu0
        %v3251 = vadd.f32 %v3154, %v3250
        %v3252 = vpop.f32.mrb[0].mxu0
        %3253 = vmatprep.mubr.bf16.mxu0 0
        %3254 = vmatmul.mubr.bf16.gmra.mrb[0].mxu0 %v2593
        %v3255 = vpop.f32.mrb[0].mxu0
        %v3256 = vadd.f32 %v3159, %v3255
        %v3257 = vpop.f32.mrb[0].mxu0
        %v3258 = vpop.f32.mrb[0].mxu0
        %v3259 = vadd.f32 %v3162, %v3258
        %v3260 = vpop.f32.mrb[0].mxu0
        %3261 = vmatprep.mubr.bf16.mxu0 0
        %3262 = vmatmul.mubr.bf16.gmra.mrb[0].mxu0 %v2594
        %v3263 = vpop.f32.mrb[0].mxu0
        %v3264 = vadd.f32 %v3167, %v3263
        %v3265 = vpop.f32.mrb[0].mxu0
        %v3266 = vpop.f32.mrb[0].mxu0
        %v3267 = vadd.f32 %v3170, %v3266
        %v3268 = vpop.f32.mrb[0].mxu0
        %3269 = vmatprep.mubr.bf16.mxu0 0
        %3270 = vmatmul.mubr.bf16.gmra.mrb[0].mxu0 %v2595
        %v3271 = vpop.f32.mrb[0].mxu0
        %v3272 = vadd.f32 %v3175, %v3271
        %v3273 = vpop.f32.mrb[0].mxu0
        %v3274 = vpop.f32.mrb[0].mxu0
        %v3275 = vadd.f32 %v3178, %v3274
        %v3276 = vpop.f32.mrb[0].mxu0
        %3277 = vdwg.mxu0
        %v3278 = vmul.f32 %v3216, 0.5
        %v3279 = vmul.f32 %v3219, 0.5
        %v3280 = vmul.f32 %v3224, 0.5
        %v3281 = vmul.f32 %v3227, 0.5
        %v3282 = vmul.f32 %v3232, 0.5
        %v3283 = vmul.f32 %v3235, 0.5
        %v3284 = vmul.f32 %v3240, 0.5
        %v3285 = vmul.f32 %v3243, 0.5
        %v3286 = vmul.f32 %v3248, 0.5
        %v3287 = vmul.f32 %v3251, 0.5
        %v3288 = vmul.f32 %v3256, 0.5
        %v3289 = vmul.f32 %v3259, 0.5
        %v3290 = vmul.f32 %v3264, 0.5
        %v3291 = vmul.f32 %v3267, 0.5
        %v3292 = vmul.f32 %v3272, 0.5
        %v3293 = vmul.f32 %v3275, 0.5
        %v3294 = vld [vmem:[%s9] sm:$0x1]
        %v3296 = vlaneseq
        %v3297 = vshrl.u32 %v3296, 7
        %v3298 = vsub.s32 0, %v3297
        %v3299 = vrot.slane %v3294, %v3298
        %v3301 = vadd.f32 %v3278, %v3299
        %v3302 = vadd.f32 %v3279, %v3299
        %v3303 = vadd.f32 %v3280, %v3299
        %v3304 = vadd.f32 %v3281, %v3299
        %v3305 = vadd.f32 %v3282, %v3299
        %v3306 = vadd.f32 %v3283, %v3299
        %v3307 = vadd.f32 %v3284, %v3299
        %v3308 = vadd.f32 %v3285, %v3299
        %v3309 = vadd.f32 %v3286, %v3299
        %v3310 = vadd.f32 %v3287, %v3299
        %v3311 = vadd.f32 %v3288, %v3299
        %v3312 = vadd.f32 %v3289, %v3299
        %v3313 = vadd.f32 %v3290, %v3299
        %v3314 = vadd.f32 %v3291, %v3299
        %v3315 = vadd.f32 %v3292, %v3299
        %v3316 = vadd.f32 %v3293, %v3299
        %v3317 = vmax.f32 %v3301, 0.0
        %v3318 = vmax.f32 %v3302, 0.0
        %v3319 = vmax.f32 %v3303, 0.0
        %v3320 = vmax.f32 %v3304, 0.0
        %v3321 = vmax.f32 %v3305, 0.0
        %v3322 = vmax.f32 %v3306, 0.0
        %v3323 = vmax.f32 %v3307, 0.0
        %v3324 = vmax.f32 %v3308, 0.0
        %v3325 = vmax.f32 %v3309, 0.0
        %v3326 = vmax.f32 %v3310, 0.0
        %v3327 = vmax.f32 %v3311, 0.0
        %v3328 = vmax.f32 %v3312, 0.0
        %v3329 = vmax.f32 %v3313, 0.0
        %v3330 = vmax.f32 %v3314, 0.0
        %v3331 = vmax.f32 %v3315, 0.0
        %v3332 = vmax.f32 %v3316, 0.0
        %v3333 = vpack.c.bf16 %v3318, %v3317
        %v3334 = vpack.c.bf16 %v3320, %v3319
        %v3335 = vpack.c.bf16 %v3322, %v3321
        %v3336 = vpack.c.bf16 %v3324, %v3323
        %v3337 = vpack.c.bf16 %v3326, %v3325
        %v3338 = vpack.c.bf16 %v3328, %v3327
        %v3339 = vpack.c.bf16 %v3330, %v3329
        %v3340 = vpack.c.bf16 %v3332, %v3331
        %v3341 = vld [vmem:[%s10] sm:$0xf]
        %v3342 = vld [vmem:[%s10 + $0x4] sm:$0xf]
        %v3343 = vld [vmem:[%s10 + $0x8] sm:$0xf]
        %v3344 = vld [vmem:[%s10 + $0xc] sm:$0xf]
        %v3345 = vld [vmem:[%s11] sm:$0x1]
        %v3347 = vlaneseq
        %v3348 = vshrl.u32 %v3347, 7
        %v3349 = vsub.s32 0, %v3348
        %v3350 = vrot.slane %v3345, %v3349
        %v3356 = vunpack.c.l.b16 %v3341
        %v3357 = vunpack.c.l.b16 %v3342
        %v3358 = vunpack.c.l.b16 %v3343
        %v3359 = vunpack.c.l.b16 %v3344
        %v3360 = vpack.c.b16 %v3357, %v3356
        %v3361 = vpack.c.b16 %v3359, %v3358
        %v3365 = vsel %vm607, %v3333, 0
        %v3368 = vsel %vm607, %v3334, 0
        %v3371 = vsel %vm607, %v3335, 0
        %v3374 = vsel %vm607, %v3336, 0
        %v3377 = vsel %vm607, %v3337, 0
        %v3380 = vsel %vm607, %v3338, 0
        %v3383 = vsel %vm607, %v3339, 0
        %v3386 = vsel %vm607, %v3340, 0
        %3388 = vmatprep.subr.bf16.mxu0 0
        %3389 = vmatpush1.bf16.msra.mxu0 %v3360
        %3390 = vmatprep.subr.bf16.mxu0 0
        %3391 = vmatpush1.bf16.msra.mxu0 %v3361
        %3392 = vmatprep.subr.bf16.mxu0 0
        %3393 = vmatpush1.bf16.msra.mxu0 0
        %3394 = vmatprep.subr.bf16.mxu0 0
        %3395 = vmatpush1.bf16.msra.mxu0 0
        %3396 = vmatprep.subr.bf16.mxu0 0
        %3397 = vmatpush1.bf16.msra.mxu0 0
        %3398 = vmatprep.subr.bf16.mxu0 0
        %3399 = vmatpush1.bf16.msra.mxu0 0
        %3400 = vmatprep.subr.bf16.mxu0 0
        %3401 = vmatpush1.bf16.msra.mxu0 0
        %3402 = vmatprep.subr.bf16.mxu0 0
        %3403 = vmatpush1.bf16.msra.mxu0 0
        %3404 = vmatprep.subr.bf16.mxu0 0
        %3405 = vmatpush1.bf16.msra.mxu0 0
        %3406 = vmatprep.subr.bf16.mxu0 0
        %3407 = vmatpush1.bf16.msra.mxu0 0
        %3408 = vmatprep.subr.bf16.mxu0 0
        %3409 = vmatpush1.bf16.msra.mxu0 0
        %3410 = vmatprep.subr.bf16.mxu0 0
        %3411 = vmatpush1.bf16.msra.mxu0 0
        %3412 = vmatprep.subr.bf16.mxu0 0
        %3413 = vmatpush1.bf16.msra.mxu0 0
        %3414 = vmatprep.subr.bf16.mxu0 0
        %3415 = vmatpush1.bf16.msra.mxu0 0
        %3416 = vmatprep.subr.bf16.mxu0 0
        %3417 = vmatpush1.bf16.msra.mxu0 0
        %3418 = vmatprep.subr.bf16.mxu0 0
        %3419 = vmatpush1.bf16.msra.mxu0 0
        %3420 = vmatprep.mubr.bf16.mxu0 0
        %3421 = vmatmul.mubr.bf16.gmra.mrb[0].mxu0 %v3365
        %v3422 = vpop.f32.mrb[0].mxu0
        %v3423 = vadd.f32 %v3350, %v3422
        %v3424 = vpop.f32.mrb[0].mxu0
        %v3425 = vpop.f32.mrb[0].mxu0
        %v3426 = vadd.f32 %v3350, %v3425
        %v3427 = vpop.f32.mrb[0].mxu0
        %3428 = vmatprep.mubr.bf16.mxu0 0
        %3429 = vmatmul.mubr.bf16.gmra.mrb[0].mxu0 %v3368
        %v3430 = vpop.f32.mrb[0].mxu0
        %v3431 = vadd.f32 %v3350, %v3430
        %v3432 = vpop.f32.mrb[0].mxu0
        %v3433 = vpop.f32.mrb[0].mxu0
        %v3434 = vadd.f32 %v3350, %v3433
        %v3435 = vpop.f32.mrb[0].mxu0
        %3436 = vmatprep.mubr.bf16.mxu0 0
        %3437 = vmatmul.mubr.bf16.gmra.mrb[0].mxu0 %v3371
        %v3438 = vpop.f32.mrb[0].mxu0
        %v3439 = vadd.f32 %v3350, %v3438
        %v3440 = vpop.f32.mrb[0].mxu0
        %v3441 = vpop.f32.mrb[0].mxu0
        %v3442 = vadd.f32 %v3350, %v3441
        %v3443 = vpop.f32.mrb[0].mxu0
        %3444 = vmatprep.mubr.bf16.mxu0 0
        %3445 = vmatmul.mubr.bf16.gmra.mrb[0].mxu0 %v3374
        %v3446 = vpop.f32.mrb[0].mxu0
        %v3447 = vadd.f32 %v3350, %v3446
        %v3448 = vpop.f32.mrb[0].mxu0
        %v3449 = vpop.f32.mrb[0].mxu0
        %v3450 = vadd.f32 %v3350, %v3449
        %v3451 = vpop.f32.mrb[0].mxu0
        %3452 = vmatprep.mubr.bf16.mxu0 0
        %3453 = vmatmul.mubr.bf16.gmra.mrb[0].mxu0 %v3377
        %v3454 = vpop.f32.mrb[0].mxu0
        %v3455 = vadd.f32 %v3350, %v3454
        %v3456 = vpop.f32.mrb[0].mxu0
        %v3457 = vpop.f32.mrb[0].mxu0
        %v3458 = vadd.f32 %v3350, %v3457
        %v3459 = vpop.f32.mrb[0].mxu0
        %3460 = vmatprep.mubr.bf16.mxu0 0
        %3461 = vmatmul.mubr.bf16.gmra.mrb[0].mxu0 %v3380
        %v3462 = vpop.f32.mrb[0].mxu0
        %v3463 = vadd.f32 %v3350, %v3462
        %v3464 = vpop.f32.mrb[0].mxu0
        %v3465 = vpop.f32.mrb[0].mxu0
        %v3466 = vadd.f32 %v3350, %v3465
        %v3467 = vpop.f32.mrb[0].mxu0
        %3468 = vmatprep.mubr.bf16.mxu0 0
        %3469 = vmatmul.mubr.bf16.gmra.mrb[0].mxu0 %v3383
        %v3470 = vpop.f32.mrb[0].mxu0
        %v3471 = vadd.f32 %v3350, %v3470
        %v3472 = vpop.f32.mrb[0].mxu0
        %v3473 = vpop.f32.mrb[0].mxu0
        %v3474 = vadd.f32 %v3350, %v3473
        %v3475 = vpop.f32.mrb[0].mxu0
        %3476 = vmatprep.mubr.bf16.mxu0 0
        %3477 = vmatmul.mubr.bf16.gmra.mrb[0].mxu0 %v3386
        %v3478 = vpop.f32.mrb[0].mxu0
        %v3479 = vadd.f32 %v3350, %v3478
        %v3480 = vpop.f32.mrb[0].mxu0
        %v3481 = vpop.f32.mrb[0].mxu0
        %v3482 = vadd.f32 %v3350, %v3481
        %v3483 = vpop.f32.mrb[0].mxu0
        %3484 = vdwg.mxu0
        %3485 = vxpose.xlu0.b32.start [1/16] %v3423, 128
        %3486 = vxpose.xlu0.b32.cont [2/16] %v3426, 128
        %3487 = vxpose.xlu0.b32.cont [3/16] %v3431, 128
        %3488 = vxpose.xlu0.b32.cont [4/16] %v3434, 128
        %3489 = vxpose.xlu0.b32.cont [5/16] %v3439, 128
        %3490 = vxpose.xlu0.b32.cont [6/16] %v3442, 128
        %3491 = vxpose.xlu0.b32.cont [7/16] %v3447, 128
        %3492 = vxpose.xlu0.b32.cont [8/16] %v3450, 128
        %3493 = vxpose.xlu0.b32.cont [9/16] %v3455, 128
        %3494 = vxpose.xlu0.b32.cont [10/16] %v3458, 128
        %3495 = vxpose.xlu0.b32.cont [11/16] %v3463, 128
        %3496 = vxpose.xlu0.b32.cont [12/16] %v3466, 128
        %3497 = vxpose.xlu0.b32.cont [13/16] %v3471, 128
        %3498 = vxpose.xlu0.b32.cont [14/16] %v3474, 128
        %3499 = vxpose.xlu0.b32.cont [15/16] %v3479, 128
        %3500 = vxpose.xlu0.b32.end [16/16] %v3482, 128
        %v3501 = vpop.trf.xlu0
        %v3502 = vpop.trf.xlu0
        %v3503 = vpop.trf.xlu0
        %v3504 = vpop.trf.xlu0
        %v3505 = vpop.trf.xlu0
        %v3506 = vpop.trf.xlu0
        %v3507 = vpop.trf.xlu0
        %v3508 = vpop.trf.xlu0
        %v3509 = vpop.trf.xlu0
        %v3510 = vpop.trf.xlu0
        %v3511 = vpop.trf.xlu0
        %v3512 = vpop.trf.xlu0
        %v3513 = vpop.trf.xlu0
        %v3514 = vpop.trf.xlu0
        %v3515 = vpop.trf.xlu0
        %v3516 = vpop.trf.xlu0
        %3517 = vst [vmem:[#allocation2] sm:$0xff] %v3501
        %3518 = vst [vmem:[#allocation2 + $0x8] sm:$0xff] %v3502
        %3519 = vst [vmem:[#allocation2 + $0x10] sm:$0xff] %v3503
        %3520 = vst [vmem:[#allocation2 + $0x18] sm:$0xff] %v3504
        %3521 = vst [vmem:[#allocation2 + $0x20] sm:$0xff] %v3505
        %3522 = vst [vmem:[#allocation2 + $0x28] sm:$0xff] %v3506
        %3523 = vst [vmem:[#allocation2 + $0x30] sm:$0xff] %v3507
        %3524 = vst [vmem:[#allocation2 + $0x38] sm:$0xff] %v3508
        %3525 = vst [vmem:[#allocation2 + $0x40] sm:$0xff] %v3509
        %3526 = vst [vmem:[#allocation2 + $0x48] sm:$0xff] %v3510
        %3527 = vst [vmem:[#allocation2 + $0x50] sm:$0xff] %v3511
        %3528 = vst [vmem:[#allocation2 + $0x58] sm:$0xff] %v3512
        %3529 = vst [vmem:[#allocation2 + $0x60] sm:$0xff] %v3513
        %3530 = vst [vmem:[#allocation2 + $0x68] sm:$0xff] %v3514
        %3531 = vst [vmem:[#allocation2 + $0x70] sm:$0xff] %v3515
        %3532 = vst [vmem:[#allocation2 + $0x78] sm:$0xff] %v3516
        loop: start=0, step=1, limit=32
        $region117: #{gnn6_forward.1} parent=75 // loop_pre_header
          _
        $region118: #{gnn6_forward.1} parent=75 // loop_header
          %s3534 = sphi 0, %s3538
          %p3535 = scmp.ge.s32.totalorder %s3534, 32
          %v3539 = vphi 0.0, %v3773
          %v3540 = vphi 0.0, %v3774
          %v3541 = vphi 0.0, %v3775
          %v3542 = vphi 0.0, %v3776
          %v3543 = vphi 0.0, %v3777
          %v3544 = vphi 0.0, %v3778
          %v3545 = vphi 0.0, %v3779
          %v3546 = vphi 0.0, %v3780
          %v3547 = vphi 0.0, %v3781
          %v3548 = vphi 0.0, %v3782
          %v3549 = vphi 0.0, %v3783
          %v3550 = vphi 0.0, %v3784
          %v3551 = vphi 0.0, %v3785
          %v3552 = vphi 0.0, %v3786
          %v3553 = vphi 0.0, %v3787
          %v3554 = vphi 0.0, %v3788
        $region119: #{gnn6_forward.1} parent=75 // loop_header_branch
          %3537 = sbr.rel (%p3535) target = $region123
        $region120: #{gnn6_forward.1} parent=75 // loop_body
          %v3555 = vstv %s3534
          %vm3556 = vcmp.eq.s32.totalorder %v778, %v3555
          %3573 = vrot.lane.b32.xlu0 %v3423, 64
          %v3574 = vpop.permute.xlu0 %3573
          %3575 = vrot.lane.b32.xlu0 %v3426, 64
          %v3576 = vpop.permute.xlu0 %3575
          %3577 = vrot.lane.b32.xlu0 %v3431, 64
          %v3578 = vpop.permute.xlu0 %3577
          %3579 = vrot.lane.b32.xlu0 %v3434, 64
          %v3580 = vpop.permute.xlu0 %3579
          %3581 = vrot.lane.b32.xlu0 %v3439, 64
          %v3582 = vpop.permute.xlu0 %3581
          %3583 = vrot.lane.b32.xlu0 %v3442, 64
          %v3584 = vpop.permute.xlu0 %3583
          %3585 = vrot.lane.b32.xlu0 %v3447, 64
          %v3586 = vpop.permute.xlu0 %3585
          %3587 = vrot.lane.b32.xlu0 %v3450, 64
          %v3588 = vpop.permute.xlu0 %3587
          %3589 = vrot.lane.b32.xlu0 %v3455, 64
          %v3590 = vpop.permute.xlu0 %3589
          %3591 = vrot.lane.b32.xlu0 %v3458, 64
          %v3592 = vpop.permute.xlu0 %3591
          %3593 = vrot.lane.b32.xlu0 %v3463, 64
          %v3594 = vpop.permute.xlu0 %3593
          %3595 = vrot.lane.b32.xlu0 %v3466, 64
          %v3596 = vpop.permute.xlu0 %3595
          %3597 = vrot.lane.b32.xlu0 %v3471, 64
          %v3598 = vpop.permute.xlu0 %3597
          %3599 = vrot.lane.b32.xlu0 %v3474, 64
          %v3600 = vpop.permute.xlu0 %3599
          %3601 = vrot.lane.b32.xlu0 %v3479, 64
          %v3602 = vpop.permute.xlu0 %3601
          %3603 = vrot.lane.b32.xlu0 %v3482, 64
          %v3604 = vpop.permute.xlu0 %3603
          %v3621 = vsel %vm3556, %v3574, 0.0
          %v3622 = vsel %vm3556, %v3576, 0.0
          %v3623 = vsel %vm3556, %v3578, 0.0
          %v3624 = vsel %vm3556, %v3580, 0.0
          %v3625 = vsel %vm3556, %v3582, 0.0
          %v3626 = vsel %vm3556, %v3584, 0.0
          %v3627 = vsel %vm3556, %v3586, 0.0
          %v3628 = vsel %vm3556, %v3588, 0.0
          %v3629 = vsel %vm3556, %v3590, 0.0
          %v3630 = vsel %vm3556, %v3592, 0.0
          %v3631 = vsel %vm3556, %v3594, 0.0
          %v3632 = vsel %vm3556, %v3596, 0.0
          %v3633 = vsel %vm3556, %v3598, 0.0
          %v3634 = vsel %vm3556, %v3600, 0.0
          %v3635 = vsel %vm3556, %v3602, 0.0
          %v3636 = vsel %vm3556, %v3604, 0.0
          %v3637 = vsel %vm607, %v3621, 0.0
          %3638 = vadd.xlane.f32.xlu0 %v3637
          %v3639 = vpop.xlane.xlu0 %3638
          %v3640 = vsel %vm607, %v3622, 0.0
          %3641 = vadd.xlane.f32.xlu0 %v3640
          %v3642 = vpop.xlane.xlu0 %3641
          %v3643 = vsel %vm607, %v3623, 0.0
          %3644 = vadd.xlane.f32.xlu0 %v3643
          %v3645 = vpop.xlane.xlu0 %3644
          %v3646 = vsel %vm607, %v3624, 0.0
          %3647 = vadd.xlane.f32.xlu0 %v3646
          %v3648 = vpop.xlane.xlu0 %3647
          %v3649 = vsel %vm607, %v3625, 0.0
          %3650 = vadd.xlane.f32.xlu0 %v3649
          %v3651 = vpop.xlane.xlu0 %3650
          %v3652 = vsel %vm607, %v3626, 0.0
          %3653 = vadd.xlane.f32.xlu0 %v3652
          %v3654 = vpop.xlane.xlu0 %3653
          %v3655 = vsel %vm607, %v3627, 0.0
          %3656 = vadd.xlane.f32.xlu0 %v3655
          %v3657 = vpop.xlane.xlu0 %3656
          %v3658 = vsel %vm607, %v3628, 0.0
          %3659 = vadd.xlane.f32.xlu0 %v3658
          %v3660 = vpop.xlane.xlu0 %3659
          %v3661 = vsel %vm607, %v3629, 0.0
          %3662 = vadd.xlane.f32.xlu0 %v3661
          %v3663 = vpop.xlane.xlu0 %3662
          %v3664 = vsel %vm607, %v3630, 0.0
          %3665 = vadd.xlane.f32.xlu0 %v3664
          %v3666 = vpop.xlane.xlu0 %3665
          %v3667 = vsel %vm607, %v3631, 0.0
          %3668 = vadd.xlane.f32.xlu0 %v3667
          %v3669 = vpop.xlane.xlu0 %3668
          %v3670 = vsel %vm607, %v3632, 0.0
          %3671 = vadd.xlane.f32.xlu0 %v3670
          %v3672 = vpop.xlane.xlu0 %3671
          %v3673 = vsel %vm607, %v3633, 0.0
          %3674 = vadd.xlane.f32.xlu0 %v3673
          %v3675 = vpop.xlane.xlu0 %3674
          %v3676 = vsel %vm607, %v3634, 0.0
          %3677 = vadd.xlane.f32.xlu0 %v3676
          %v3678 = vpop.xlane.xlu0 %3677
          %v3679 = vsel %vm607, %v3635, 0.0
          %3680 = vadd.xlane.f32.xlu0 %v3679
          %v3681 = vpop.xlane.xlu0 %3680
          %v3682 = vsel %vm607, %v3636, 0.0
          %3683 = vadd.xlane.f32.xlu0 %v3682
          %v3684 = vpop.xlane.xlu0 %3683
          %s3685 = scalar_lea.vmem [#allocation2], %s3534
          %v3686 = vld [vmem:[%s3685] sm:$0x1]
          %v3687 = vlaneseq
          %v3688 = vshrl.u32 %v3687, 7
          %v3689 = vsub.s32 0, %v3688
          %v3690 = vrot.slane %v3686, %v3689
          %v3691 = vadd.f32 %v3639, %v3690
          %v3692 = vadd.f32 %v3642, %v3690
          %v3693 = vadd.f32 %v3645, %v3690
          %v3694 = vadd.f32 %v3648, %v3690
          %v3695 = vadd.f32 %v3651, %v3690
          %v3696 = vadd.f32 %v3654, %v3690
          %v3697 = vadd.f32 %v3657, %v3690
          %v3698 = vadd.f32 %v3660, %v3690
          %v3699 = vadd.f32 %v3663, %v3690
          %v3700 = vadd.f32 %v3666, %v3690
          %v3701 = vadd.f32 %v3669, %v3690
          %v3702 = vadd.f32 %v3672, %v3690
          %v3703 = vadd.f32 %v3675, %v3690
          %v3704 = vadd.f32 %v3678, %v3690
          %v3705 = vadd.f32 %v3681, %v3690
          %v3706 = vadd.f32 %v3684, %v3690
          %vm3707 = vcmp.gt.f32.partialorder %v3691, 0.0
          %vm3708 = vcmp.gt.f32.partialorder %v3692, 0.0
          %vm3709 = vcmp.gt.f32.partialorder %v3693, 0.0
          %vm3710 = vcmp.gt.f32.partialorder %v3694, 0.0
          %vm3711 = vcmp.gt.f32.partialorder %v3695, 0.0
          %vm3712 = vcmp.gt.f32.partialorder %v3696, 0.0
          %vm3713 = vcmp.gt.f32.partialorder %v3697, 0.0
          %vm3714 = vcmp.gt.f32.partialorder %v3698, 0.0
          %vm3715 = vcmp.gt.f32.partialorder %v3699, 0.0
          %vm3716 = vcmp.gt.f32.partialorder %v3700, 0.0
          %vm3717 = vcmp.gt.f32.partialorder %v3701, 0.0
          %vm3718 = vcmp.gt.f32.partialorder %v3702, 0.0
          %vm3719 = vcmp.gt.f32.partialorder %v3703, 0.0
          %vm3720 = vcmp.gt.f32.partialorder %v3704, 0.0
          %vm3721 = vcmp.gt.f32.partialorder %v3705, 0.0
          %vm3722 = vcmp.gt.f32.partialorder %v3706, 0.0
          %v3723 = vmul.f32 %v3691, 0.2
          %v3724 = vmul.f32 %v3692, 0.2
          %v3725 = vmul.f32 %v3693, 0.2
          %v3726 = vmul.f32 %v3694, 0.2
          %v3727 = vmul.f32 %v3695, 0.2
          %v3728 = vmul.f32 %v3696, 0.2
          %v3729 = vmul.f32 %v3697, 0.2
          %v3730 = vmul.f32 %v3698, 0.2
          %v3731 = vmul.f32 %v3699, 0.2
          %v3732 = vmul.f32 %v3700, 0.2
          %v3733 = vmul.f32 %v3701, 0.2
          %v3734 = vmul.f32 %v3702, 0.2
          %v3735 = vmul.f32 %v3703, 0.2
          %v3736 = vmul.f32 %v3704, 0.2
          %v3737 = vmul.f32 %v3705, 0.2
          %v3738 = vmul.f32 %v3706, 0.2
          %v3739 = vsel %vm3707, %v3691, %v3723
          %v3740 = vsel %vm3708, %v3692, %v3724
          %v3741 = vsel %vm3709, %v3693, %v3725
          %v3742 = vsel %vm3710, %v3694, %v3726
          %v3743 = vsel %vm3711, %v3695, %v3727
          %v3744 = vsel %vm3712, %v3696, %v3728
          %v3745 = vsel %vm3713, %v3697, %v3729
          %v3746 = vsel %vm3714, %v3698, %v3730
          %v3747 = vsel %vm3715, %v3699, %v3731
          %v3748 = vsel %vm3716, %v3700, %v3732
          %v3749 = vsel %vm3717, %v3701, %v3733
          %v3750 = vsel %vm3718, %v3702, %v3734
          %v3751 = vsel %vm3719, %v3703, %v3735
          %v3752 = vsel %vm3720, %v3704, %v3736
          %v3753 = vsel %vm3721, %v3705, %v3737
          %v3754 = vsel %vm3722, %v3706, %v3738
          %s3755 = sld [smem:[#allocation7 + %s3534]]
          %v3756 = vstv %s3755
          %v3757 = vmul.f32 %v3756, %v3739
          %v3758 = vmul.f32 %v3756, %v3740
          %v3759 = vmul.f32 %v3756, %v3741
          %v3760 = vmul.f32 %v3756, %v3742
          %v3761 = vmul.f32 %v3756, %v3743
          %v3762 = vmul.f32 %v3756, %v3744
          %v3763 = vmul.f32 %v3756, %v3745
          %v3764 = vmul.f32 %v3756, %v3746
          %v3765 = vmul.f32 %v3756, %v3747
          %v3766 = vmul.f32 %v3756, %v3748
          %v3767 = vmul.f32 %v3756, %v3749
          %v3768 = vmul.f32 %v3756, %v3750
          %v3769 = vmul.f32 %v3756, %v3751
          %v3770 = vmul.f32 %v3756, %v3752
          %v3771 = vmul.f32 %v3756, %v3753
          %v3772 = vmul.f32 %v3756, %v3754
          %v3773 = vadd.f32 %v3539, %v3757
          %v3774 = vadd.f32 %v3540, %v3758
          %v3775 = vadd.f32 %v3541, %v3759
          %v3776 = vadd.f32 %v3542, %v3760
          %v3777 = vadd.f32 %v3543, %v3761
          %v3778 = vadd.f32 %v3544, %v3762
          %v3779 = vadd.f32 %v3545, %v3763
          %v3780 = vadd.f32 %v3546, %v3764
          %v3781 = vadd.f32 %v3547, %v3765
          %v3782 = vadd.f32 %v3548, %v3766
          %v3783 = vadd.f32 %v3549, %v3767
          %v3784 = vadd.f32 %v3550, %v3768
          %v3785 = vadd.f32 %v3551, %v3769
          %v3786 = vadd.f32 %v3552, %v3770
          %v3787 = vadd.f32 %v3553, %v3771
          %v3788 = vadd.f32 %v3554, %v3772
        $region121: #{gnn6_forward.1} parent=75 // loop_footer
          %s3538 = sadd.s32 1, %s3534
        $region122: #{gnn6_forward.1} parent=75 // loop_footer_branch
          %3533 = sbr.rel target = $region118
        $region123: #{gnn6_forward.1} parent=75 // loop_exit
          _
        %3789 = vmax.xlane.f32.xlu0 %v3539
        %v3790 = vpop.xlane.xlu0 %3789
        %3791 = vmax.xlane.f32.xlu0 %v3540
        %v3792 = vpop.xlane.xlu0 %3791
        %3793 = vmax.xlane.f32.xlu0 %v3541
        %v3794 = vpop.xlane.xlu0 %3793
        %3795 = vmax.xlane.f32.xlu0 %v3542
        %v3796 = vpop.xlane.xlu0 %3795
        %3797 = vmax.xlane.f32.xlu0 %v3543
        %v3798 = vpop.xlane.xlu0 %3797
        %3799 = vmax.xlane.f32.xlu0 %v3544
        %v3800 = vpop.xlane.xlu0 %3799
        %3801 = vmax.xlane.f32.xlu0 %v3545
        %v3802 = vpop.xlane.xlu0 %3801
        %3803 = vmax.xlane.f32.xlu0 %v3546
        %v3804 = vpop.xlane.xlu0 %3803
        %3805 = vmax.xlane.f32.xlu0 %v3547
        %v3806 = vpop.xlane.xlu0 %3805
        %3807 = vmax.xlane.f32.xlu0 %v3548
        %v3808 = vpop.xlane.xlu0 %3807
        %3809 = vmax.xlane.f32.xlu0 %v3549
        %v3810 = vpop.xlane.xlu0 %3809
        %3811 = vmax.xlane.f32.xlu0 %v3550
        %v3812 = vpop.xlane.xlu0 %3811
        %3813 = vmax.xlane.f32.xlu0 %v3551
        %v3814 = vpop.xlane.xlu0 %3813
        %3815 = vmax.xlane.f32.xlu0 %v3552
        %v3816 = vpop.xlane.xlu0 %3815
        %3817 = vmax.xlane.f32.xlu0 %v3553
        %v3818 = vpop.xlane.xlu0 %3817
        %3819 = vmax.xlane.f32.xlu0 %v3554
        %v3820 = vpop.xlane.xlu0 %3819
        %v3821 = vsub.f32 %v3539, %v3790
        %v3822 = vsub.f32 %v3540, %v3792
        %v3823 = vsub.f32 %v3541, %v3794
        %v3824 = vsub.f32 %v3542, %v3796
        %v3825 = vsub.f32 %v3543, %v3798
        %v3826 = vsub.f32 %v3544, %v3800
        %v3827 = vsub.f32 %v3545, %v3802
        %v3828 = vsub.f32 %v3546, %v3804
        %v3829 = vsub.f32 %v3547, %v3806
        %v3830 = vsub.f32 %v3548, %v3808
        %v3831 = vsub.f32 %v3549, %v3810
        %v3832 = vsub.f32 %v3550, %v3812
        %v3833 = vsub.f32 %v3551, %v3814
        %v3834 = vsub.f32 %v3552, %v3816
        %v3835 = vsub.f32 %v3553, %v3818
        %v3836 = vsub.f32 %v3554, %v3820
        %v3837 = vmul.f32 %v3821, 1.442695
        %v3838 = vpow.pop %v3837
        %v3839 = vmul.f32 %v3822, 1.442695
        %v3840 = vpow.pop %v3839
        %v3841 = vmul.f32 %v3823, 1.442695
        %v3842 = vpow.pop %v3841
        %v3843 = vmul.f32 %v3824, 1.442695
        %v3844 = vpow.pop %v3843
        %v3845 = vmul.f32 %v3825, 1.442695
        %v3846 = vpow.pop %v3845
        %v3847 = vmul.f32 %v3826, 1.442695
        %v3848 = vpow.pop %v3847
        %v3849 = vmul.f32 %v3827, 1.442695
        %v3850 = vpow.pop %v3849
        %v3851 = vmul.f32 %v3828, 1.442695
        %v3852 = vpow.pop %v3851
        %v3853 = vmul.f32 %v3829, 1.442695
        %v3854 = vpow.pop %v3853
        %v3855 = vmul.f32 %v3830, 1.442695
        %v3856 = vpow.pop %v3855
        %v3857 = vmul.f32 %v3831, 1.442695
        %v3858 = vpow.pop %v3857
        %v3859 = vmul.f32 %v3832, 1.442695
        %v3860 = vpow.pop %v3859
        %v3861 = vmul.f32 %v3833, 1.442695
        %v3862 = vpow.pop %v3861
        %v3863 = vmul.f32 %v3834, 1.442695
        %v3864 = vpow.pop %v3863
        %v3865 = vmul.f32 %v3835, 1.442695
        %v3866 = vpow.pop %v3865
        %v3867 = vmul.f32 %v3836, 1.442695
        %v3868 = vpow.pop %v3867
        %v3869 = vmul.f32 %v3838, %v544
        %v3870 = vmul.f32 %v3840, %v545
        %v3871 = vmul.f32 %v3842, %v546
        %v3872 = vmul.f32 %v3844, %v547
        %v3873 = vmul.f32 %v3846, %v548
        %v3874 = vmul.f32 %v3848, %v549
        %v3875 = vmul.f32 %v3850, %v550
        %v3876 = vmul.f32 %v3852, %v551
        %v3877 = vmul.f32 %v3854, %v552
        %v3878 = vmul.f32 %v3856, %v553
        %v3879 = vmul.f32 %v3858, %v554
        %v3880 = vmul.f32 %v3860, %v555
        %v3881 = vmul.f32 %v3862, %v556
        %v3882 = vmul.f32 %v3864, %v557
        %v3883 = vmul.f32 %v3866, %v558
        %v3884 = vmul.f32 %v3868, %v559
        %3885 = vadd.xlane.f32.xlu0 %v3869
        %v3886 = vpop.xlane.xlu0 %3885
        %3887 = vadd.xlane.f32.xlu0 %v3870
        %v3888 = vpop.xlane.xlu0 %3887
        %3889 = vadd.xlane.f32.xlu0 %v3871
        %v3890 = vpop.xlane.xlu0 %3889
        %3891 = vadd.xlane.f32.xlu0 %v3872
        %v3892 = vpop.xlane.xlu0 %3891
        %3893 = vadd.xlane.f32.xlu0 %v3873
        %v3894 = vpop.xlane.xlu0 %3893
        %3895 = vadd.xlane.f32.xlu0 %v3874
        %v3896 = vpop.xlane.xlu0 %3895
        %3897 = vadd.xlane.f32.xlu0 %v3875
        %v3898 = vpop.xlane.xlu0 %3897
        %3899 = vadd.xlane.f32.xlu0 %v3876
        %v3900 = vpop.xlane.xlu0 %3899
        %3901 = vadd.xlane.f32.xlu0 %v3877
        %v3902 = vpop.xlane.xlu0 %3901
        %3903 = vadd.xlane.f32.xlu0 %v3878
        %v3904 = vpop.xlane.xlu0 %3903
        %3905 = vadd.xlane.f32.xlu0 %v3879
        %v3906 = vpop.xlane.xlu0 %3905
        %3907 = vadd.xlane.f32.xlu0 %v3880
        %v3908 = vpop.xlane.xlu0 %3907
        %3909 = vadd.xlane.f32.xlu0 %v3881
        %v3910 = vpop.xlane.xlu0 %3909
        %3911 = vadd.xlane.f32.xlu0 %v3882
        %v3912 = vpop.xlane.xlu0 %3911
        %3913 = vadd.xlane.f32.xlu0 %v3883
        %v3914 = vpop.xlane.xlu0 %3913
        %3915 = vadd.xlane.f32.xlu0 %v3884
        %v3916 = vpop.xlane.xlu0 %3915
        %v3917 = vmax.f32 %v3886, 1e-20
        %v3918 = vmax.f32 %v3888, 1e-20
        %v3919 = vmax.f32 %v3890, 1e-20
        %v3920 = vmax.f32 %v3892, 1e-20
        %v3921 = vmax.f32 %v3894, 1e-20
        %v3922 = vmax.f32 %v3896, 1e-20
        %v3923 = vmax.f32 %v3898, 1e-20
        %v3924 = vmax.f32 %v3900, 1e-20
        %v3925 = vmax.f32 %v3902, 1e-20
        %v3926 = vmax.f32 %v3904, 1e-20
        %v3927 = vmax.f32 %v3906, 1e-20
        %v3928 = vmax.f32 %v3908, 1e-20
        %v3929 = vmax.f32 %v3910, 1e-20
        %v3930 = vmax.f32 %v3912, 1e-20
        %v3931 = vmax.f32 %v3914, 1e-20
        %v3932 = vmax.f32 %v3916, 1e-20
        %v3933 = vrcp.pop %v3917
        %v3934 = vrcp.pop %v3918
        %v3935 = vrcp.pop %v3919
        %v3936 = vrcp.pop %v3920
        %v3937 = vrcp.pop %v3921
        %v3938 = vrcp.pop %v3922
        %v3939 = vrcp.pop %v3923
        %v3940 = vrcp.pop %v3924
        %v3941 = vrcp.pop %v3925
        %v3942 = vrcp.pop %v3926
        %v3943 = vrcp.pop %v3927
        %v3944 = vrcp.pop %v3928
        %v3945 = vrcp.pop %v3929
        %v3946 = vrcp.pop %v3930
        %v3947 = vrcp.pop %v3931
        %v3948 = vrcp.pop %v3932
        %v3949 = vmul.f32 %v3869, %v3933
        %v3950 = vmul.f32 %v3870, %v3934
        %v3951 = vmul.f32 %v3871, %v3935
        %v3952 = vmul.f32 %v3872, %v3936
        %v3953 = vmul.f32 %v3873, %v3937
        %v3954 = vmul.f32 %v3874, %v3938
        %v3955 = vmul.f32 %v3875, %v3939
        %v3956 = vmul.f32 %v3876, %v3940
        %v3957 = vmul.f32 %v3877, %v3941
        %v3958 = vmul.f32 %v3878, %v3942
        %v3959 = vmul.f32 %v3879, %v3943
        %v3960 = vmul.f32 %v3880, %v3944
        %v3961 = vmul.f32 %v3881, %v3945
        %v3962 = vmul.f32 %v3882, %v3946
        %v3963 = vmul.f32 %v3883, %v3947
        %v3964 = vmul.f32 %v3884, %v3948
        %v3965 = vpack.c.bf16 %v3950, %v3949
        %v3966 = vpack.c.bf16 %v3952, %v3951
        %v3967 = vpack.c.bf16 %v3954, %v3953
        %v3968 = vpack.c.bf16 %v3956, %v3955
        %v3969 = vpack.c.bf16 %v3958, %v3957
        %v3970 = vpack.c.bf16 %v3960, %v3959
        %v3971 = vpack.c.bf16 %v3962, %v3961
        %v3972 = vpack.c.bf16 %v3964, %v3963
        %v3973 = vpack.c.bf16 %v3426, %v3423
        %v3974 = vpack.c.bf16 %v3434, %v3431
        %v3975 = vpack.c.bf16 %v3442, %v3439
        %v3976 = vpack.c.bf16 %v3450, %v3447
        %v3977 = vpack.c.bf16 %v3458, %v3455
        %v3978 = vpack.c.bf16 %v3466, %v3463
        %v3979 = vpack.c.bf16 %v3474, %v3471
        %v3980 = vpack.c.bf16 %v3482, %v3479
        loop: start=0, step=1, limit=32
        $region124: #{gnn6_forward.1} parent=75 // loop_pre_header
          _
        $region125: #{gnn6_forward.1} parent=75 // loop_header
          %s3982 = sphi 0, %s3986
          %p3983 = scmp.ge.s32.totalorder %s3982, 32
          %v3987 = vphi 0.0, %v4229
          %v3988 = vphi 0.0, %v4230
          %v3989 = vphi 0.0, %v4231
          %v3990 = vphi 0.0, %v4232
          %v3991 = vphi 0.0, %v4233
          %v3992 = vphi 0.0, %v4234
          %v3993 = vphi 0.0, %v4235
          %v3994 = vphi 0.0, %v4236
          %v3995 = vphi 0.0, %v4237
          %v3996 = vphi 0.0, %v4238
          %v3997 = vphi 0.0, %v4239
          %v3998 = vphi 0.0, %v4240
          %v3999 = vphi 0.0, %v4241
          %v4000 = vphi 0.0, %v4242
          %v4001 = vphi 0.0, %v4243
          %v4002 = vphi 0.0, %v4244
        $region126: #{gnn6_forward.1} parent=75 // loop_header_branch
          %3985 = sbr.rel (%p3983) target = $region130
        $region127: #{gnn6_forward.1} parent=75 // loop_body
          %v4003 = vstv %s3982
          %vm4004 = vcmp.eq.s32.totalorder %v778, %v4003
          %4021 = vrot.lane.b32.xlu0 %v3423, 32
          %v4022 = vpop.permute.xlu0 %4021
          %4023 = vrot.lane.b32.xlu0 %v3426, 32
          %v4024 = vpop.permute.xlu0 %4023
          %4025 = vrot.lane.b32.xlu0 %v3431, 32
          %v4026 = vpop.permute.xlu0 %4025
          %4027 = vrot.lane.b32.xlu0 %v3434, 32
          %v4028 = vpop.permute.xlu0 %4027
          %4029 = vrot.lane.b32.xlu0 %v3439, 32
          %v4030 = vpop.permute.xlu0 %4029
          %4031 = vrot.lane.b32.xlu0 %v3442, 32
          %v4032 = vpop.permute.xlu0 %4031
          %4033 = vrot.lane.b32.xlu0 %v3447, 32
          %v4034 = vpop.permute.xlu0 %4033
          %4035 = vrot.lane.b32.xlu0 %v3450, 32
          %v4036 = vpop.permute.xlu0 %4035
          %4037 = vrot.lane.b32.xlu0 %v3455, 32
          %v4038 = vpop.permute.xlu0 %4037
          %4039 = vrot.lane.b32.xlu0 %v3458, 32
          %v4040 = vpop.permute.xlu0 %4039
          %4041 = vrot.lane.b32.xlu0 %v3463, 32
          %v4042 = vpop.permute.xlu0 %4041
          %4043 = vrot.lane.b32.xlu0 %v3466, 32
          %v4044 = vpop.permute.xlu0 %4043
          %4045 = vrot.lane.b32.xlu0 %v3471, 32
          %v4046 = vpop.permute.xlu0 %4045
          %4047 = vrot.lane.b32.xlu0 %v3474, 32
          %v4048 = vpop.permute.xlu0 %4047
          %4049 = vrot.lane.b32.xlu0 %v3479, 32
          %v4050 = vpop.permute.xlu0 %4049
          %4051 = vrot.lane.b32.xlu0 %v3482, 32
          %v4052 = vpop.permute.xlu0 %4051
          %v4069 = vsel %vm4004, %v4022, 0.0
          %v4070 = vsel %vm4004, %v4024, 0.0
          %v4071 = vsel %vm4004, %v4026, 0.0
          %v4072 = vsel %vm4004, %v4028, 0.0
          %v4073 = vsel %vm4004, %v4030, 0.0
          %v4074 = vsel %vm4004, %v4032, 0.0
          %v4075 = vsel %vm4004, %v4034, 0.0
          %v4076 = vsel %vm4004, %v4036, 0.0
          %v4077 = vsel %vm4004, %v4038, 0.0
          %v4078 = vsel %vm4004, %v4040, 0.0
          %v4079 = vsel %vm4004, %v4042, 0.0
          %v4080 = vsel %vm4004, %v4044, 0.0
          %v4081 = vsel %vm4004, %v4046, 0.0
          %v4082 = vsel %vm4004, %v4048, 0.0
          %v4083 = vsel %vm4004, %v4050, 0.0
          %v4084 = vsel %vm4004, %v4052, 0.0
          %v4085 = vsel %vm607, %v4069, 0.0
          %4086 = vadd.xlane.f32.xlu0 %v4085
          %v4087 = vpop.xlane.xlu0 %4086
          %v4088 = vsel %vm607, %v4070, 0.0
          %4089 = vadd.xlane.f32.xlu0 %v4088
          %v4090 = vpop.xlane.xlu0 %4089
          %v4091 = vsel %vm607, %v4071, 0.0
          %4092 = vadd.xlane.f32.xlu0 %v4091
          %v4093 = vpop.xlane.xlu0 %4092
          %v4094 = vsel %vm607, %v4072, 0.0
          %4095 = vadd.xlane.f32.xlu0 %v4094
          %v4096 = vpop.xlane.xlu0 %4095
          %v4097 = vsel %vm607, %v4073, 0.0
          %4098 = vadd.xlane.f32.xlu0 %v4097
          %v4099 = vpop.xlane.xlu0 %4098
          %v4100 = vsel %vm607, %v4074, 0.0
          %4101 = vadd.xlane.f32.xlu0 %v4100
          %v4102 = vpop.xlane.xlu0 %4101
          %v4103 = vsel %vm607, %v4075, 0.0
          %4104 = vadd.xlane.f32.xlu0 %v4103
          %v4105 = vpop.xlane.xlu0 %4104
          %v4106 = vsel %vm607, %v4076, 0.0
          %4107 = vadd.xlane.f32.xlu0 %v4106
          %v4108 = vpop.xlane.xlu0 %4107
          %v4109 = vsel %vm607, %v4077, 0.0
          %4110 = vadd.xlane.f32.xlu0 %v4109
          %v4111 = vpop.xlane.xlu0 %4110
          %v4112 = vsel %vm607, %v4078, 0.0
          %4113 = vadd.xlane.f32.xlu0 %v4112
          %v4114 = vpop.xlane.xlu0 %4113
          %v4115 = vsel %vm607, %v4079, 0.0
          %4116 = vadd.xlane.f32.xlu0 %v4115
          %v4117 = vpop.xlane.xlu0 %4116
          %v4118 = vsel %vm607, %v4080, 0.0
          %4119 = vadd.xlane.f32.xlu0 %v4118
          %v4120 = vpop.xlane.xlu0 %4119
          %v4121 = vsel %vm607, %v4081, 0.0
          %4122 = vadd.xlane.f32.xlu0 %v4121
          %v4123 = vpop.xlane.xlu0 %4122
          %v4124 = vsel %vm607, %v4082, 0.0
          %4125 = vadd.xlane.f32.xlu0 %v4124
          %v4126 = vpop.xlane.xlu0 %4125
          %v4127 = vsel %vm607, %v4083, 0.0
          %4128 = vadd.xlane.f32.xlu0 %v4127
          %v4129 = vpop.xlane.xlu0 %4128
          %v4130 = vsel %vm607, %v4084, 0.0
          %4131 = vadd.xlane.f32.xlu0 %v4130
          %v4132 = vpop.xlane.xlu0 %4131
          %s4133 = sadd.s32 %s3982, 32
          %s4134 = scalar_lea.vmem [#allocation2], %s4133
          %v4135 = vld [vmem:[%s4134] sm:$0x1]
          %v4136 = vlaneseq
          %v4137 = vshrl.u32 %v4136, 7
          %v4138 = vsub.s32 0, %v4137
          %v4139 = vrot.slane %v4135, %v4138
          %v4140 = vadd.f32 %v4087, %v4139
          %v4141 = vadd.f32 %v4090, %v4139
          %v4142 = vadd.f32 %v4093, %v4139
          %v4143 = vadd.f32 %v4096, %v4139
          %v4144 = vadd.f32 %v4099, %v4139
          %v4145 = vadd.f32 %v4102, %v4139
          %v4146 = vadd.f32 %v4105, %v4139
          %v4147 = vadd.f32 %v4108, %v4139
          %v4148 = vadd.f32 %v4111, %v4139
          %v4149 = vadd.f32 %v4114, %v4139
          %v4150 = vadd.f32 %v4117, %v4139
          %v4151 = vadd.f32 %v4120, %v4139
          %v4152 = vadd.f32 %v4123, %v4139
          %v4153 = vadd.f32 %v4126, %v4139
          %v4154 = vadd.f32 %v4129, %v4139
          %v4155 = vadd.f32 %v4132, %v4139
          %vm4156 = vcmp.gt.f32.partialorder %v4140, 0.0
          %vm4157 = vcmp.gt.f32.partialorder %v4141, 0.0
          %vm4158 = vcmp.gt.f32.partialorder %v4142, 0.0
          %vm4159 = vcmp.gt.f32.partialorder %v4143, 0.0
          %vm4160 = vcmp.gt.f32.partialorder %v4144, 0.0
          %vm4161 = vcmp.gt.f32.partialorder %v4145, 0.0
          %vm4162 = vcmp.gt.f32.partialorder %v4146, 0.0
          %vm4163 = vcmp.gt.f32.partialorder %v4147, 0.0
          %vm4164 = vcmp.gt.f32.partialorder %v4148, 0.0
          %vm4165 = vcmp.gt.f32.partialorder %v4149, 0.0
          %vm4166 = vcmp.gt.f32.partialorder %v4150, 0.0
          %vm4167 = vcmp.gt.f32.partialorder %v4151, 0.0
          %vm4168 = vcmp.gt.f32.partialorder %v4152, 0.0
          %vm4169 = vcmp.gt.f32.partialorder %v4153, 0.0
          %vm4170 = vcmp.gt.f32.partialorder %v4154, 0.0
          %vm4171 = vcmp.gt.f32.partialorder %v4155, 0.0
          %v4172 = vmul.f32 %v4140, 0.2
          %v4173 = vmul.f32 %v4141, 0.2
          %v4174 = vmul.f32 %v4142, 0.2
          %v4175 = vmul.f32 %v4143, 0.2
          %v4176 = vmul.f32 %v4144, 0.2
          %v4177 = vmul.f32 %v4145, 0.2
          %v4178 = vmul.f32 %v4146, 0.2
          %v4179 = vmul.f32 %v4147, 0.2
          %v4180 = vmul.f32 %v4148, 0.2
          %v4181 = vmul.f32 %v4149, 0.2
          %v4182 = vmul.f32 %v4150, 0.2
          %v4183 = vmul.f32 %v4151, 0.2
          %v4184 = vmul.f32 %v4152, 0.2
          %v4185 = vmul.f32 %v4153, 0.2
          %v4186 = vmul.f32 %v4154, 0.2
          %v4187 = vmul.f32 %v4155, 0.2
          %v4188 = vsel %vm4156, %v4140, %v4172
          %v4189 = vsel %vm4157, %v4141, %v4173
          %v4190 = vsel %vm4158, %v4142, %v4174
          %v4191 = vsel %vm4159, %v4143, %v4175
          %v4192 = vsel %vm4160, %v4144, %v4176
          %v4193 = vsel %vm4161, %v4145, %v4177
          %v4194 = vsel %vm4162, %v4146, %v4178
          %v4195 = vsel %vm4163, %v4147, %v4179
          %v4196 = vsel %vm4164, %v4148, %v4180
          %v4197 = vsel %vm4165, %v4149, %v4181
          %v4198 = vsel %vm4166, %v4150, %v4182
          %v4199 = vsel %vm4167, %v4151, %v4183
          %v4200 = vsel %vm4168, %v4152, %v4184
          %v4201 = vsel %vm4169, %v4153, %v4185
          %v4202 = vsel %vm4170, %v4154, %v4186
          %v4203 = vsel %vm4171, %v4155, %v4187
          %s4204 = sshra.s32 %s3982, 7
          %s4205 = sand.u32 %s3982, 127
          %s4206 = sadd.s32 %s4204, 1
          %s4207 = smul.u32 %s4206, 128
          %s4208 = sshra.s32 %s3982, 7
          %s4209 = sand.u32 %s3982, 127
          %s4210 = sadd.s32 %s4207, %s4209
          %s4211 = sld [smem:[#allocation7 + %s4210]]
          %v4212 = vstv %s4211
          %v4213 = vmul.f32 %v4212, %v4188
          %v4214 = vmul.f32 %v4212, %v4189
          %v4215 = vmul.f32 %v4212, %v4190
          %v4216 = vmul.f32 %v4212, %v4191
          %v4217 = vmul.f32 %v4212, %v4192
          %v4218 = vmul.f32 %v4212, %v4193
          %v4219 = vmul.f32 %v4212, %v4194
          %v4220 = vmul.f32 %v4212, %v4195
          %v4221 = vmul.f32 %v4212, %v4196
          %v4222 = vmul.f32 %v4212, %v4197
          %v4223 = vmul.f32 %v4212, %v4198
          %v4224 = vmul.f32 %v4212, %v4199
          %v4225 = vmul.f32 %v4212, %v4200
          %v4226 = vmul.f32 %v4212, %v4201
          %v4227 = vmul.f32 %v4212, %v4202
          %v4228 = vmul.f32 %v4212, %v4203
          %v4229 = vadd.f32 %v3987, %v4213
          %v4230 = vadd.f32 %v3988, %v4214
          %v4231 = vadd.f32 %v3989, %v4215
          %v4232 = vadd.f32 %v3990, %v4216
          %v4233 = vadd.f32 %v3991, %v4217
          %v4234 = vadd.f32 %v3992, %v4218
          %v4235 = vadd.f32 %v3993, %v4219
          %v4236 = vadd.f32 %v3994, %v4220
          %v4237 = vadd.f32 %v3995, %v4221
          %v4238 = vadd.f32 %v3996, %v4222
          %v4239 = vadd.f32 %v3997, %v4223
          %v4240 = vadd.f32 %v3998, %v4224
          %v4241 = vadd.f32 %v3999, %v4225
          %v4242 = vadd.f32 %v4000, %v4226
          %v4243 = vadd.f32 %v4001, %v4227
          %v4244 = vadd.f32 %v4002, %v4228
        $region128: #{gnn6_forward.1} parent=75 // loop_footer
          %s3986 = sadd.s32 1, %s3982
        $region129: #{gnn6_forward.1} parent=75 // loop_footer_branch
          %3981 = sbr.rel target = $region125
        $region130: #{gnn6_forward.1} parent=75 // loop_exit
          _
        %4245 = vmax.xlane.f32.xlu0 %v3987
        %v4246 = vpop.xlane.xlu0 %4245
        %4247 = vmax.xlane.f32.xlu0 %v3988
        %v4248 = vpop.xlane.xlu0 %4247
        %4249 = vmax.xlane.f32.xlu0 %v3989
        %v4250 = vpop.xlane.xlu0 %4249
        %4251 = vmax.xlane.f32.xlu0 %v3990
        %v4252 = vpop.xlane.xlu0 %4251
        %4253 = vmax.xlane.f32.xlu0 %v3991
        %v4254 = vpop.xlane.xlu0 %4253
        %4255 = vmax.xlane.f32.xlu0 %v3992
        %v4256 = vpop.xlane.xlu0 %4255
        %4257 = vmax.xlane.f32.xlu0 %v3993
        %v4258 = vpop.xlane.xlu0 %4257
        %4259 = vmax.xlane.f32.xlu0 %v3994
        %v4260 = vpop.xlane.xlu0 %4259
        %4261 = vmax.xlane.f32.xlu0 %v3995
        %v4262 = vpop.xlane.xlu0 %4261
        %4263 = vmax.xlane.f32.xlu0 %v3996
        %v4264 = vpop.xlane.xlu0 %4263
        %4265 = vmax.xlane.f32.xlu0 %v3997
        %v4266 = vpop.xlane.xlu0 %4265
        %4267 = vmax.xlane.f32.xlu0 %v3998
        %v4268 = vpop.xlane.xlu0 %4267
        %4269 = vmax.xlane.f32.xlu0 %v3999
        %v4270 = vpop.xlane.xlu0 %4269
        %4271 = vmax.xlane.f32.xlu0 %v4000
        %v4272 = vpop.xlane.xlu0 %4271
        %4273 = vmax.xlane.f32.xlu0 %v4001
        %v4274 = vpop.xlane.xlu0 %4273
        %4275 = vmax.xlane.f32.xlu0 %v4002
        %v4276 = vpop.xlane.xlu0 %4275
        %v4277 = vsub.f32 %v3987, %v4246
        %v4278 = vsub.f32 %v3988, %v4248
        %v4279 = vsub.f32 %v3989, %v4250
        %v4280 = vsub.f32 %v3990, %v4252
        %v4281 = vsub.f32 %v3991, %v4254
        %v4282 = vsub.f32 %v3992, %v4256
        %v4283 = vsub.f32 %v3993, %v4258
        %v4284 = vsub.f32 %v3994, %v4260
        %v4285 = vsub.f32 %v3995, %v4262
        %v4286 = vsub.f32 %v3996, %v4264
        %v4287 = vsub.f32 %v3997, %v4266
        %v4288 = vsub.f32 %v3998, %v4268
        %v4289 = vsub.f32 %v3999, %v4270
        %v4290 = vsub.f32 %v4000, %v4272
        %v4291 = vsub.f32 %v4001, %v4274
        %v4292 = vsub.f32 %v4002, %v4276
        %v4293 = vmul.f32 %v4277, 1.442695
        %v4294 = vpow.pop %v4293
        %v4295 = vmul.f32 %v4278, 1.442695
        %v4296 = vpow.pop %v4295
        %v4297 = vmul.f32 %v4279, 1.442695
        %v4298 = vpow.pop %v4297
        %v4299 = vmul.f32 %v4280, 1.442695
        %v4300 = vpow.pop %v4299
        %v4301 = vmul.f32 %v4281, 1.442695
        %v4302 = vpow.pop %v4301
        %v4303 = vmul.f32 %v4282, 1.442695
        %v4304 = vpow.pop %v4303
        %v4305 = vmul.f32 %v4283, 1.442695
        %v4306 = vpow.pop %v4305
        %v4307 = vmul.f32 %v4284, 1.442695
        %v4308 = vpow.pop %v4307
        %v4309 = vmul.f32 %v4285, 1.442695
        %v4310 = vpow.pop %v4309
        %v4311 = vmul.f32 %v4286, 1.442695
        %v4312 = vpow.pop %v4311
        %v4313 = vmul.f32 %v4287, 1.442695
        %v4314 = vpow.pop %v4313
        %v4315 = vmul.f32 %v4288, 1.442695
        %v4316 = vpow.pop %v4315
        %v4317 = vmul.f32 %v4289, 1.442695
        %v4318 = vpow.pop %v4317
        %v4319 = vmul.f32 %v4290, 1.442695
        %v4320 = vpow.pop %v4319
        %v4321 = vmul.f32 %v4291, 1.442695
        %v4322 = vpow.pop %v4321
        %v4323 = vmul.f32 %v4292, 1.442695
        %v4324 = vpow.pop %v4323
        %v4325 = vmul.f32 %v4294, %v544
        %v4326 = vmul.f32 %v4296, %v545
        %v4327 = vmul.f32 %v4298, %v546
        %v4328 = vmul.f32 %v4300, %v547
        %v4329 = vmul.f32 %v4302, %v548
        %v4330 = vmul.f32 %v4304, %v549
        %v4331 = vmul.f32 %v4306, %v550
        %v4332 = vmul.f32 %v4308, %v551
        %v4333 = vmul.f32 %v4310, %v552
        %v4334 = vmul.f32 %v4312, %v553
        %v4335 = vmul.f32 %v4314, %v554
        %v4336 = vmul.f32 %v4316, %v555
        %v4337 = vmul.f32 %v4318, %v556
        %v4338 = vmul.f32 %v4320, %v557
        %v4339 = vmul.f32 %v4322, %v558
        %v4340 = vmul.f32 %v4324, %v559
        %4341 = vadd.xlane.f32.xlu0 %v4325
        %v4342 = vpop.xlane.xlu0 %4341
        %4343 = vadd.xlane.f32.xlu0 %v4326
        %v4344 = vpop.xlane.xlu0 %4343
        %4345 = vadd.xlane.f32.xlu0 %v4327
        %v4346 = vpop.xlane.xlu0 %4345
        %4347 = vadd.xlane.f32.xlu0 %v4328
        %v4348 = vpop.xlane.xlu0 %4347
        %4349 = vadd.xlane.f32.xlu0 %v4329
        %v4350 = vpop.xlane.xlu0 %4349
        %4351 = vadd.xlane.f32.xlu0 %v4330
        %v4352 = vpop.xlane.xlu0 %4351
        %4353 = vadd.xlane.f32.xlu0 %v4331
        %v4354 = vpop.xlane.xlu0 %4353
        %4355 = vadd.xlane.f32.xlu0 %v4332
        %v4356 = vpop.xlane.xlu0 %4355
        %4357 = vadd.xlane.f32.xlu0 %v4333
        %v4358 = vpop.xlane.xlu0 %4357
        %4359 = vadd.xlane.f32.xlu0 %v4334
        %v4360 = vpop.xlane.xlu0 %4359
        %4361 = vadd.xlane.f32.xlu0 %v4335
        %v4362 = vpop.xlane.xlu0 %4361
        %4363 = vadd.xlane.f32.xlu0 %v4336
        %v4364 = vpop.xlane.xlu0 %4363
        %4365 = vadd.xlane.f32.xlu0 %v4337
        %v4366 = vpop.xlane.xlu0 %4365
        %4367 = vadd.xlane.f32.xlu0 %v4338
        %v4368 = vpop.xlane.xlu0 %4367
        %4369 = vadd.xlane.f32.xlu0 %v4339
        %v4370 = vpop.xlane.xlu0 %4369
        %4371 = vadd.xlane.f32.xlu0 %v4340
        %v4372 = vpop.xlane.xlu0 %4371
        %v4373 = vmax.f32 %v4342, 1e-20
        %v4374 = vmax.f32 %v4344, 1e-20
        %v4375 = vmax.f32 %v4346, 1e-20
        %v4376 = vmax.f32 %v4348, 1e-20
        %v4377 = vmax.f32 %v4350, 1e-20
        %v4378 = vmax.f32 %v4352, 1e-20
        %v4379 = vmax.f32 %v4354, 1e-20
        %v4380 = vmax.f32 %v4356, 1e-20
        %v4381 = vmax.f32 %v4358, 1e-20
        %v4382 = vmax.f32 %v4360, 1e-20
        %v4383 = vmax.f32 %v4362, 1e-20
        %v4384 = vmax.f32 %v4364, 1e-20
        %v4385 = vmax.f32 %v4366, 1e-20
        %v4386 = vmax.f32 %v4368, 1e-20
        %v4387 = vmax.f32 %v4370, 1e-20
        %v4388 = vmax.f32 %v4372, 1e-20
        %v4389 = vrcp.pop %v4373
        %v4390 = vrcp.pop %v4374
        %v4391 = vrcp.pop %v4375
        %v4392 = vrcp.pop %v4376
        %v4393 = vrcp.pop %v4377
        %v4394 = vrcp.pop %v4378
        %v4395 = vrcp.pop %v4379
        %v4396 = vrcp.pop %v4380
        %v4397 = vrcp.pop %v4381
        %v4398 = vrcp.pop %v4382
        %v4399 = vrcp.pop %v4383
        %v4400 = vrcp.pop %v4384
        %v4401 = vrcp.pop %v4385
        %v4402 = vrcp.pop %v4386
        %v4403 = vrcp.pop %v4387
        %v4404 = vrcp.pop %v4388
        %v4405 = vmul.f32 %v4325, %v4389
        %v4406 = vmul.f32 %v4326, %v4390
        %v4407 = vmul.f32 %v4327, %v4391
        %v4408 = vmul.f32 %v4328, %v4392
        %v4409 = vmul.f32 %v4329, %v4393
        %v4410 = vmul.f32 %v4330, %v4394
        %v4411 = vmul.f32 %v4331, %v4395
        %v4412 = vmul.f32 %v4332, %v4396
        %v4413 = vmul.f32 %v4333, %v4397
        %v4414 = vmul.f32 %v4334, %v4398
        %v4415 = vmul.f32 %v4335, %v4399
        %v4416 = vmul.f32 %v4336, %v4400
        %v4417 = vmul.f32 %v4337, %v4401
        %v4418 = vmul.f32 %v4338, %v4402
        %v4419 = vmul.f32 %v4339, %v4403
        %v4420 = vmul.f32 %v4340, %v4404
        %v4421 = vpack.c.bf16 %v4406, %v4405
        %v4422 = vpack.c.bf16 %v4408, %v4407
        %v4423 = vpack.c.bf16 %v4410, %v4409
        %v4424 = vpack.c.bf16 %v4412, %v4411
        %v4425 = vpack.c.bf16 %v4414, %v4413
        %v4426 = vpack.c.bf16 %v4416, %v4415
        %v4427 = vpack.c.bf16 %v4418, %v4417
        %v4428 = vpack.c.bf16 %v4420, %v4419
        %4437 = vrot.lane.b32.xlu0 %v3973, 96
        %v4438 = vpop.permute.xlu0 %4437
        %4439 = vrot.lane.b32.xlu0 %v3974, 96
        %v4440 = vpop.permute.xlu0 %4439
        %4441 = vrot.lane.b32.xlu0 %v3975, 96
        %v4442 = vpop.permute.xlu0 %4441
        %4443 = vrot.lane.b32.xlu0 %v3976, 96
        %v4444 = vpop.permute.xlu0 %4443
        %4445 = vrot.lane.b32.xlu0 %v3977, 96
        %v4446 = vpop.permute.xlu0 %4445
        %4447 = vrot.lane.b32.xlu0 %v3978, 96
        %v4448 = vpop.permute.xlu0 %4447
        %4449 = vrot.lane.b32.xlu0 %v3979, 96
        %v4450 = vpop.permute.xlu0 %4449
        %4451 = vrot.lane.b32.xlu0 %v3980, 96
        %v4452 = vpop.permute.xlu0 %4451
        %4461 = vmatprep.subr.bf16.mxu0 0
        %4462 = vmatpush1.bf16.msra.mxu0 %v4438
        %4463 = vmatprep.subr.bf16.mxu0 0
        %4464 = vmatpush1.bf16.msra.mxu0 %v4440
        %4465 = vmatprep.subr.bf16.mxu0 0
        %4466 = vmatpush1.bf16.msra.mxu0 %v4442
        %4467 = vmatprep.subr.bf16.mxu0 0
        %4468 = vmatpush1.bf16.msra.mxu0 %v4444
        %4469 = vmatprep.subr.bf16.mxu0 0
        %4470 = vmatpush1.bf16.msra.mxu0 %v4446
        %4471 = vmatprep.subr.bf16.mxu0 0
        %4472 = vmatpush1.bf16.msra.mxu0 %v4448
        %4473 = vmatprep.subr.bf16.mxu0 0
        %4474 = vmatpush1.bf16.msra.mxu0 %v4450
        %4475 = vmatprep.subr.bf16.mxu0 0
        %4476 = vmatpush1.bf16.msra.mxu0 %v4452
        %4477 = vmatprep.subr.bf16.mxu0 0
        %4478 = vmatpush1.bf16.msra.mxu0 0
        %4479 = vmatprep.subr.bf16.mxu0 0
        %4480 = vmatpush1.bf16.msra.mxu0 0
        %4481 = vmatprep.subr.bf16.mxu0 0
        %4482 = vmatpush1.bf16.msra.mxu0 0
        %4483 = vmatprep.subr.bf16.mxu0 0
        %4484 = vmatpush1.bf16.msra.mxu0 0
        %4485 = vmatprep.subr.bf16.mxu0 0
        %4486 = vmatpush1.bf16.msra.mxu0 0
        %4487 = vmatprep.subr.bf16.mxu0 0
        %4488 = vmatpush1.bf16.msra.mxu0 0
        %4489 = vmatprep.subr.bf16.mxu0 0
        %4490 = vmatpush1.bf16.msra.mxu0 0
        %4491 = vmatprep.subr.bf16.mxu0 0
        %4492 = vmatpush1.bf16.msra.mxu0 0
        %4493 = vmatprep.mubr.bf16.mxu0 0
        %4494 = vmatmul.mubr.bf16.gmra.mrb[0].mxu0 %v4421
        %v4495 = vpop.f32.mrb[0].mxu0
        %v4496 = vadd.f32 0.0, %v4495
        %v4497 = vpop.f32.mrb[0].mxu0
        %v4498 = vpop.f32.mrb[0].mxu0
        %v4499 = vadd.f32 0.0, %v4498
        %v4500 = vpop.f32.mrb[0].mxu0
        %4501 = vmatprep.mubr.bf16.mxu0 0
        %4502 = vmatmul.mubr.bf16.gmra.mrb[0].mxu0 %v4422
        %v4503 = vpop.f32.mrb[0].mxu0
        %v4504 = vadd.f32 0.0, %v4503
        %v4505 = vpop.f32.mrb[0].mxu0
        %v4506 = vpop.f32.mrb[0].mxu0
        %v4507 = vadd.f32 0.0, %v4506
        %v4508 = vpop.f32.mrb[0].mxu0
        %4509 = vmatprep.mubr.bf16.mxu0 0
        %4510 = vmatmul.mubr.bf16.gmra.mrb[0].mxu0 %v4423
        %v4511 = vpop.f32.mrb[0].mxu0
        %v4512 = vadd.f32 0.0, %v4511
        %v4513 = vpop.f32.mrb[0].mxu0
        %v4514 = vpop.f32.mrb[0].mxu0
        %v4515 = vadd.f32 0.0, %v4514
        %v4516 = vpop.f32.mrb[0].mxu0
        %4517 = vmatprep.mubr.bf16.mxu0 0
        %4518 = vmatmul.mubr.bf16.gmra.mrb[0].mxu0 %v4424
        %v4519 = vpop.f32.mrb[0].mxu0
        %v4520 = vadd.f32 0.0, %v4519
        %v4521 = vpop.f32.mrb[0].mxu0
        %v4522 = vpop.f32.mrb[0].mxu0
        %v4523 = vadd.f32 0.0, %v4522
        %v4524 = vpop.f32.mrb[0].mxu0
        %4525 = vmatprep.mubr.bf16.mxu0 0
        %4526 = vmatmul.mubr.bf16.gmra.mrb[0].mxu0 %v4425
        %v4527 = vpop.f32.mrb[0].mxu0
        %v4528 = vadd.f32 0.0, %v4527
        %v4529 = vpop.f32.mrb[0].mxu0
        %v4530 = vpop.f32.mrb[0].mxu0
        %v4531 = vadd.f32 0.0, %v4530
        %v4532 = vpop.f32.mrb[0].mxu0
        %4533 = vmatprep.mubr.bf16.mxu0 0
        %4534 = vmatmul.mubr.bf16.gmra.mrb[0].mxu0 %v4426
        %v4535 = vpop.f32.mrb[0].mxu0
        %v4536 = vadd.f32 0.0, %v4535
        %v4537 = vpop.f32.mrb[0].mxu0
        %v4538 = vpop.f32.mrb[0].mxu0
        %v4539 = vadd.f32 0.0, %v4538
        %v4540 = vpop.f32.mrb[0].mxu0
        %4541 = vmatprep.mubr.bf16.mxu0 0
        %4542 = vmatmul.mubr.bf16.gmra.mrb[0].mxu0 %v4427
        %v4543 = vpop.f32.mrb[0].mxu0
        %v4544 = vadd.f32 0.0, %v4543
        %v4545 = vpop.f32.mrb[0].mxu0
        %v4546 = vpop.f32.mrb[0].mxu0
        %v4547 = vadd.f32 0.0, %v4546
        %v4548 = vpop.f32.mrb[0].mxu0
        %4549 = vmatprep.mubr.bf16.mxu0 0
        %4550 = vmatmul.mubr.bf16.gmra.mrb[0].mxu0 %v4428
        %v4551 = vpop.f32.mrb[0].mxu0
        %v4552 = vadd.f32 0.0, %v4551
        %v4553 = vpop.f32.mrb[0].mxu0
        %v4554 = vpop.f32.mrb[0].mxu0
        %v4555 = vadd.f32 0.0, %v4554
        %v4556 = vpop.f32.mrb[0].mxu0
        %4557 = vdwg.mxu0
        %4558 = vmatprep.subr.bf16.mxu0 0
        %4559 = vmatpush1.bf16.msra.mxu0 %v3973
        %4560 = vmatprep.subr.bf16.mxu0 0
        %4561 = vmatpush1.bf16.msra.mxu0 %v3974
        %4562 = vmatprep.subr.bf16.mxu0 0
        %4563 = vmatpush1.bf16.msra.mxu0 %v3975
        %4564 = vmatprep.subr.bf16.mxu0 0
        %4565 = vmatpush1.bf16.msra.mxu0 %v3976
        %4566 = vmatprep.subr.bf16.mxu0 0
        %4567 = vmatpush1.bf16.msra.mxu0 %v3977
        %4568 = vmatprep.subr.bf16.mxu0 0
        %4569 = vmatpush1.bf16.msra.mxu0 %v3978
        %4570 = vmatprep.subr.bf16.mxu0 0
        %4571 = vmatpush1.bf16.msra.mxu0 %v3979
        %4572 = vmatprep.subr.bf16.mxu0 0
        %4573 = vmatpush1.bf16.msra.mxu0 %v3980
        %4574 = vmatprep.subr.bf16.mxu0 0
        %4575 = vmatpush1.bf16.msra.mxu0 0
        %4576 = vmatprep.subr.bf16.mxu0 0
        %4577 = vmatpush1.bf16.msra.mxu0 0
        %4578 = vmatprep.subr.bf16.mxu0 0
        %4579 = vmatpush1.bf16.msra.mxu0 0
        %4580 = vmatprep.subr.bf16.mxu0 0
        %4581 = vmatpush1.bf16.msra.mxu0 0
        %4582 = vmatprep.subr.bf16.mxu0 0
        %4583 = vmatpush1.bf16.msra.mxu0 0
        %4584 = vmatprep.subr.bf16.mxu0 0
        %4585 = vmatpush1.bf16.msra.mxu0 0
        %4586 = vmatprep.subr.bf16.mxu0 0
        %4587 = vmatpush1.bf16.msra.mxu0 0
        %4588 = vmatprep.subr.bf16.mxu0 0
        %4589 = vmatpush1.bf16.msra.mxu0 0
        %4590 = vmatprep.mubr.bf16.mxu0 0
        %4591 = vmatmul.mubr.bf16.gmra.mrb[0].mxu0 %v3965
        %v4592 = vpop.f32.mrb[0].mxu0
        %v4593 = vadd.f32 %v4496, %v4592
        %v4594 = vpop.f32.mrb[0].mxu0
        %v4595 = vpop.f32.mrb[0].mxu0
        %v4596 = vadd.f32 %v4499, %v4595
        %v4597 = vpop.f32.mrb[0].mxu0
        %4598 = vmatprep.mubr.bf16.mxu0 0
        %4599 = vmatmul.mubr.bf16.gmra.mrb[0].mxu0 %v3966
        %v4600 = vpop.f32.mrb[0].mxu0
        %v4601 = vadd.f32 %v4504, %v4600
        %v4602 = vpop.f32.mrb[0].mxu0
        %v4603 = vpop.f32.mrb[0].mxu0
        %v4604 = vadd.f32 %v4507, %v4603
        %v4605 = vpop.f32.mrb[0].mxu0
        %4606 = vmatprep.mubr.bf16.mxu0 0
        %4607 = vmatmul.mubr.bf16.gmra.mrb[0].mxu0 %v3967
        %v4608 = vpop.f32.mrb[0].mxu0
        %v4609 = vadd.f32 %v4512, %v4608
        %v4610 = vpop.f32.mrb[0].mxu0
        %v4611 = vpop.f32.mrb[0].mxu0
        %v4612 = vadd.f32 %v4515, %v4611
        %v4613 = vpop.f32.mrb[0].mxu0
        %4614 = vmatprep.mubr.bf16.mxu0 0
        %4615 = vmatmul.mubr.bf16.gmra.mrb[0].mxu0 %v3968
        %v4616 = vpop.f32.mrb[0].mxu0
        %v4617 = vadd.f32 %v4520, %v4616
        %v4618 = vpop.f32.mrb[0].mxu0
        %v4619 = vpop.f32.mrb[0].mxu0
        %v4620 = vadd.f32 %v4523, %v4619
        %v4621 = vpop.f32.mrb[0].mxu0
        %4622 = vmatprep.mubr.bf16.mxu0 0
        %4623 = vmatmul.mubr.bf16.gmra.mrb[0].mxu0 %v3969
        %v4624 = vpop.f32.mrb[0].mxu0
        %v4625 = vadd.f32 %v4528, %v4624
        %v4626 = vpop.f32.mrb[0].mxu0
        %v4627 = vpop.f32.mrb[0].mxu0
        %v4628 = vadd.f32 %v4531, %v4627
        %v4629 = vpop.f32.mrb[0].mxu0
        %4630 = vmatprep.mubr.bf16.mxu0 0
        %4631 = vmatmul.mubr.bf16.gmra.mrb[0].mxu0 %v3970
        %v4632 = vpop.f32.mrb[0].mxu0
        %v4633 = vadd.f32 %v4536, %v4632
        %v4634 = vpop.f32.mrb[0].mxu0
        %v4635 = vpop.f32.mrb[0].mxu0
        %v4636 = vadd.f32 %v4539, %v4635
        %v4637 = vpop.f32.mrb[0].mxu0
        %4638 = vmatprep.mubr.bf16.mxu0 0
        %4639 = vmatmul.mubr.bf16.gmra.mrb[0].mxu0 %v3971
        %v4640 = vpop.f32.mrb[0].mxu0
        %v4641 = vadd.f32 %v4544, %v4640
        %v4642 = vpop.f32.mrb[0].mxu0
        %v4643 = vpop.f32.mrb[0].mxu0
        %v4644 = vadd.f32 %v4547, %v4643
        %v4645 = vpop.f32.mrb[0].mxu0
        %4646 = vmatprep.mubr.bf16.mxu0 0
        %4647 = vmatmul.mubr.bf16.gmra.mrb[0].mxu0 %v3972
        %v4648 = vpop.f32.mrb[0].mxu0
        %v4649 = vadd.f32 %v4552, %v4648
        %v4650 = vpop.f32.mrb[0].mxu0
        %v4651 = vpop.f32.mrb[0].mxu0
        %v4652 = vadd.f32 %v4555, %v4651
        %v4653 = vpop.f32.mrb[0].mxu0
        %4654 = vdwg.mxu0
        %v4655 = vmul.f32 %v4593, 0.5
        %v4656 = vmul.f32 %v4596, 0.5
        %v4657 = vmul.f32 %v4601, 0.5
        %v4658 = vmul.f32 %v4604, 0.5
        %v4659 = vmul.f32 %v4609, 0.5
        %v4660 = vmul.f32 %v4612, 0.5
        %v4661 = vmul.f32 %v4617, 0.5
        %v4662 = vmul.f32 %v4620, 0.5
        %v4663 = vmul.f32 %v4625, 0.5
        %v4664 = vmul.f32 %v4628, 0.5
        %v4665 = vmul.f32 %v4633, 0.5
        %v4666 = vmul.f32 %v4636, 0.5
        %v4667 = vmul.f32 %v4641, 0.5
        %v4668 = vmul.f32 %v4644, 0.5
        %v4669 = vmul.f32 %v4649, 0.5
        %v4670 = vmul.f32 %v4652, 0.5
        %v4671 = vld [vmem:[%s13] sm:$0x1]
        %v4673 = vlaneseq
        %v4674 = vshrl.u32 %v4673, 7
        %v4675 = vsub.s32 0, %v4674
        %v4676 = vrot.slane %v4671, %v4675
        %v4678 = vadd.f32 %v4655, %v4676
        %v4679 = vadd.f32 %v4656, %v4676
        %v4680 = vadd.f32 %v4657, %v4676
        %v4681 = vadd.f32 %v4658, %v4676
        %v4682 = vadd.f32 %v4659, %v4676
        %v4683 = vadd.f32 %v4660, %v4676
        %v4684 = vadd.f32 %v4661, %v4676
        %v4685 = vadd.f32 %v4662, %v4676
        %v4686 = vadd.f32 %v4663, %v4676
        %v4687 = vadd.f32 %v4664, %v4676
        %v4688 = vadd.f32 %v4665, %v4676
        %v4689 = vadd.f32 %v4666, %v4676
        %v4690 = vadd.f32 %v4667, %v4676
        %v4691 = vadd.f32 %v4668, %v4676
        %v4692 = vadd.f32 %v4669, %v4676
        %v4693 = vadd.f32 %v4670, %v4676
        %v4694 = vsel %vm607, %v4678, 0.0
        %v4695 = vsel %vm607, %v4679, 0.0
        %v4696 = vsel %vm607, %v4680, 0.0
        %v4697 = vsel %vm607, %v4681, 0.0
        %v4698 = vsel %vm607, %v4682, 0.0
        %v4699 = vsel %vm607, %v4683, 0.0
        %v4700 = vsel %vm607, %v4684, 0.0
        %v4701 = vsel %vm607, %v4685, 0.0
        %v4702 = vsel %vm607, %v4686, 0.0
        %v4703 = vsel %vm607, %v4687, 0.0
        %v4704 = vsel %vm607, %v4688, 0.0
        %v4705 = vsel %vm607, %v4689, 0.0
        %v4706 = vsel %vm607, %v4690, 0.0
        %v4707 = vsel %vm607, %v4691, 0.0
        %v4708 = vsel %vm607, %v4692, 0.0
        %v4709 = vsel %vm607, %v4693, 0.0
        %4710 = vst [vmem:[%s526] sm:$0xff] %v4694
        %4711 = vst [vmem:[%s526 + $0x8] sm:$0xff] %v4695
        %4712 = vst [vmem:[%s526 + $0x10] sm:$0xff] %v4696
        %4713 = vst [vmem:[%s526 + $0x18] sm:$0xff] %v4697
        %4714 = vst [vmem:[%s526 + $0x20] sm:$0xff] %v4698
        %4715 = vst [vmem:[%s526 + $0x28] sm:$0xff] %v4699
        %4716 = vst [vmem:[%s526 + $0x30] sm:$0xff] %v4700
        %4717 = vst [vmem:[%s526 + $0x38] sm:$0xff] %v4701
        %4718 = vst [vmem:[%s526 + $0x40] sm:$0xff] %v4702
        %4719 = vst [vmem:[%s526 + $0x48] sm:$0xff] %v4703
        %4720 = vst [vmem:[%s526 + $0x50] sm:$0xff] %v4704
        %4721 = vst [vmem:[%s526 + $0x58] sm:$0xff] %v4705
        %4722 = vst [vmem:[%s526 + $0x60] sm:$0xff] %v4706
        %4723 = vst [vmem:[%s526 + $0x68] sm:$0xff] %v4707
        %4724 = vst [vmem:[%s526 + $0x70] sm:$0xff] %v4708
        %4725 = vst [vmem:[%s526 + $0x78] sm:$0xff] %v4709
        %p4726 = scmp.lt.s32.totalorder %s27, 1
        %s4727 = scalar_select %p4726, %s27, 1
        %s4728 = smul.addr %s4727, 16
        %s4729 = smul.addr %s4728, 8
        %s4730 = scalar_lea.vmem %s14, %s4729
        // Predicated region
        $region131: #{gnn6_forward.1} parent=75 // pred_check
          %p4731 = pneg %p349
        $region132: #{gnn6_forward.1} parent=75 // pred_check_branch
          %4733 = sbr.rel (%p4731) target = $region134
        $region133: #{gnn6_forward.1} parent=75 // pred_region
          _
        $region134: #{gnn6_forward.1} parent=75 // pred_fallthru
          _
      $region76: #{gnn6_forward.1} parent=5 // pred_fallthru
        _
      %p4734 = scmp.le.s32.totalorder 2, %s22
      // Predicated region
      $region135: #{gnn6_forward.1} parent=5 // pred_check
        %p4735 = pneg %p4734
      $region136: #{gnn6_forward.1} parent=5 // pred_check_branch
        %4737 = sbr.rel (%p4735) target = $region138
      $region137: #{gnn6_forward.1} parent=5 // pred_region
        %s4738 = ssub.s32 %s22, 2
        // Predicated region
        $region139: #{gnn6_forward.1} parent=137 // pred_check
          %p4739 = pneg %p355
        $region140: #{gnn6_forward.1} parent=137 // pred_check_branch
          %4741 = sbr.rel (%p4739) target = $region142
        $region141: #{gnn6_forward.1} parent=137 // pred_region
          %p4742 = scmp.lt.s32.totalorder %s28, 1
          %s4743 = scalar_select %p4742, %s28, 1
          %s4744 = smul.addr %s4743, 16
          %s4745 = smul.addr %s4744, 8
          %s4746 = scalar_lea.vmem %s14, %s4745
        $region142: #{gnn6_forward.1} parent=137 // pred_fallthru
          _
      $region138: #{gnn6_forward.1} parent=5 // pred_fallthru
        _
    $region6: #{gnn6_forward.1} parent=1 // loop_footer
      %s26 = sadd.s32 1, %s22
    $region7: #{gnn6_forward.1} parent=1 // loop_footer_branch
      %21 = sbr.rel target = $region3
    $region8: #{gnn6_forward.1} parent=1 // loop_exit
      _
    %4747 = vsyncpa [#allocation4], 1
    %s4748 = scalar_lea.sflag [#allocation4], 1
    %4749 = vsyncpa %s4748, 1
    %4750 = vsyncpa [#allocation6], 1

</llo_original>
